<compile_context>
chip_gen: v7x
topology: tpu7x:2x2x1
jax: 0.10.0
libtpu: 0.0.40
codegen_flags: <defaults>
</compile_context>

<pallas_src>
import functools

import jax
import jax.numpy as jnp
from jax.experimental import pallas as pl
from jax.experimental.pallas import tpu as pltpu

PAD_IDX = 0
SOS_IDX = 1
NEG_INF = -1e9
LN_EPS = 1e-5                      # torch.nn.LayerNorm default eps
VMEM_LIMIT = 32 * 1024 * 1024      # explicit scoped-VMEM limit (safe on v7x)
VMEM_BUDGET = 24 * 1024 * 1024     # per-grid-step tile budget used for tiling


def _row_tile(m, per_row_bytes, fixed_bytes, cap=512, mult=16,
              budget=VMEM_BUDGET):
    """Largest row tile that divides m, is a multiple of `mult` (bf16 sublane
    packing) unless it is m itself, stays <= cap, and keeps the per-step VMEM
    footprint (double-buffered tiles + resident weights) within `budget`."""
    if m <= cap and fixed_bytes + m * per_row_bytes <= budget:
        return m
    if m % mult != 0:
        return m                    # fall back to whole-row block
    best = mult
    t = mult
    while t <= min(m, cap):
        if m % t == 0 and fixed_bytes + t * per_row_bytes <= budget:
            best = t
        t += mult
    return best


def _layernorm(y, g, b):
    mean = jnp.mean(y, axis=-1, keepdims=True)
    var = jnp.mean((y - mean) ** 2, axis=-1, keepdims=True)
    return (y - mean) * jax.lax.rsqrt(var + LN_EPS) * g + b


# --------------------------------------------------------------------------
# Fused attention (+ optional FFN) + residual + LayerNorm kernel
# --------------------------------------------------------------------------
def _attn_ffn_ln_kernel(xq_ref, xkv_ref, qv_ref, kvld_ref,
                        wq_ref, bq_ref, wkv_ref, bkv_ref, wo_ref, bo_ref,
                        g1_ref, be1_ref, *rest, n_head, causal, with_ffn):
    if with_ffn:
        (w1_ref, b1_ref, w2_ref, b2_ref, g2_ref, be2_ref,
         o_ref, kv_s, ctx_s) = rest
    else:
        o_ref, kv_s, ctx_s = rest

    f32, bf16 = jnp.float32, jnp.bfloat16
    tq, D = xq_ref.shape[1], xq_ref.shape[2]
    Sk = xkv_ref.shape[1]
    Dh = D // n_head
    scale = 1.0 / float(Dh) ** 0.5

    # K/V projection once per batch element, cached in VMEM and reused across
    # all query tiles of this batch element (qi == 0 only).
    @pl.when(pl.program_id(1) == 0)
    def _():
        kv = jnp.dot(xkv_ref[0], wkv_ref[...], preferred_element_type=f32)
        kv_s[...] = (kv + bkv_ref[...]).astype(bf16)

    xq = xq_ref[0]                                            # (tq, D) bf16
    q = jnp.dot(xq, wq_ref[...], preferred_element_type=f32) + bq_ref[...]

    # Mask rebuilt in-kernel from per-token pad flags (no O(S^2) mask DMA),
    # hoisted out of the head loop as an additive bias.
    valid = qv_ref[0] * kvld_ref[0]                           # (tq,1)*(1,Sk)
    if causal:
        row = (pl.program_id(1) * tq
               + jax.lax.broadcasted_iota(jnp.int32, (tq, Sk), 0))
        col = jax.lax.broadcasted_iota(jnp.int32, (tq, Sk), 1)
        valid = valid * (col <= row).astype(jnp.int32)
    bias = jnp.where(valid != 0, 0.0, NEG_INF).astype(f32)

    k = kv_s[:, :D]                                           # (Sk, D) bf16
    v = kv_s[:, D:]
    for h in range(n_head):                                   # static unroll
        # TODO(synk): at production Dh (>=128) switch to grouped heads /
        # leading-axis head layout to avoid sub-128-lane slices here.
        sl = slice(h * Dh, (h + 1) * Dh)
        s = jax.lax.dot_general(q[:, sl].astype(bf16), k[:, sl],
                                (((1,), (1,)), ((), ())),
                                preferred_element_type=f32) * scale + bias
        s = s - jnp.max(s, axis=-1, keepdims=True)
        p = jnp.exp(s)
        p = p / jnp.sum(p, axis=-1, keepdims=True)            # exact softmax
        ctx_s[:, sl] = jnp.dot(p.astype(bf16), v[:, sl],
                               preferred_element_type=f32)

    # Single full-contraction out-projection over the merged heads.
    attn = jnp.dot(ctx_s[...].astype(bf16), wo_ref[...],
                   preferred_element_type=f32) + bo_ref[...]
    y = xq.astype(f32) + attn                                 # residual 1
    y = _layernorm(y, g1_ref[...], be1_ref[...])

    if with_ffn:
        h1 = jnp.dot(y.astype(bf16), w1_ref[...], preferred_element_type=f32)
        h1 = jnp.maximum(h1 + b1_ref[...], 0.0)
        o2 = jnp.dot(h1.astype(bf16), w2_ref[...], preferred_element_type=f32)
        y = _layernorm(y + o2 + b2_ref[...], g2_ref[...], be2_ref[...])

    o_ref[0] = y.astype(o_ref.dtype)


def attn_block(x_q, x_kv, q_valid, k_valid, ap, gamma1, beta1, n_head,
               *, causal, ffn):
    """Fused MHA + out-proj + residual + LN (+ optional FFN + residual + LN)."""
    B, Sq, D = x_q.shape
    Sk = x_kv.shape[1]
    assert D % n_head == 0
    with_ffn = ffn is not None

    # VMEM-budget-driven query tiling (keeps v7x's 64 MiB happy, gives the
    # megacore "parallel" B axis more than one step per core at real sizes).
    fixed = (2 * Sk * D * 2                 # x_kv bf16, double-buffered
             + Sk * 2 * D * 2               # K|V scratch
             + 2 * (D * D + D * 2 * D + D * D))   # attention weights (bf16)
    per_row = 2 * (2 * D * 2) + Sk * 4 + D * 4   # x_q/out tiles, scores, ctx
    if with_ffn:
        H = ffn[0]['w1'].shape[1]
        fixed += 2 * (D * H + H * D)
        per_row += H * 4
    tq = _row_tile(Sq, per_row, fixed)

    kern = functools.partial(_attn_ffn_ln_kernel, n_head=n_head,
                             causal=causal, with_ffn=with_ffn)
    in_specs = [
        pl.BlockSpec((1, tq, D), lambda b, qi: (b, qi, 0)),   # x_q (+ residual)
        pl.BlockSpec((1, Sk, D), lambda b, qi: (b, 0, 0)),    # x_kv (whole seq)
        pl.BlockSpec((1, tq, 1), lambda b, qi: (b, qi, 0)),   # query pad flags
        pl.BlockSpec((1, 1, Sk), lambda b, qi: (b, 0, 0)),    # key pad flags
        pl.BlockSpec((D, D), lambda b, qi: (0, 0)),           # Wq  (bf16)
        pl.BlockSpec((1, D), lambda b, qi: (0, 0)),           # bq
        pl.BlockSpec((D, 2 * D), lambda b, qi: (0, 0)),       # W_kv fused (bf16)
        pl.BlockSpec((1, 2 * D), lambda b, qi: (0, 0)),       # b_kv
        pl.BlockSpec((D, D), lambda b, qi: (0, 0)),           # Wo  (bf16)
        pl.BlockSpec((1, D), lambda b, qi: (0, 0)),           # bo
        pl.BlockSpec((1, D), lambda b, qi: (0, 0)),           # ln gamma
        pl.BlockSpec((1, D), lambda b, qi: (0, 0)),           # ln beta
    ]
    args = [x_q, x_kv, q_valid[:, :, None], k_valid[:, None, :],
            ap['wq'], ap['bq'], ap['wkv'], ap['bkv'], ap['wo'], ap['bo'],
            gamma1, beta1]
    if with_ffn:
        fp, g2, b2 = ffn
        H = fp['w1'].shape[1]
        in_specs += [
            pl.BlockSpec((D, H), lambda b, qi: (0, 0)),       # W1 (bf16)
            pl.BlockSpec((1, H), lambda b, qi: (0, 0)),       # b1
            pl.BlockSpec((H, D), lambda b, qi: (0, 0)),       # W2 (bf16)
            pl.BlockSpec((1, D), lambda b, qi: (0, 0)),       # b2
            pl.BlockSpec((1, D), lambda b, qi: (0, 0)),       # ln2 gamma
            pl.BlockSpec((1, D), lambda b, qi: (0, 0)),       # ln2 beta
        ]
        args += [fp['w1'], fp['b1'], fp['w2'], fp['b2'], g2, b2]

    return pl.pallas_call(
        kern,
        grid=(B, Sq // tq),
        in_specs=in_specs,
        out_specs=pl.BlockSpec((1, tq, D), lambda b, qi: (b, qi, 0)),
        out_shape=jax.ShapeDtypeStruct((B, Sq, D), jnp.bfloat16),
        scratch_shapes=[pltpu.VMEM((Sk, 2 * D), jnp.bfloat16),   # cached K|V
                        pltpu.VMEM((tq, D), jnp.float32)],       # merged heads
        compiler_params=pltpu.CompilerParams(
            dimension_semantics=("parallel", "arbitrary"),
            vmem_limit_bytes=VMEM_LIMIT),
    )(*args)


# --------------------------------------------------------------------------
# Fused vocab projection + log_softmax
# --------------------------------------------------------------------------
def _proj_logsoftmax_kernel(x_ref, w_ref, b_ref, o_ref):
    logits = jnp.dot(x_ref[...], w_ref[...],
                     preferred_element_type=jnp.float32) + b_ref[...]
    m = jnp.max(logits, axis=-1, keepdims=True)
    s = logits - m
    o_ref[...] = s - jnp.log(jnp.sum(jnp.exp(s), axis=-1, keepdims=True))


def proj_logsoftmax(y, w, b):
    """Fused vocab projection + nn.LogSoftmax(dim=-1); logits never hit HBM."""
    # TODO(synk): at production vocab sizes add a V (and K) tile axis with an
    # online logsumexp + @pl.when init/finalize so the (D,V) weight and (tm,V)
    # logits never have to be whole-resident in VMEM (v7x 64 MiB).
    B, S, D = y.shape
    V = w.shape[1]
    M = B * S
    fixed = 2 * D * V * 2 + V * 4
    per_row = 2 * (D * 2 + V * 4)
    tm = _row_tile(M, per_row, fixed, cap=1024)
    out = pl.pallas_call(
        _proj_logsoftmax_kernel,
        grid=(M // tm,),
        in_specs=[pl.BlockSpec((tm, D), lambda i: (i, 0)),
                  pl.BlockSpec((D, V), lambda i: (0, 0)),
                  pl.BlockSpec((1, V), lambda i: (0, 0))],
        out_specs=pl.BlockSpec((tm, V), lambda i: (i, 0)),
        out_shape=jax.ShapeDtypeStruct((M, V), jnp.float32),
        compiler_params=pltpu.CompilerParams(
            dimension_semantics=("parallel",),
            vmem_limit_bytes=VMEM_LIMIT),
    )(y.reshape(M, D), w, b)
    return out.reshape(B, S, V)


# --------------------------------------------------------------------------
# Plain-JAX glue: embeddings, layer wiring
# --------------------------------------------------------------------------
def sinusoidal_pos_encoding(max_len, d_model):
    pos = jnp.arange(max_len, dtype=jnp.float32)[:, None]
    i = jnp.arange(0, d_model, 2, dtype=jnp.float32)
    angle = pos / jnp.power(10000.0, i / d_model)
    pe = jnp.zeros((max_len, d_model), jnp.float32)
    pe = pe.at[:, 0::2].set(jnp.sin(angle))
    pe = pe.at[:, 1::2].set(jnp.cos(angle))
    return pe


# TODO(synk): dropout(d_prob) layers are treated as identity (eval/inference).
def encoder_layer(lp, x, src_valid, n_head):
    return attn_block(x, x, src_valid, src_valid, lp['attn'],
                      lp['ln1_g'], lp['ln1_b'], n_head, causal=False,
                      ffn=(lp['ffn'], lp['ln2_g'], lp['ln2_b']))


def decoder_layer(lp, y, enc, tgt_valid, src_valid, n_head):
    y = attn_block(y, y, tgt_valid, tgt_valid, lp['attn'],
                   lp['ln1_g'], lp['ln1_b'], n_head, causal=True, ffn=None)
    y = attn_block(y, enc, tgt_valid, src_valid, lp['cross'],
                   lp['ln2_g'], lp['ln2_b'], n_head, causal=False,
                   ffn=(lp['ffn'], lp['ln3_g'], lp['ln3_b']))
    return y


def transformer_forward(params, src, tgt, n_head):
    B, Ss = src.shape
    St = tgt.shape[1]
    src_valid = (src != PAD_IDX).astype(jnp.int32)     # (B, Ss)
    tgt_valid = (tgt != PAD_IDX).astype(jnp.int32)     # (B, St)

    # encoder: token embedding + positional encoding (plain-JAX gather)
    x = (params['enc']['tok_emb'][src] + params['pos_enc'][:Ss]).astype(jnp.bfloat16)
    for lp in params['enc']['layers']:
        x = encoder_layer(lp, x, src_valid, n_head)
    enc_src = x

    # decoder
    y = (params['dec']['tok_emb'][tgt] + params['pos_enc'][:St]).astype(jnp.bfloat16)
    for lp in params['dec']['layers']:
        y = decoder_layer(lp, y, enc_src, tgt_valid, src_valid, n_head)

    # fused final projection + nn.LogSoftmax(dim=-1)
    return proj_logsoftmax(y, params['dec']['w_out'], params['dec']['b_out'])


# --------------------------------------------------------------------------
# Deterministic parameter init (xavier-uniform-ish, matching __init__ shapes)
# Matmul weights are stored in bf16 ONCE here; biases / LN params stay f32.
# --------------------------------------------------------------------------
def init_params(key, vocab_size, max_len, d_model, d_hidden, n_enc, n_dec):
    keys = iter(jax.random.split(key, 512))
    bf16 = jnp.bfloat16

    def dense(din, dout):
        limit = float(jnp.sqrt(6.0 / (din + dout)))
        w = jax.random.uniform(next(keys), (din, dout), jnp.float32, -limit, limit)
        return w, jnp.zeros((1, dout), jnp.float32)

    def attn_params():
        wq, bq = dense(d_model, d_model)
        wk, bk = dense(d_model, d_model)
        wv, bv = dense(d_model, d_model)
        wo, bo = dense(d_model, d_model)
        return {'wq': wq.astype(bf16), 'bq': bq,
                'wkv': jnp.concatenate([wk, wv], axis=1).astype(bf16),
                'bkv': jnp.concatenate([bk, bv], axis=1),
                'wo': wo.astype(bf16), 'bo': bo}

    def ln():
        return (jnp.ones((1, d_model), jnp.float32),
                jnp.zeros((1, d_model), jnp.float32))

    def layer(decoder):
        w1, b1 = dense(d_model, d_hidden)
        w2, b2 = dense(d_hidden, d_model)
        g1, be1 = ln()
        g2, be2 = ln()
        p = {'attn': attn_params(),
             'ffn': {'w1': w1.astype(bf16), 'b1': b1,
                     'w2': w2.astype(bf16), 'b2': b2},
             'ln1_g': g1, 'ln1_b': be1, 'ln2_g': g2, 'ln2_b': be2}
        if decoder:
            g3, be3 = ln()
            p['cross'] = attn_params()
            p['ln3_g'] = g3
            p['ln3_b'] = be3
        return p

    w_out, b_out = dense(d_model, vocab_size)
    return {
        'pos_enc': sinusoidal_pos_encoding(max_len, d_model),
        'enc': {'tok_emb': 0.02 * jax.random.normal(next(keys), (vocab_size, d_model)),
                'layers': [layer(False) for _ in range(n_enc)]},
        'dec': {'tok_emb': 0.02 * jax.random.normal(next(keys), (vocab_size, d_model)),
                'layers': [layer(True) for _ in range(n_dec)],
                'w_out': w_out.astype(bf16), 'b_out': b_out},
    }


# --------------------------------------------------------------------------
if __name__ == "__main__":
    vocab = {'[PAD]': PAD_IDX, '[SOS]': SOS_IDX}   # matches Transformer.__init__
    num_token = 32          # vocab size
    max_seq_len = 8
    dim_model = 32
    n_head = 4
    dim_hidden = 64
    n_enc_layer = 2
    n_dec_layer = 2
    batch = 2

    key = jax.random.PRNGKey(0)
    k_par, k_src, k_tgt = jax.random.split(key, 3)

    params = init_params(k_par, num_token, max_seq_len, dim_model,
                         dim_hidden, n_enc_layer, n_dec_layer)

    src = jax.random.randint(k_src, (batch, max_seq_len), 2, num_token, dtype=jnp.int32)
    tgt = jax.random.randint(k_tgt, (batch, max_seq_len), 2, num_token, dtype=jnp.int32)
    # add some PAD / SOS tokens so the masks are exercised
    src = src.at[:, -2:].set(vocab['[PAD]'])
    tgt = tgt.at[:, 0].set(vocab['[SOS]'])
    tgt = tgt.at[:, -1].set(vocab['[PAD]'])

    fwd = jax.jit(functools.partial(transformer_forward, n_head=n_head))
    out = fwd(params, src, tgt)
    jax.block_until_ready(out)

    assert out.shape == (batch, max_seq_len, num_token)
    assert bool(jnp.all(jnp.isfinite(out)))
    # log-softmax rows must sum to ~1 in prob space
    assert bool(jnp.allclose(jnp.sum(jnp.exp(out), axis=-1), 1.0, atol=1e-4))
    print("KERNEL_OK")
</pallas_src>

<mosaic_0001>
module attributes {stable_mosaic.version = 11 : i64} {
  func.func @_proj_logsoftmax_kernel(%arg0: i32, %arg1: memref<16x32xbf16, #tpu.memory_space<vmem>>, %arg2: memref<32x32xbf16, #tpu.memory_space<vmem>>, %arg3: memref<1x32xf32, #tpu.memory_space<vmem>>, %arg4: memref<16x32xf32, #tpu.memory_space<vmem>>) attributes {dimension_semantics = [#tpu.dimension_semantics<parallel>], iteration_bounds = array<i64: 1>, scalar_prefetch = 0 : i64, scratch_operands = 0 : i64, tpu.core_type = #tpu.core_type<tc>, window_params = [{transform_indices = @transform_0, window_bounds = array<i64: 16, 32>}, {pipeline_mode = #tpu.pipeline_mode<synchronous>, transform_indices = @transform_1, window_bounds = array<i64: 32, 32>}, {pipeline_mode = #tpu.pipeline_mode<synchronous>, transform_indices = @transform_2, window_bounds = array<i64: 1, 32>}, {transform_indices = @transform_3, window_bounds = array<i64: 16, 32>}]} {
    %c0 = arith.constant 0 : index
    %c0_0 = arith.constant 0 : index
    %0 = vector.load %arg1[%c0, %c0_0] : memref<16x32xbf16, #tpu.memory_space<vmem>>, vector<16x32xbf16>
    %c0_1 = arith.constant 0 : index
    %c0_2 = arith.constant 0 : index
    %1 = vector.load %arg2[%c0_1, %c0_2] : memref<32x32xbf16, #tpu.memory_space<vmem>>, vector<32x32xbf16>
    %cst = arith.constant dense<0.000000e+00> : vector<16x32xf32>
    %2 = tpu.matmul %0, %1, %cst {dimension_numbers = #tpu.dot_dimension_numbers<[1], [0], [0], [1], [0, 0, 1, 1], [], []>} : vector<16x32xbf16>, vector<32x32xbf16>, vector<16x32xf32> -> vector<16x32xf32>
    %c0_3 = arith.constant 0 : index
    %c0_4 = arith.constant 0 : index
    %3 = vector.load %arg3[%c0_3, %c0_4] : memref<1x32xf32, #tpu.memory_space<vmem>>, vector<1x32xf32>
    %4 = vector.broadcast %3 : vector<1x32xf32> to vector<16x32xf32>
    %5 = arith.addf %2, %4 : vector<16x32xf32>
    %cst_5 = arith.constant dense<0xFF800000> : vector<16xf32>
    %6 = vector.multi_reduction <maximumf>, %5, %cst_5 [1] : vector<16x32xf32> to vector<16xf32>
    %7 = vector.shape_cast %6 : vector<16xf32> to vector<16x1xf32>
    %8 = vector.broadcast %7 : vector<16x1xf32> to vector<16x32xf32>
    %9 = arith.subf %5, %8 : vector<16x32xf32>
    %10 = math.exp %9 : vector<16x32xf32>
    %cst_6 = arith.constant dense<0.000000e+00> : vector<16xf32>
    %11 = vector.multi_reduction <add>, %10, %cst_6 [1] : vector<16x32xf32> to vector<16xf32>
    %12 = vector.shape_cast %11 : vector<16xf32> to vector<16x1xf32>
    %13 = math.log %12 : vector<16x1xf32>
    %14 = vector.broadcast %13 : vector<16x1xf32> to vector<16x32xf32>
    %15 = arith.subf %9, %14 : vector<16x32xf32>
    %c0_7 = arith.constant 0 : index
    %c0_8 = arith.constant 0 : index
    %16 = vector.load %arg4[%c0_7, %c0_8] : memref<16x32xf32, #tpu.memory_space<vmem>>, vector<16x32xf32>
    tpu.vector_store %arg4[%c0_7, %c0_8], %15 {strides = array<i32>} : memref<16x32xf32, #tpu.memory_space<vmem>>, vector<16x32xf32>,
    return
  }
  func.func @transform_0(%arg0: i32) -> (i32, i32) {
    %c0_i32 = arith.constant 0 : i32
    %c0_i32_0 = arith.constant 0 : i32
    return %arg0, %c0_i32 : i32, i32
  }
  func.func @transform_1(%arg0: i32) -> (i32, i32) {
    %c0_i32 = arith.constant 0 : i32
    %c0_i32_0 = arith.constant 0 : i32
    %c0_i32_1 = arith.constant 0 : i32
    return %c0_i32, %c0_i32_0 : i32, i32
  }
  func.func @transform_2(%arg0: i32) -> (i32, i32) {
    %c0_i32 = arith.constant 0 : i32
    %c0_i32_0 = arith.constant 0 : i32
    %c0_i32_1 = arith.constant 0 : i32
    return %c0_i32, %c0_i32_0 : i32, i32
  }
  func.func @transform_3(%arg0: i32) -> (i32, i32) {
    %c0_i32 = arith.constant 0 : i32
    %c0_i32_0 = arith.constant 0 : i32
    return %arg0, %c0_i32 : i32, i32
  }
}

module attributes {stable_mosaic.version = 11 : i64} {
  func.func @_attn_ffn_ln_kernel(%arg0: i32, %arg1: i32, %arg2: memref<1x8x32xbf16, #tpu.memory_space<vmem>>, %arg3: memref<1x8x32xbf16, #tpu.memory_space<vmem>>, %arg4: memref<1x8x1xi32, #tpu.memory_space<vmem>>, %arg5: memref<1x1x8xi32, #tpu.memory_space<vmem>>, %arg6: memref<32x32xbf16, #tpu.memory_space<vmem>>, %arg7: memref<1x32xf32, #tpu.memory_space<vmem>>, %arg8: memref<32x64xbf16, #tpu.memory_space<vmem>>, %arg9: memref<1x64xf32, #tpu.memory_space<vmem>>, %arg10: memref<32x32xbf16, #tpu.memory_space<vmem>>, %arg11: memref<1x32xf32, #tpu.memory_space<vmem>>, %arg12: memref<1x32xf32, #tpu.memory_space<vmem>>, %arg13: memref<1x32xf32, #tpu.memory_space<vmem>>, %arg14: memref<1x8x32xbf16, #tpu.memory_space<vmem>>, %arg15: memref<8x64xbf16, #tpu.memory_space<vmem>>, %arg16: memref<8x32xf32, #tpu.memory_space<vmem>>) attributes {dimension_semantics = [#tpu.dimension_semantics<parallel>, #tpu.dimension_semantics<arbitrary>], iteration_bounds = array<i64: 2, 1>, scalar_prefetch = 0 : i64, scratch_operands = 2 : i64, tpu.core_type = #tpu.core_type<tc>, window_params = [{transform_indices = @transform_0, window_bounds = array<i64: 1, 8, 32>}, {transform_indices = @transform_1, window_bounds = array<i64: 1, 8, 32>}, {transform_indices = @transform_2, window_bounds = array<i64: 1, 8, 1>}, {transform_indices = @transform_3, window_bounds = array<i64: 1, 1, 8>}, {pipeline_mode = #tpu.pipeline_mode<synchronous>, transform_indices = @transform_4, window_bounds = array<i64: 32, 32>}, {pipeline_mode = #tpu.pipeline_mode<synchronous>, transform_indices = @transform_5, window_bounds = array<i64: 1, 32>}, {pipeline_mode = #tpu.pipeline_mode<synchronous>, transform_indices = @transform_6, window_bounds = array<i64: 32, 64>}, {pipeline_mode = #tpu.pipeline_mode<synchronous>, transform_indices = @transform_7, window_bounds = array<i64: 1, 64>}, {pipeline_mode = #tpu.pipeline_mode<synchronous>, transform_indices = @transform_8, window_bounds = array<i64: 32, 32>}, {pipeline_mode = #tpu.pipeline_mode<synchronous>, transform_indices = @transform_9, window_bounds = array<i64: 1, 32>}, {pipeline_mode = #tpu.pipeline_mode<synchronous>, transform_indices = @transform_10, window_bounds = array<i64: 1, 32>}, {pipeline_mode = #tpu.pipeline_mode<synchronous>, transform_indices = @transform_11, window_bounds = array<i64: 1, 32>}, {transform_indices = @transform_12, window_bounds = array<i64: 1, 8, 32>}]} {
    %c0_i32 = arith.constant 0 : i32
    %0 = arith.cmpi eq, %arg1, %c0_i32 : i32
    %1 = arith.extui %0 : i1 to i32
    %c0_i32_0 = arith.constant 0 : i32
    %2 = arith.cmpi ne, %1, %c0_i32_0 : i32
    scf.if %2 {
      %c0_63 = arith.constant 0 : index
      %c0_64 = arith.constant 0 : index
      %c0_65 = arith.constant 0 : index
      %149 = vector.load %arg3[%c0_63, %c0_64, %c0_65] : memref<1x8x32xbf16, #tpu.memory_space<vmem>>, vector<1x8x32xbf16>
      %150 = vector.shape_cast %149 : vector<1x8x32xbf16> to vector<8x32xbf16>
      %c0_66 = arith.constant 0 : index
      %c0_67 = arith.constant 0 : index
      %151 = vector.load %arg8[%c0_66, %c0_67] : memref<32x64xbf16, #tpu.memory_space<vmem>>, vector<32x64xbf16>
      %cst_68 = arith.constant dense<0.000000e+00> : vector<8x64xf32>
      %152 = tpu.matmul %150, %151, %cst_68 {dimension_numbers = #tpu.dot_dimension_numbers<[1], [0], [0], [1], [0, 0, 1, 1], [], []>} : vector<8x32xbf16>, vector<32x64xbf16>, vector<8x64xf32> -> vector<8x64xf32>
      %c0_69 = arith.constant 0 : index
      %c0_70 = arith.constant 0 : index
      %153 = vector.load %arg9[%c0_69, %c0_70] : memref<1x64xf32, #tpu.memory_space<vmem>>, vector<1x64xf32>
      %154 = vector.broadcast %153 : vector<1x64xf32> to vector<8x64xf32>
      %155 = arith.addf %152, %154 : vector<8x64xf32>
      %156 = arith.truncf %155 : vector<8x64xf32> to vector<8x64xbf16>
      %c0_71 = arith.constant 0 : index
      %c0_72 = arith.constant 0 : index
      %157 = vector.load %arg15[%c0_71, %c0_72] : memref<8x64xbf16, #tpu.memory_space<vmem>>, vector<8x64xbf16>
      tpu.vector_store %arg15[%c0_71, %c0_72], %156 {strides = array<i32>} : memref<8x64xbf16, #tpu.memory_space<vmem>>, vector<8x64xbf16>,
    } else {
    }
    %c0 = arith.constant 0 : index
    %c0_1 = arith.constant 0 : index
    %c0_2 = arith.constant 0 : index
    %3 = vector.load %arg2[%c0, %c0_1, %c0_2] : memref<1x8x32xbf16, #tpu.memory_space<vmem>>, vector<1x8x32xbf16>
    %4 = vector.shape_cast %3 : vector<1x8x32xbf16> to vector<8x32xbf16>
    %c0_3 = arith.constant 0 : index
    %c0_4 = arith.constant 0 : index
    %5 = vector.load %arg6[%c0_3, %c0_4] : memref<32x32xbf16, #tpu.memory_space<vmem>>, vector<32x32xbf16>
    %cst = arith.constant dense<0.000000e+00> : vector<8x32xf32>
    %6 = tpu.matmul %4, %5, %cst {dimension_numbers = #tpu.dot_dimension_numbers<[1], [0], [0], [1], [0, 0, 1, 1], [], []>} : vector<8x32xbf16>, vector<32x32xbf16>, vector<8x32xf32> -> vector<8x32xf32>
    %c0_5 = arith.constant 0 : index
    %c0_6 = arith.constant 0 : index
    %7 = vector.load %arg7[%c0_5, %c0_6] : memref<1x32xf32, #tpu.memory_space<vmem>>, vector<1x32xf32>
    %8 = vector.broadcast %7 : vector<1x32xf32> to vector<8x32xf32>
    %9 = arith.addf %6, %8 : vector<8x32xf32>
    %c0_7 = arith.constant 0 : index
    %c0_8 = arith.constant 0 : index
    %c0_9 = arith.constant 0 : index
    %10 = vector.load %arg4[%c0_7, %c0_8, %c0_9] : memref<1x8x1xi32, #tpu.memory_space<vmem>>, vector<1x8x1xi32>
    %11 = vector.shape_cast %10 : vector<1x8x1xi32> to vector<8x1xi32>
    %c0_10 = arith.constant 0 : index
    %c0_11 = arith.constant 0 : index
    %c0_12 = arith.constant 0 : index
    %12 = vector.load %arg5[%c0_10, %c0_11, %c0_12] : memref<1x1x8xi32, #tpu.memory_space<vmem>>, vector<1x1x8xi32>
    %13 = vector.shape_cast %12 : vector<1x1x8xi32> to vector<1x8xi32>
    %14 = vector.broadcast %11 : vector<8x1xi32> to vector<8x8xi32>
    %15 = vector.broadcast %13 : vector<1x8xi32> to vector<8x8xi32>
    %16 = arith.muli %14, %15 : vector<8x8xi32>
    %c8_i32 = arith.constant 8 : i32
    %17 = arith.muli %arg1, %c8_i32 : i32
    %18 = tpu.iota {dimensions = array<i32: 0>} : vector<8x8xi32>
    %19 = vector.broadcast %17 : i32 to vector<8x8xi32>
    %20 = arith.addi %19, %18 : vector<8x8xi32>
    %21 = tpu.iota {dimensions = array<i32: 1>} : vector<8x8xi32>
    %22 = arith.cmpi sle, %21, %20 : vector<8x8xi32>
    %23 = arith.extui %22 : vector<8x8xi1> to vector<8x8xi32>
    %24 = arith.muli %16, %23 : vector<8x8xi32>
    %c0_i32_13 = arith.constant 0 : i32
    %25 = vector.broadcast %c0_i32_13 : i32 to vector<8x8xi32>
    %26 = arith.cmpi ne, %24, %25 : vector<8x8xi32>
    %cst_14 = arith.constant 0.000000e+00 : f32
    %cst_15 = arith.constant -1.000000e+09 : f32
    %27 = vector.broadcast %cst_14 : f32 to vector<8x8xf32>
    %28 = vector.broadcast %cst_15 : f32 to vector<8x8xf32>
    %29 = arith.select %26, %27, %28 : vector<8x8xi1>, vector<8x8xf32>
    %c0_16 = arith.constant 0 : index
    %c0_17 = arith.constant 0 : index
    %30 = vector.load %arg15[%c0_16, %c0_17] : memref<8x64xbf16, #tpu.memory_space<vmem>>, vector<8x32xbf16>
    %c0_18 = arith.constant 0 : index
    %c32 = arith.constant 32 : index
    %31 = vector.load %arg15[%c0_18, %c32] : memref<8x64xbf16, #tpu.memory_space<vmem>>, vector<8x32xbf16>
    %32 = vector.extract_strided_slice %9 {offsets = [0, 0], sizes = [8, 8], strides = [1, 1]} : vector<8x32xf32> to vector<8x8xf32>
    %33 = arith.truncf %32 : vector<8x8xf32> to vector<8x8xbf16>
    %34 = vector.extract_strided_slice %30 {offsets = [0, 0], sizes = [8, 8], strides = [1, 1]} : vector<8x32xbf16> to vector<8x8xbf16>
    %cst_19 = arith.constant dense<0.000000e+00> : vector<8x8xf32>
    %35 = tpu.matmul %33, %34, %cst_19 {dimension_numbers = #tpu.dot_dimension_numbers<[1], [1], [0], [0], [0, 0, 1, 0], [], []>} : vector<8x8xbf16>, vector<8x8xbf16>, vector<8x8xf32> -> vector<8x8xf32>
    %cst_20 = arith.constant 0.353553385 : f32
    %36 = vector.broadcast %cst_20 : f32 to vector<8x8xf32>
    %37 = arith.mulf %35, %36 : vector<8x8xf32>
    %38 = arith.addf %37, %29 : vector<8x8xf32>
    %cst_21 = arith.constant dense<0xFF800000> : vector<8xf32>
    %39 = vector.multi_reduction <maximumf>, %38, %cst_21 [1] : vector<8x8xf32> to vector<8xf32>
    %40 = vector.shape_cast %39 : vector<8xf32> to vector<8x1xf32>
    %41 = vector.broadcast %40 : vector<8x1xf32> to vector<8x8xf32>
    %42 = arith.subf %38, %41 : vector<8x8xf32>
    %43 = math.exp %42 : vector<8x8xf32>
    %cst_22 = arith.constant dense<0.000000e+00> : vector<8xf32>
    %44 = vector.multi_reduction <add>, %43, %cst_22 [1] : vector<8x8xf32> to vector<8xf32>
    %45 = vector.shape_cast %44 : vector<8xf32> to vector<8x1xf32>
    %46 = vector.broadcast %45 : vector<8x1xf32> to vector<8x8xf32>
    %47 = arith.divf %43, %46 : vector<8x8xf32>
    %48 = arith.truncf %47 : vector<8x8xf32> to vector<8x8xbf16>
    %49 = vector.extract_strided_slice %31 {offsets = [0, 0], sizes = [8, 8], strides = [1, 1]} : vector<8x32xbf16> to vector<8x8xbf16>
    %cst_23 = arith.constant dense<0.000000e+00> : vector<8x8xf32>
    %50 = tpu.matmul %48, %49, %cst_23 {dimension_numbers = #tpu.dot_dimension_numbers<[1], [0], [0], [1], [0, 0, 1, 1], [], []>} : vector<8x8xbf16>, vector<8x8xbf16>, vector<8x8xf32> -> vector<8x8xf32>
    %c0_24 = arith.constant 0 : index
    %c0_25 = arith.constant 0 : index
    %51 = vector.load %arg16[%c0_24, %c0_25] : memref<8x32xf32, #tpu.memory_space<vmem>>, vector<8x8xf32>
    tpu.vector_store %arg16[%c0_24, %c0_25], %50 {strides = array<i32>} : memref<8x32xf32, #tpu.memory_space<vmem>>, vector<8x8xf32>,
    %52 = vector.extract_strided_slice %9 {offsets = [0, 8], sizes = [8, 8], strides = [1, 1]} : vector<8x32xf32> to vector<8x8xf32>
    %53 = arith.truncf %52 : vector<8x8xf32> to vector<8x8xbf16>
    %54 = vector.extract_strided_slice %30 {offsets = [0, 8], sizes = [8, 8], strides = [1, 1]} : vector<8x32xbf16> to vector<8x8xbf16>
    %cst_26 = arith.constant dense<0.000000e+00> : vector<8x8xf32>
    %55 = tpu.matmul %53, %54, %cst_26 {dimension_numbers = #tpu.dot_dimension_numbers<[1], [1], [0], [0], [0, 0, 1, 0], [], []>} : vector<8x8xbf16>, vector<8x8xbf16>, vector<8x8xf32> -> vector<8x8xf32>
    %cst_27 = arith.constant 0.353553385 : f32
    %56 = vector.broadcast %cst_27 : f32 to vector<8x8xf32>
    %57 = arith.mulf %55, %56 : vector<8x8xf32>
    %58 = arith.addf %57, %29 : vector<8x8xf32>
    %cst_28 = arith.constant dense<0xFF800000> : vector<8xf32>
    %59 = vector.multi_reduction <maximumf>, %58, %cst_28 [1] : vector<8x8xf32> to vector<8xf32>
    %60 = vector.shape_cast %59 : vector<8xf32> to vector<8x1xf32>
    %61 = vector.broadcast %60 : vector<8x1xf32> to vector<8x8xf32>
    %62 = arith.subf %58, %61 : vector<8x8xf32>
    %63 = math.exp %62 : vector<8x8xf32>
    %cst_29 = arith.constant dense<0.000000e+00> : vector<8xf32>
    %64 = vector.multi_reduction <add>, %63, %cst_29 [1] : vector<8x8xf32> to vector<8xf32>
    %65 = vector.shape_cast %64 : vector<8xf32> to vector<8x1xf32>
    %66 = vector.broadcast %65 : vector<8x1xf32> to vector<8x8xf32>
    %67 = arith.divf %63, %66 : vector<8x8xf32>
    %68 = arith.truncf %67 : vector<8x8xf32> to vector<8x8xbf16>
    %69 = vector.extract_strided_slice %31 {offsets = [0, 8], sizes = [8, 8], strides = [1, 1]} : vector<8x32xbf16> to vector<8x8xbf16>
    %cst_30 = arith.constant dense<0.000000e+00> : vector<8x8xf32>
    %70 = tpu.matmul %68, %69, %cst_30 {dimension_numbers = #tpu.dot_dimension_numbers<[1], [0], [0], [1], [0, 0, 1, 1], [], []>} : vector<8x8xbf16>, vector<8x8xbf16>, vector<8x8xf32> -> vector<8x8xf32>
    %c0_31 = arith.constant 0 : index
    %c8 = arith.constant 8 : index
    %71 = vector.load %arg16[%c0_31, %c8] : memref<8x32xf32, #tpu.memory_space<vmem>>, vector<8x8xf32>
    tpu.vector_store %arg16[%c0_31, %c8], %70 {strides = array<i32>} : memref<8x32xf32, #tpu.memory_space<vmem>>, vector<8x8xf32>,
    %72 = vector.extract_strided_slice %9 {offsets = [0, 16], sizes = [8, 8], strides = [1, 1]} : vector<8x32xf32> to vector<8x8xf32>
    %73 = arith.truncf %72 : vector<8x8xf32> to vector<8x8xbf16>
    %74 = vector.extract_strided_slice %30 {offsets = [0, 16], sizes = [8, 8], strides = [1, 1]} : vector<8x32xbf16> to vector<8x8xbf16>
    %cst_32 = arith.constant dense<0.000000e+00> : vector<8x8xf32>
    %75 = tpu.matmul %73, %74, %cst_32 {dimension_numbers = #tpu.dot_dimension_numbers<[1], [1], [0], [0], [0, 0, 1, 0], [], []>} : vector<8x8xbf16>, vector<8x8xbf16>, vector<8x8xf32> -> vector<8x8xf32>
    %cst_33 = arith.constant 0.353553385 : f32
    %76 = vector.broadcast %cst_33 : f32 to vector<8x8xf32>
    %77 = arith.mulf %75, %76 : vector<8x8xf32>
    %78 = arith.addf %77, %29 : vector<8x8xf32>
    %cst_34 = arith.constant dense<0xFF800000> : vector<8xf32>
    %79 = vector.multi_reduction <maximumf>, %78, %cst_34 [1] : vector<8x8xf32> to vector<8xf32>
    %80 = vector.shape_cast %79 : vector<8xf32> to vector<8x1xf32>
    %81 = vector.broadcast %80 : vector<8x1xf32> to vector<8x8xf32>
    %82 = arith.subf %78, %81 : vector<8x8xf32>
    %83 = math.exp %82 : vector<8x8xf32>
    %cst_35 = arith.constant dense<0.000000e+00> : vector<8xf32>
    %84 = vector.multi_reduction <add>, %83, %cst_35 [1] : vector<8x8xf32> to vector<8xf32>
    %85 = vector.shape_cast %84 : vector<8xf32> to vector<8x1xf32>
    %86 = vector.broadcast %85 : vector<8x1xf32> to vector<8x8xf32>
    %87 = arith.divf %83, %86 : vector<8x8xf32>
    %88 = arith.truncf %87 : vector<8x8xf32> to vector<8x8xbf16>
    %89 = vector.extract_strided_slice %31 {offsets = [0, 16], sizes = [8, 8], strides = [1, 1]} : vector<8x32xbf16> to vector<8x8xbf16>
    %cst_36 = arith.constant dense<0.000000e+00> : vector<8x8xf32>
    %90 = tpu.matmul %88, %89, %cst_36 {dimension_numbers = #tpu.dot_dimension_numbers<[1], [0], [0], [1], [0, 0, 1, 1], [], []>} : vector<8x8xbf16>, vector<8x8xbf16>, vector<8x8xf32> -> vector<8x8xf32>
    %c0_37 = arith.constant 0 : index
    %c16 = arith.constant 16 : index
    %91 = vector.load %arg16[%c0_37, %c16] : memref<8x32xf32, #tpu.memory_space<vmem>>, vector<8x8xf32>
    tpu.vector_store %arg16[%c0_37, %c16], %90 {strides = array<i32>} : memref<8x32xf32, #tpu.memory_space<vmem>>, vector<8x8xf32>,
    %92 = vector.extract_strided_slice %9 {offsets = [0, 24], sizes = [8, 8], strides = [1, 1]} : vector<8x32xf32> to vector<8x8xf32>
    %93 = arith.truncf %92 : vector<8x8xf32> to vector<8x8xbf16>
    %94 = vector.extract_strided_slice %30 {offsets = [0, 24], sizes = [8, 8], strides = [1, 1]} : vector<8x32xbf16> to vector<8x8xbf16>
    %cst_38 = arith.constant dense<0.000000e+00> : vector<8x8xf32>
    %95 = tpu.matmul %93, %94, %cst_38 {dimension_numbers = #tpu.dot_dimension_numbers<[1], [1], [0], [0], [0, 0, 1, 0], [], []>} : vector<8x8xbf16>, vector<8x8xbf16>, vector<8x8xf32> -> vector<8x8xf32>
    %cst_39 = arith.constant 0.353553385 : f32
    %96 = vector.broadcast %cst_39 : f32 to vector<8x8xf32>
    %97 = arith.mulf %95, %96 : vector<8x8xf32>
    %98 = arith.addf %97, %29 : vector<8x8xf32>
    %cst_40 = arith.constant dense<0xFF800000> : vector<8xf32>
    %99 = vector.multi_reduction <maximumf>, %98, %cst_40 [1] : vector<8x8xf32> to vector<8xf32>
    %100 = vector.shape_cast %99 : vector<8xf32> to vector<8x1xf32>
    %101 = vector.broadcast %100 : vector<8x1xf32> to vector<8x8xf32>
    %102 = arith.subf %98, %101 : vector<8x8xf32>
    %103 = math.exp %102 : vector<8x8xf32>
    %cst_41 = arith.constant dense<0.000000e+00> : vector<8xf32>
    %104 = vector.multi_reduction <add>, %103, %cst_41 [1] : vector<8x8xf32> to vector<8xf32>
    %105 = vector.shape_cast %104 : vector<8xf32> to vector<8x1xf32>
    %106 = vector.broadcast %105 : vector<8x1xf32> to vector<8x8xf32>
    %107 = arith.divf %103, %106 : vector<8x8xf32>
    %108 = arith.truncf %107 : vector<8x8xf32> to vector<8x8xbf16>
    %109 = vector.extract_strided_slice %31 {offsets = [0, 24], sizes = [8, 8], strides = [1, 1]} : vector<8x32xbf16> to vector<8x8xbf16>
    %cst_42 = arith.constant dense<0.000000e+00> : vector<8x8xf32>
    %110 = tpu.matmul %108, %109, %cst_42 {dimension_numbers = #tpu.dot_dimension_numbers<[1], [0], [0], [1], [0, 0, 1, 1], [], []>} : vector<8x8xbf16>, vector<8x8xbf16>, vector<8x8xf32> -> vector<8x8xf32>
    %c0_43 = arith.constant 0 : index
    %c24 = arith.constant 24 : index
    %111 = vector.load %arg16[%c0_43, %c24] : memref<8x32xf32, #tpu.memory_space<vmem>>, vector<8x8xf32>
    tpu.vector_store %arg16[%c0_43, %c24], %110 {strides = array<i32>} : memref<8x32xf32, #tpu.memory_space<vmem>>, vector<8x8xf32>,
    %c0_44 = arith.constant 0 : index
    %c0_45 = arith.constant 0 : index
    %112 = vector.load %arg16[%c0_44, %c0_45] : memref<8x32xf32, #tpu.memory_space<vmem>>, vector<8x32xf32>
    %113 = arith.truncf %112 : vector<8x32xf32> to vector<8x32xbf16>
    %c0_46 = arith.constant 0 : index
    %c0_47 = arith.constant 0 : index
    %114 = vector.load %arg10[%c0_46, %c0_47] : memref<32x32xbf16, #tpu.memory_space<vmem>>, vector<32x32xbf16>
    %cst_48 = arith.constant dense<0.000000e+00> : vector<8x32xf32>
    %115 = tpu.matmul %113, %114, %cst_48 {dimension_numbers = #tpu.dot_dimension_numbers<[1], [0], [0], [1], [0, 0, 1, 1], [], []>} : vector<8x32xbf16>, vector<32x32xbf16>, vector<8x32xf32> -> vector<8x32xf32>
    %c0_49 = arith.constant 0 : index
    %c0_50 = arith.constant 0 : index
    %116 = vector.load %arg11[%c0_49, %c0_50] : memref<1x32xf32, #tpu.memory_space<vmem>>, vector<1x32xf32>
    %117 = vector.broadcast %116 : vector<1x32xf32> to vector<8x32xf32>
    %118 = arith.addf %115, %117 : vector<8x32xf32>
    %119 = arith.extf %4 : vector<8x32xbf16> to vector<8x32xf32>
    %120 = arith.addf %119, %118 : vector<8x32xf32>
    %c0_51 = arith.constant 0 : index
    %c0_52 = arith.constant 0 : index
    %121 = vector.load %arg12[%c0_51, %c0_52] : memref<1x32xf32, #tpu.memory_space<vmem>>, vector<1x32xf32>
    %c0_53 = arith.constant 0 : index
    %c0_54 = arith.constant 0 : index
    %122 = vector.load %arg13[%c0_53, %c0_54] : memref<1x32xf32, #tpu.memory_space<vmem>>, vector<1x32xf32>
    %cst_55 = arith.constant dense<0.000000e+00> : vector<8xf32>
    %123 = vector.multi_reduction <add>, %120, %cst_55 [1] : vector<8x32xf32> to vector<8xf32>
    %124 = vector.shape_cast %123 : vector<8xf32> to vector<8x1xf32>
    %cst_56 = arith.constant 3.200000e+01 : f32
    %125 = vector.broadcast %cst_56 : f32 to vector<8x1xf32>
    %126 = arith.divf %124, %125 : vector<8x1xf32>
    %127 = vector.broadcast %126 : vector<8x1xf32> to vector<8x32xf32>
    %128 = arith.subf %120, %127 : vector<8x32xf32>
    %129 = arith.mulf %128, %128 : vector<8x32xf32>
    %cst_57 = arith.constant dense<0.000000e+00> : vector<8xf32>
    %130 = vector.multi_reduction <add>, %129, %cst_57 [1] : vector<8x32xf32> to vector<8xf32>
    %131 = vector.shape_cast %130 : vector<8xf32> to vector<8x1xf32>
    %cst_58 = arith.constant 3.200000e+01 : f32
    %132 = vector.broadcast %cst_58 : f32 to vector<8x1xf32>
    %133 = arith.divf %131, %132 : vector<8x1xf32>
    %134 = vector.broadcast %126 : vector<8x1xf32> to vector<8x32xf32>
    %135 = arith.subf %120, %134 : vector<8x32xf32>
    %cst_59 = arith.constant 9.99999974E-6 : f32
    %136 = vector.broadcast %cst_59 : f32 to vector<8x1xf32>
    %137 = arith.addf %133, %136 : vector<8x1xf32>
    %138 = math.rsqrt %137 : vector<8x1xf32>
    %139 = vector.broadcast %138 : vector<8x1xf32> to vector<8x32xf32>
    %140 = arith.mulf %135, %139 : vector<8x32xf32>
    %141 = vector.broadcast %121 : vector<1x32xf32> to vector<8x32xf32>
    %142 = arith.mulf %140, %141 : vector<8x32xf32>
    %143 = vector.broadcast %122 : vector<1x32xf32> to vector<8x32xf32>
    %144 = arith.addf %142, %143 : vector<8x32xf32>
    %145 = arith.truncf %144 : vector<8x32xf32> to vector<8x32xbf16>
    %c0_60 = arith.constant 0 : index
    %c0_61 = arith.constant 0 : index
    %c0_62 = arith.constant 0 : index
    %146 = vector.load %arg14[%c0_60, %c0_61, %c0_62] : memref<1x8x32xbf16, #tpu.memory_space<vmem>>, vector<1x8x32xbf16>
    %147 = vector.shape_cast %146 : vector<1x8x32xbf16> to vector<8x32xbf16>
    %148 = vector.shape_cast %145 : vector<8x32xbf16> to vector<1x8x32xbf16>
    tpu.vector_store %arg14[%c0_60, %c0_61, %c0_62], %148 {strides = array<i32>} : memref<1x8x32xbf16, #tpu.memory_space<vmem>>, vector<1x8x32xbf16>,
    return
  }
  func.func @transform_0(%arg0: i32, %arg1: i32) -> (i32, i32, i32) {
    %c0_i32 = arith.constant 0 : i32
    %c0_i32_0 = arith.constant 0 : i32
    return %arg0, %arg1, %c0_i32 : i32, i32, i32
  }
  func.func @transform_1(%arg0: i32, %arg1: i32) -> (i32, i32, i32) {
    %c0_i32 = arith.constant 0 : i32
    %c0_i32_0 = arith.constant 0 : i32
    %c0_i32_1 = arith.constant 0 : i32
    return %arg0, %c0_i32, %c0_i32_0 : i32, i32, i32
  }
  func.func @transform_2(%arg0: i32, %arg1: i32) -> (i32, i32, i32) {
    %c0_i32 = arith.constant 0 : i32
    %c0_i32_0 = arith.constant 0 : i32
    return %arg0, %arg1, %c0_i32 : i32, i32, i32
  }
  func.func @transform_3(%arg0: i32, %arg1: i32) -> (i32, i32, i32) {
    %c0_i32 = arith.constant 0 : i32
    %c0_i32_0 = arith.constant 0 : i32
    %c0_i32_1 = arith.constant 0 : i32
    return %arg0, %c0_i32, %c0_i32_0 : i32, i32, i32
  }
  func.func @transform_4(%arg0: i32, %arg1: i32) -> (i32, i32) {
    %c0_i32 = arith.constant 0 : i32
    %c0_i32_0 = arith.constant 0 : i32
    %c0_i32_1 = arith.constant 0 : i32
    return %c0_i32, %c0_i32_0 : i32, i32
  }
  func.func @transform_5(%arg0: i32, %arg1: i32) -> (i32, i32) {
    %c0_i32 = arith.constant 0 : i32
    %c0_i32_0 = arith.constant 0 : i32
    %c0_i32_1 = arith.constant 0 : i32
    return %c0_i32, %c0_i32_0 : i32, i32
  }
  func.func @transform_6(%arg0: i32, %arg1: i32) -> (i32, i32) {
    %c0_i32 = arith.constant 0 : i32
    %c0_i32_0 = arith.constant 0 : i32
    %c0_i32_1 = arith.constant 0 : i32
    return %c0_i32, %c0_i32_0 : i32, i32
  }
  func.func @transform_7(%arg0: i32, %arg1: i32) -> (i32, i32) {
    %c0_i32 = arith.constant 0 : i32
    %c0_i32_0 = arith.constant 0 : i32
    %c0_i32_1 = arith.constant 0 : i32
    return %c0_i32, %c0_i32_0 : i32, i32
  }
  func.func @transform_8(%arg0: i32, %arg1: i32) -> (i32, i32) {
    %c0_i32 = arith.constant 0 : i32
    %c0_i32_0 = arith.constant 0 : i32
    %c0_i32_1 = arith.constant 0 : i32
    return %c0_i32, %c0_i32_0 : i32, i32
  }
  func.func @transform_9(%arg0: i32, %arg1: i32) -> (i32, i32) {
    %c0_i32 = arith.constant 0 : i32
    %c0_i32_0 = arith.constant 0 : i32
    %c0_i32_1 = arith.constant 0 : i32
    return %c0_i32, %c0_i32_0 : i32, i32
  }
  func.func @transform_10(%arg0: i32, %arg1: i32) -> (i32, i32) {
    %c0_i32 = arith.constant 0 : i32
    %c0_i32_0 = arith.constant 0 : i32
    %c0_i32_1 = arith.constant 0 : i32
    return %c0_i32, %c0_i32_0 : i32, i32
  }
  func.func @transform_11(%arg0: i32, %arg1: i32) -> (i32, i32) {
    %c0_i32 = arith.constant 0 : i32
    %c0_i32_0 = arith.constant 0 : i32
    %c0_i32_1 = arith.constant 0 : i32
    return %c0_i32, %c0_i32_0 : i32, i32
  }
  func.func @transform_12(%arg0: i32, %arg1: i32) -> (i32, i32, i32) {
    %c0_i32 = arith.constant 0 : i32
    %c0_i32_0 = arith.constant 0 : i32
    return %arg0, %arg1, %c0_i32 : i32, i32, i32
  }
}

module attributes {stable_mosaic.version = 11 : i64} {
  func.func @_attn_ffn_ln_kernel(%arg0: i32, %arg1: i32, %arg2: memref<1x8x32xbf16, #tpu.memory_space<vmem>>, %arg3: memref<1x8x32xbf16, #tpu.memory_space<vmem>>, %arg4: memref<1x8x1xi32, #tpu.memory_space<vmem>>, %arg5: memref<1x1x8xi32, #tpu.memory_space<vmem>>, %arg6: memref<32x32xbf16, #tpu.memory_space<vmem>>, %arg7: memref<1x32xf32, #tpu.memory_space<vmem>>, %arg8: memref<32x64xbf16, #tpu.memory_space<vmem>>, %arg9: memref<1x64xf32, #tpu.memory_space<vmem>>, %arg10: memref<32x32xbf16, #tpu.memory_space<vmem>>, %arg11: memref<1x32xf32, #tpu.memory_space<vmem>>, %arg12: memref<1x32xf32, #tpu.memory_space<vmem>>, %arg13: memref<1x32xf32, #tpu.memory_space<vmem>>, %arg14: memref<32x64xbf16, #tpu.memory_space<vmem>>, %arg15: memref<1x64xf32, #tpu.memory_space<vmem>>, %arg16: memref<64x32xbf16, #tpu.memory_space<vmem>>, %arg17: memref<1x32xf32, #tpu.memory_space<vmem>>, %arg18: memref<1x32xf32, #tpu.memory_space<vmem>>, %arg19: memref<1x32xf32, #tpu.memory_space<vmem>>, %arg20: memref<1x8x32xbf16, #tpu.memory_space<vmem>>, %arg21: memref<8x64xbf16, #tpu.memory_space<vmem>>, %arg22: memref<8x32xf32, #tpu.memory_space<vmem>>) attributes {dimension_semantics = [#tpu.dimension_semantics<parallel>, #tpu.dimension_semantics<arbitrary>], iteration_bounds = array<i64: 2, 1>, scalar_prefetch = 0 : i64, scratch_operands = 2 : i64, tpu.core_type = #tpu.core_type<tc>, window_params = [{transform_indices = @transform_0, window_bounds = array<i64: 1, 8, 32>}, {transform_indices = @transform_1, window_bounds = array<i64: 1, 8, 32>}, {transform_indices = @transform_2, window_bounds = array<i64: 1, 8, 1>}, {transform_indices = @transform_3, window_bounds = array<i64: 1, 1, 8>}, {pipeline_mode = #tpu.pipeline_mode<synchronous>, transform_indices = @transform_4, window_bounds = array<i64: 32, 32>}, {pipeline_mode = #tpu.pipeline_mode<synchronous>, transform_indices = @transform_5, window_bounds = array<i64: 1, 32>}, {pipeline_mode = #tpu.pipeline_mode<synchronous>, transform_indices = @transform_6, window_bounds = array<i64: 32, 64>}, {pipeline_mode = #tpu.pipeline_mode<synchronous>, transform_indices = @transform_7, window_bounds = array<i64: 1, 64>}, {pipeline_mode = #tpu.pipeline_mode<synchronous>, transform_indices = @transform_8, window_bounds = array<i64: 32, 32>}, {pipeline_mode = #tpu.pipeline_mode<synchronous>, transform_indices = @transform_9, window_bounds = array<i64: 1, 32>}, {pipeline_mode = #tpu.pipeline_mode<synchronous>, transform_indices = @transform_10, window_bounds = array<i64: 1, 32>}, {pipeline_mode = #tpu.pipeline_mode<synchronous>, transform_indices = @transform_11, window_bounds = array<i64: 1, 32>}, {pipeline_mode = #tpu.pipeline_mode<synchronous>, transform_indices = @transform_12, window_bounds = array<i64: 32, 64>}, {pipeline_mode = #tpu.pipeline_mode<synchronous>, transform_indices = @transform_13, window_bounds = array<i64: 1, 64>}, {pipeline_mode = #tpu.pipeline_mode<synchronous>, transform_indices = @transform_14, window_bounds = array<i64: 64, 32>}, {pipeline_mode = #tpu.pipeline_mode<synchronous>, transform_indices = @transform_15, window_bounds = array<i64: 1, 32>}, {pipeline_mode = #tpu.pipeline_mode<synchronous>, transform_indices = @transform_16, window_bounds = array<i64: 1, 32>}, {pipeline_mode = #tpu.pipeline_mode<synchronous>, transform_indices = @transform_17, window_bounds = array<i64: 1, 32>}, {transform_indices = @transform_18, window_bounds = array<i64: 1, 8, 32>}]} {
    %c0_i32 = arith.constant 0 : i32
    %0 = arith.cmpi eq, %arg1, %c0_i32 : i32
    %1 = arith.extui %0 : i1 to i32
    %c0_i32_0 = arith.constant 0 : i32
    %2 = arith.cmpi ne, %1, %c0_i32_0 : i32
    scf.if %2 {
      %c0_83 = arith.constant 0 : index
      %c0_84 = arith.constant 0 : index
      %c0_85 = arith.constant 0 : index
      %180 = vector.load %arg3[%c0_83, %c0_84, %c0_85] : memref<1x8x32xbf16, #tpu.memory_space<vmem>>, vector<1x8x32xbf16>
      %181 = vector.shape_cast %180 : vector<1x8x32xbf16> to vector<8x32xbf16>
      %c0_86 = arith.constant 0 : index
      %c0_87 = arith.constant 0 : index
      %182 = vector.load %arg8[%c0_86, %c0_87] : memref<32x64xbf16, #tpu.memory_space<vmem>>, vector<32x64xbf16>
      %cst_88 = arith.constant dense<0.000000e+00> : vector<8x64xf32>
      %183 = tpu.matmul %181, %182, %cst_88 {dimension_numbers = #tpu.dot_dimension_numbers<[1], [0], [0], [1], [0, 0, 1, 1], [], []>} : vector<8x32xbf16>, vector<32x64xbf16>, vector<8x64xf32> -> vector<8x64xf32>
      %c0_89 = arith.constant 0 : index
      %c0_90 = arith.constant 0 : index
      %184 = vector.load %arg9[%c0_89, %c0_90] : memref<1x64xf32, #tpu.memory_space<vmem>>, vector<1x64xf32>
      %185 = vector.broadcast %184 : vector<1x64xf32> to vector<8x64xf32>
      %186 = arith.addf %183, %185 : vector<8x64xf32>
      %187 = arith.truncf %186 : vector<8x64xf32> to vector<8x64xbf16>
      %c0_91 = arith.constant 0 : index
      %c0_92 = arith.constant 0 : index
      %188 = vector.load %arg21[%c0_91, %c0_92] : memref<8x64xbf16, #tpu.memory_space<vmem>>, vector<8x64xbf16>
      tpu.vector_store %arg21[%c0_91, %c0_92], %187 {strides = array<i32>} : memref<8x64xbf16, #tpu.memory_space<vmem>>, vector<8x64xbf16>,
    } else {
    }
    %c0 = arith.constant 0 : index
    %c0_1 = arith.constant 0 : index
    %c0_2 = arith.constant 0 : index
    %3 = vector.load %arg2[%c0, %c0_1, %c0_2] : memref<1x8x32xbf16, #tpu.memory_space<vmem>>, vector<1x8x32xbf16>
    %4 = vector.shape_cast %3 : vector<1x8x32xbf16> to vector<8x32xbf16>
    %c0_3 = arith.constant 0 : index
    %c0_4 = arith.constant 0 : index
    %5 = vector.load %arg6[%c0_3, %c0_4] : memref<32x32xbf16, #tpu.memory_space<vmem>>, vector<32x32xbf16>
    %cst = arith.constant dense<0.000000e+00> : vector<8x32xf32>
    %6 = tpu.matmul %4, %5, %cst {dimension_numbers = #tpu.dot_dimension_numbers<[1], [0], [0], [1], [0, 0, 1, 1], [], []>} : vector<8x32xbf16>, vector<32x32xbf16>, vector<8x32xf32> -> vector<8x32xf32>
    %c0_5 = arith.constant 0 : index
    %c0_6 = arith.constant 0 : index
    %7 = vector.load %arg7[%c0_5, %c0_6] : memref<1x32xf32, #tpu.memory_space<vmem>>, vector<1x32xf32>
    %8 = vector.broadcast %7 : vector<1x32xf32> to vector<8x32xf32>
    %9 = arith.addf %6, %8 : vector<8x32xf32>
    %c0_7 = arith.constant 0 : index
    %c0_8 = arith.constant 0 : index
    %c0_9 = arith.constant 0 : index
    %10 = vector.load %arg4[%c0_7, %c0_8, %c0_9] : memref<1x8x1xi32, #tpu.memory_space<vmem>>, vector<1x8x1xi32>
    %11 = vector.shape_cast %10 : vector<1x8x1xi32> to vector<8x1xi32>
    %c0_10 = arith.constant 0 : index
    %c0_11 = arith.constant 0 : index
    %c0_12 = arith.constant 0 : index
    %12 = vector.load %arg5[%c0_10, %c0_11, %c0_12] : memref<1x1x8xi32, #tpu.memory_space<vmem>>, vector<1x1x8xi32>
    %13 = vector.shape_cast %12 : vector<1x1x8xi32> to vector<1x8xi32>
    %14 = vector.broadcast %11 : vector<8x1xi32> to vector<8x8xi32>
    %15 = vector.broadcast %13 : vector<1x8xi32> to vector<8x8xi32>
    %16 = arith.muli %14, %15 : vector<8x8xi32>
    %c0_i32_13 = arith.constant 0 : i32
    %17 = vector.broadcast %c0_i32_13 : i32 to vector<8x8xi32>
    %18 = arith.cmpi ne, %16, %17 : vector<8x8xi32>
    %cst_14 = arith.constant 0.000000e+00 : f32
    %cst_15 = arith.constant -1.000000e+09 : f32
    %19 = vector.broadcast %cst_14 : f32 to vector<8x8xf32>
    %20 = vector.broadcast %cst_15 : f32 to vector<8x8xf32>
    %21 = arith.select %18, %19, %20 : vector<8x8xi1>, vector<8x8xf32>
    %c0_16 = arith.constant 0 : index
    %c0_17 = arith.constant 0 : index
    %22 = vector.load %arg21[%c0_16, %c0_17] : memref<8x64xbf16, #tpu.memory_space<vmem>>, vector<8x32xbf16>
    %c0_18 = arith.constant 0 : index
    %c32 = arith.constant 32 : index
    %23 = vector.load %arg21[%c0_18, %c32] : memref<8x64xbf16, #tpu.memory_space<vmem>>, vector<8x32xbf16>
    %24 = vector.extract_strided_slice %9 {offsets = [0, 0], sizes = [8, 8], strides = [1, 1]} : vector<8x32xf32> to vector<8x8xf32>
    %25 = arith.truncf %24 : vector<8x8xf32> to vector<8x8xbf16>
    %26 = vector.extract_strided_slice %22 {offsets = [0, 0], sizes = [8, 8], strides = [1, 1]} : vector<8x32xbf16> to vector<8x8xbf16>
    %cst_19 = arith.constant dense<0.000000e+00> : vector<8x8xf32>
    %27 = tpu.matmul %25, %26, %cst_19 {dimension_numbers = #tpu.dot_dimension_numbers<[1], [1], [0], [0], [0, 0, 1, 0], [], []>} : vector<8x8xbf16>, vector<8x8xbf16>, vector<8x8xf32> -> vector<8x8xf32>
    %cst_20 = arith.constant 0.353553385 : f32
    %28 = vector.broadcast %cst_20 : f32 to vector<8x8xf32>
    %29 = arith.mulf %27, %28 : vector<8x8xf32>
    %30 = arith.addf %29, %21 : vector<8x8xf32>
    %cst_21 = arith.constant dense<0xFF800000> : vector<8xf32>
    %31 = vector.multi_reduction <maximumf>, %30, %cst_21 [1] : vector<8x8xf32> to vector<8xf32>
    %32 = vector.shape_cast %31 : vector<8xf32> to vector<8x1xf32>
    %33 = vector.broadcast %32 : vector<8x1xf32> to vector<8x8xf32>
    %34 = arith.subf %30, %33 : vector<8x8xf32>
    %35 = math.exp %34 : vector<8x8xf32>
    %cst_22 = arith.constant dense<0.000000e+00> : vector<8xf32>
    %36 = vector.multi_reduction <add>, %35, %cst_22 [1] : vector<8x8xf32> to vector<8xf32>
    %37 = vector.shape_cast %36 : vector<8xf32> to vector<8x1xf32>
    %38 = vector.broadcast %37 : vector<8x1xf32> to vector<8x8xf32>
    %39 = arith.divf %35, %38 : vector<8x8xf32>
    %40 = arith.truncf %39 : vector<8x8xf32> to vector<8x8xbf16>
    %41 = vector.extract_strided_slice %23 {offsets = [0, 0], sizes = [8, 8], strides = [1, 1]} : vector<8x32xbf16> to vector<8x8xbf16>
    %cst_23 = arith.constant dense<0.000000e+00> : vector<8x8xf32>
    %42 = tpu.matmul %40, %41, %cst_23 {dimension_numbers = #tpu.dot_dimension_numbers<[1], [0], [0], [1], [0, 0, 1, 1], [], []>} : vector<8x8xbf16>, vector<8x8xbf16>, vector<8x8xf32> -> vector<8x8xf32>
    %c0_24 = arith.constant 0 : index
    %c0_25 = arith.constant 0 : index
    %43 = vector.load %arg22[%c0_24, %c0_25] : memref<8x32xf32, #tpu.memory_space<vmem>>, vector<8x8xf32>
    tpu.vector_store %arg22[%c0_24, %c0_25], %42 {strides = array<i32>} : memref<8x32xf32, #tpu.memory_space<vmem>>, vector<8x8xf32>,
    %44 = vector.extract_strided_slice %9 {offsets = [0, 8], sizes = [8, 8], strides = [1, 1]} : vector<8x32xf32> to vector<8x8xf32>
    %45 = arith.truncf %44 : vector<8x8xf32> to vector<8x8xbf16>
    %46 = vector.extract_strided_slice %22 {offsets = [0, 8], sizes = [8, 8], strides = [1, 1]} : vector<8x32xbf16> to vector<8x8xbf16>
    %cst_26 = arith.constant dense<0.000000e+00> : vector<8x8xf32>
    %47 = tpu.matmul %45, %46, %cst_26 {dimension_numbers = #tpu.dot_dimension_numbers<[1], [1], [0], [0], [0, 0, 1, 0], [], []>} : vector<8x8xbf16>, vector<8x8xbf16>, vector<8x8xf32> -> vector<8x8xf32>
    %cst_27 = arith.constant 0.353553385 : f32
    %48 = vector.broadcast %cst_27 : f32 to vector<8x8xf32>
    %49 = arith.mulf %47, %48 : vector<8x8xf32>
    %50 = arith.addf %49, %21 : vector<8x8xf32>
    %cst_28 = arith.constant dense<0xFF800000> : vector<8xf32>
    %51 = vector.multi_reduction <maximumf>, %50, %cst_28 [1] : vector<8x8xf32> to vector<8xf32>
    %52 = vector.shape_cast %51 : vector<8xf32> to vector<8x1xf32>
    %53 = vector.broadcast %52 : vector<8x1xf32> to vector<8x8xf32>
    %54 = arith.subf %50, %53 : vector<8x8xf32>
    %55 = math.exp %54 : vector<8x8xf32>
    %cst_29 = arith.constant dense<0.000000e+00> : vector<8xf32>
    %56 = vector.multi_reduction <add>, %55, %cst_29 [1] : vector<8x8xf32> to vector<8xf32>
    %57 = vector.shape_cast %56 : vector<8xf32> to vector<8x1xf32>
    %58 = vector.broadcast %57 : vector<8x1xf32> to vector<8x8xf32>
    %59 = arith.divf %55, %58 : vector<8x8xf32>
    %60 = arith.truncf %59 : vector<8x8xf32> to vector<8x8xbf16>
    %61 = vector.extract_strided_slice %23 {offsets = [0, 8], sizes = [8, 8], strides = [1, 1]} : vector<8x32xbf16> to vector<8x8xbf16>
    %cst_30 = arith.constant dense<0.000000e+00> : vector<8x8xf32>
    %62 = tpu.matmul %60, %61, %cst_30 {dimension_numbers = #tpu.dot_dimension_numbers<[1], [0], [0], [1], [0, 0, 1, 1], [], []>} : vector<8x8xbf16>, vector<8x8xbf16>, vector<8x8xf32> -> vector<8x8xf32>
    %c0_31 = arith.constant 0 : index
    %c8 = arith.constant 8 : index
    %63 = vector.load %arg22[%c0_31, %c8] : memref<8x32xf32, #tpu.memory_space<vmem>>, vector<8x8xf32>
    tpu.vector_store %arg22[%c0_31, %c8], %62 {strides = array<i32>} : memref<8x32xf32, #tpu.memory_space<vmem>>, vector<8x8xf32>,
    %64 = vector.extract_strided_slice %9 {offsets = [0, 16], sizes = [8, 8], strides = [1, 1]} : vector<8x32xf32> to vector<8x8xf32>
    %65 = arith.truncf %64 : vector<8x8xf32> to vector<8x8xbf16>
    %66 = vector.extract_strided_slice %22 {offsets = [0, 16], sizes = [8, 8], strides = [1, 1]} : vector<8x32xbf16> to vector<8x8xbf16>
    %cst_32 = arith.constant dense<0.000000e+00> : vector<8x8xf32>
    %67 = tpu.matmul %65, %66, %cst_32 {dimension_numbers = #tpu.dot_dimension_numbers<[1], [1], [0], [0], [0, 0, 1, 0], [], []>} : vector<8x8xbf16>, vector<8x8xbf16>, vector<8x8xf32> -> vector<8x8xf32>
    %cst_33 = arith.constant 0.353553385 : f32
    %68 = vector.broadcast %cst_33 : f32 to vector<8x8xf32>
    %69 = arith.mulf %67, %68 : vector<8x8xf32>
    %70 = arith.addf %69, %21 : vector<8x8xf32>
    %cst_34 = arith.constant dense<0xFF800000> : vector<8xf32>
    %71 = vector.multi_reduction <maximumf>, %70, %cst_34 [1] : vector<8x8xf32> to vector<8xf32>
    %72 = vector.shape_cast %71 : vector<8xf32> to vector<8x1xf32>
    %73 = vector.broadcast %72 : vector<8x1xf32> to vector<8x8xf32>
    %74 = arith.subf %70, %73 : vector<8x8xf32>
    %75 = math.exp %74 : vector<8x8xf32>
    %cst_35 = arith.constant dense<0.000000e+00> : vector<8xf32>
    %76 = vector.multi_reduction <add>, %75, %cst_35 [1] : vector<8x8xf32> to vector<8xf32>
    %77 = vector.shape_cast %76 : vector<8xf32> to vector<8x1xf32>
    %78 = vector.broadcast %77 : vector<8x1xf32> to vector<8x8xf32>
    %79 = arith.divf %75, %78 : vector<8x8xf32>
    %80 = arith.truncf %79 : vector<8x8xf32> to vector<8x8xbf16>
    %81 = vector.extract_strided_slice %23 {offsets = [0, 16], sizes = [8, 8], strides = [1, 1]} : vector<8x32xbf16> to vector<8x8xbf16>
    %cst_36 = arith.constant dense<0.000000e+00> : vector<8x8xf32>
    %82 = tpu.matmul %80, %81, %cst_36 {dimension_numbers = #tpu.dot_dimension_numbers<[1], [0], [0], [1], [0, 0, 1, 1], [], []>} : vector<8x8xbf16>, vector<8x8xbf16>, vector<8x8xf32> -> vector<8x8xf32>
    %c0_37 = arith.constant 0 : index
    %c16 = arith.constant 16 : index
    %83 = vector.load %arg22[%c0_37, %c16] : memref<8x32xf32, #tpu.memory_space<vmem>>, vector<8x8xf32>
    tpu.vector_store %arg22[%c0_37, %c16], %82 {strides = array<i32>} : memref<8x32xf32, #tpu.memory_space<vmem>>, vector<8x8xf32>,
    %84 = vector.extract_strided_slice %9 {offsets = [0, 24], sizes = [8, 8], strides = [1, 1]} : vector<8x32xf32> to vector<8x8xf32>
    %85 = arith.truncf %84 : vector<8x8xf32> to vector<8x8xbf16>
    %86 = vector.extract_strided_slice %22 {offsets = [0, 24], sizes = [8, 8], strides = [1, 1]} : vector<8x32xbf16> to vector<8x8xbf16>
    %cst_38 = arith.constant dense<0.000000e+00> : vector<8x8xf32>
    %87 = tpu.matmul %85, %86, %cst_38 {dimension_numbers = #tpu.dot_dimension_numbers<[1], [1], [0], [0], [0, 0, 1, 0], [], []>} : vector<8x8xbf16>, vector<8x8xbf16>, vector<8x8xf32> -> vector<8x8xf32>
    %cst_39 = arith.constant 0.353553385 : f32
    %88 = vector.broadcast %cst_39 : f32 to vector<8x8xf32>
    %89 = arith.mulf %87, %88 : vector<8x8xf32>
    %90 = arith.addf %89, %21 : vector<8x8xf32>
    %cst_40 = arith.constant dense<0xFF800000> : vector<8xf32>
    %91 = vector.multi_reduction <maximumf>, %90, %cst_40 [1] : vector<8x8xf32> to vector<8xf32>
    %92 = vector.shape_cast %91 : vector<8xf32> to vector<8x1xf32>
    %93 = vector.broadcast %92 : vector<8x1xf32> to vector<8x8xf32>
    %94 = arith.subf %90, %93 : vector<8x8xf32>
    %95 = math.exp %94 : vector<8x8xf32>
    %cst_41 = arith.constant dense<0.000000e+00> : vector<8xf32>
    %96 = vector.multi_reduction <add>, %95, %cst_41 [1] : vector<8x8xf32> to vector<8xf32>
    %97 = vector.shape_cast %96 : vector<8xf32> to vector<8x1xf32>
    %98 = vector.broadcast %97 : vector<8x1xf32> to vector<8x8xf32>
    %99 = arith.divf %95, %98 : vector<8x8xf32>
    %100 = arith.truncf %99 : vector<8x8xf32> to vector<8x8xbf16>
    %101 = vector.extract_strided_slice %23 {offsets = [0, 24], sizes = [8, 8], strides = [1, 1]} : vector<8x32xbf16> to vector<8x8xbf16>
    %cst_42 = arith.constant dense<0.000000e+00> : vector<8x8xf32>
    %102 = tpu.matmul %100, %101, %cst_42 {dimension_numbers = #tpu.dot_dimension_numbers<[1], [0], [0], [1], [0, 0, 1, 1], [], []>} : vector<8x8xbf16>, vector<8x8xbf16>, vector<8x8xf32> -> vector<8x8xf32>
    %c0_43 = arith.constant 0 : index
    %c24 = arith.constant 24 : index
    %103 = vector.load %arg22[%c0_43, %c24] : memref<8x32xf32, #tpu.memory_space<vmem>>, vector<8x8xf32>
    tpu.vector_store %arg22[%c0_43, %c24], %102 {strides = array<i32>} : memref<8x32xf32, #tpu.memory_space<vmem>>, vector<8x8xf32>,
    %c0_44 = arith.constant 0 : index
    %c0_45 = arith.constant 0 : index
    %104 = vector.load %arg22[%c0_44, %c0_45] : memref<8x32xf32, #tpu.memory_space<vmem>>, vector<8x32xf32>
    %105 = arith.truncf %104 : vector<8x32xf32> to vector<8x32xbf16>
    %c0_46 = arith.constant 0 : index
    %c0_47 = arith.constant 0 : index
    %106 = vector.load %arg10[%c0_46, %c0_47] : memref<32x32xbf16, #tpu.memory_space<vmem>>, vector<32x32xbf16>
    %cst_48 = arith.constant dense<0.000000e+00> : vector<8x32xf32>
    %107 = tpu.matmul %105, %106, %cst_48 {dimension_numbers = #tpu.dot_dimension_numbers<[1], [0], [0], [1], [0, 0, 1, 1], [], []>} : vector<8x32xbf16>, vector<32x32xbf16>, vector<8x32xf32> -> vector<8x32xf32>
    %c0_49 = arith.constant 0 : index
    %c0_50 = arith.constant 0 : index
    %108 = vector.load %arg11[%c0_49, %c0_50] : memref<1x32xf32, #tpu.memory_space<vmem>>, vector<1x32xf32>
    %109 = vector.broadcast %108 : vector<1x32xf32> to vector<8x32xf32>
    %110 = arith.addf %107, %109 : vector<8x32xf32>
    %111 = arith.extf %4 : vector<8x32xbf16> to vector<8x32xf32>
    %112 = arith.addf %111, %110 : vector<8x32xf32>
    %c0_51 = arith.constant 0 : index
    %c0_52 = arith.constant 0 : index
    %113 = vector.load %arg12[%c0_51, %c0_52] : memref<1x32xf32, #tpu.memory_space<vmem>>, vector<1x32xf32>
    %c0_53 = arith.constant 0 : index
    %c0_54 = arith.constant 0 : index
    %114 = vector.load %arg13[%c0_53, %c0_54] : memref<1x32xf32, #tpu.memory_space<vmem>>, vector<1x32xf32>
    %cst_55 = arith.constant dense<0.000000e+00> : vector<8xf32>
    %115 = vector.multi_reduction <add>, %112, %cst_55 [1] : vector<8x32xf32> to vector<8xf32>
    %116 = vector.shape_cast %115 : vector<8xf32> to vector<8x1xf32>
    %cst_56 = arith.constant 3.200000e+01 : f32
    %117 = vector.broadcast %cst_56 : f32 to vector<8x1xf32>
    %118 = arith.divf %116, %117 : vector<8x1xf32>
    %119 = vector.broadcast %118 : vector<8x1xf32> to vector<8x32xf32>
    %120 = arith.subf %112, %119 : vector<8x32xf32>
    %121 = arith.mulf %120, %120 : vector<8x32xf32>
    %cst_57 = arith.constant dense<0.000000e+00> : vector<8xf32>
    %122 = vector.multi_reduction <add>, %121, %cst_57 [1] : vector<8x32xf32> to vector<8xf32>
    %123 = vector.shape_cast %122 : vector<8xf32> to vector<8x1xf32>
    %cst_58 = arith.constant 3.200000e+01 : f32
    %124 = vector.broadcast %cst_58 : f32 to vector<8x1xf32>
    %125 = arith.divf %123, %124 : vector<8x1xf32>
    %126 = vector.broadcast %118 : vector<8x1xf32> to vector<8x32xf32>
    %127 = arith.subf %112, %126 : vector<8x32xf32>
    %cst_59 = arith.constant 9.99999974E-6 : f32
    %128 = vector.broadcast %cst_59 : f32 to vector<8x1xf32>
    %129 = arith.addf %125, %128 : vector<8x1xf32>
    %130 = math.rsqrt %129 : vector<8x1xf32>
    %131 = vector.broadcast %130 : vector<8x1xf32> to vector<8x32xf32>
    %132 = arith.mulf %127, %131 : vector<8x32xf32>
    %133 = vector.broadcast %113 : vector<1x32xf32> to vector<8x32xf32>
    %134 = arith.mulf %132, %133 : vector<8x32xf32>
    %135 = vector.broadcast %114 : vector<1x32xf32> to vector<8x32xf32>
    %136 = arith.addf %134, %135 : vector<8x32xf32>
    %137 = arith.truncf %136 : vector<8x32xf32> to vector<8x32xbf16>
    %c0_60 = arith.constant 0 : index
    %c0_61 = arith.constant 0 : index
    %138 = vector.load %arg14[%c0_60, %c0_61] : memref<32x64xbf16, #tpu.memory_space<vmem>>, vector<32x64xbf16>
    %cst_62 = arith.constant dense<0.000000e+00> : vector<8x64xf32>
    %139 = tpu.matmul %137, %138, %cst_62 {dimension_numbers = #tpu.dot_dimension_numbers<[1], [0], [0], [1], [0, 0, 1, 1], [], []>} : vector<8x32xbf16>, vector<32x64xbf16>, vector<8x64xf32> -> vector<8x64xf32>
    %c0_63 = arith.constant 0 : index
    %c0_64 = arith.constant 0 : index
    %140 = vector.load %arg15[%c0_63, %c0_64] : memref<1x64xf32, #tpu.memory_space<vmem>>, vector<1x64xf32>
    %141 = vector.broadcast %140 : vector<1x64xf32> to vector<8x64xf32>
    %142 = arith.addf %139, %141 : vector<8x64xf32>
    %cst_65 = arith.constant 0.000000e+00 : f32
    %143 = vector.broadcast %cst_65 : f32 to vector<8x64xf32>
    %144 = arith.maximumf %142, %143 : vector<8x64xf32>
    %145 = arith.truncf %144 : vector<8x64xf32> to vector<8x64xbf16>
    %c0_66 = arith.constant 0 : index
    %c0_67 = arith.constant 0 : index
    %146 = vector.load %arg16[%c0_66, %c0_67] : memref<64x32xbf16, #tpu.memory_space<vmem>>, vector<64x32xbf16>
    %cst_68 = arith.constant dense<0.000000e+00> : vector<8x32xf32>
    %147 = tpu.matmul %145, %146, %cst_68 {dimension_numbers = #tpu.dot_dimension_numbers<[1], [0], [0], [1], [0, 0, 1, 1], [], []>} : vector<8x64xbf16>, vector<64x32xbf16>, vector<8x32xf32> -> vector<8x32xf32>
    %148 = arith.addf %136, %147 : vector<8x32xf32>
    %c0_69 = arith.constant 0 : index
    %c0_70 = arith.constant 0 : index
    %149 = vector.load %arg17[%c0_69, %c0_70] : memref<1x32xf32, #tpu.memory_space<vmem>>, vector<1x32xf32>
    %150 = vector.broadcast %149 : vector<1x32xf32> to vector<8x32xf32>
    %151 = arith.addf %148, %150 : vector<8x32xf32>
    %c0_71 = arith.constant 0 : index
    %c0_72 = arith.constant 0 : index
    %152 = vector.load %arg18[%c0_71, %c0_72] : memref<1x32xf32, #tpu.memory_space<vmem>>, vector<1x32xf32>
    %c0_73 = arith.constant 0 : index
    %c0_74 = arith.constant 0 : index
    %153 = vector.load %arg19[%c0_73, %c0_74] : memref<1x32xf32, #tpu.memory_space<vmem>>, vector<1x32xf32>
    %cst_75 = arith.constant dense<0.000000e+00> : vector<8xf32>
    %154 = vector.multi_reduction <add>, %151, %cst_75 [1] : vector<8x32xf32> to vector<8xf32>
    %155 = vector.shape_cast %154 : vector<8xf32> to vector<8x1xf32>
    %cst_76 = arith.constant 3.200000e+01 : f32
    %156 = vector.broadcast %cst_76 : f32 to vector<8x1xf32>
    %157 = arith.divf %155, %156 : vector<8x1xf32>
    %158 = vector.broadcast %157 : vector<8x1xf32> to vector<8x32xf32>
    %159 = arith.subf %151, %158 : vector<8x32xf32>
    %160 = arith.mulf %159, %159 : vector<8x32xf32>
    %cst_77 = arith.constant dense<0.000000e+00> : vector<8xf32>
    %161 = vector.multi_reduction <add>, %160, %cst_77 [1] : vector<8x32xf32> to vector<8xf32>
    %162 = vector.shape_cast %161 : vector<8xf32> to vector<8x1xf32>
    %cst_78 = arith.constant 3.200000e+01 : f32
    %163 = vector.broadcast %cst_78 : f32 to vector<8x1xf32>
    %164 = arith.divf %162, %163 : vector<8x1xf32>
    %165 = vector.broadcast %157 : vector<8x1xf32> to vector<8x32xf32>
    %166 = arith.subf %151, %165 : vector<8x32xf32>
    %cst_79 = arith.constant 9.99999974E-6 : f32
    %167 = vector.broadcast %cst_79 : f32 to vector<8x1xf32>
    %168 = arith.addf %164, %167 : vector<8x1xf32>
    %169 = math.rsqrt %168 : vector<8x1xf32>
    %170 = vector.broadcast %169 : vector<8x1xf32> to vector<8x32xf32>
    %171 = arith.mulf %166, %170 : vector<8x32xf32>
    %172 = vector.broadcast %152 : vector<1x32xf32> to vector<8x32xf32>
    %173 = arith.mulf %171, %172 : vector<8x32xf32>
    %174 = vector.broadcast %153 : vector<1x32xf32> to vector<8x32xf32>
    %175 = arith.addf %173, %174 : vector<8x32xf32>
    %176 = arith.truncf %175 : vector<8x32xf32> to vector<8x32xbf16>
    %c0_80 = arith.constant 0 : index
    %c0_81 = arith.constant 0 : index
    %c0_82 = arith.constant 0 : index
    %177 = vector.load %arg20[%c0_80, %c0_81, %c0_82] : memref<1x8x32xbf16, #tpu.memory_space<vmem>>, vector<1x8x32xbf16>
    %178 = vector.shape_cast %177 : vector<1x8x32xbf16> to vector<8x32xbf16>
    %179 = vector.shape_cast %176 : vector<8x32xbf16> to vector<1x8x32xbf16>
    tpu.vector_store %arg20[%c0_80, %c0_81, %c0_82], %179 {strides = array<i32>} : memref<1x8x32xbf16, #tpu.memory_space<vmem>>, vector<1x8x32xbf16>,
    return
  }
  func.func @transform_0(%arg0: i32, %arg1: i32) -> (i32, i32, i32) {
    %c0_i32 = arith.constant 0 : i32
    %c0_i32_0 = arith.constant 0 : i32
    return %arg0, %arg1, %c0_i32 : i32, i32, i32
  }
  func.func @transform_1(%arg0: i32, %arg1: i32) -> (i32, i32, i32) {
    %c0_i32 = arith.constant 0 : i32
    %c0_i32_0 = arith.constant 0 : i32
    %c0_i32_1 = arith.constant 0 : i32
    return %arg0, %c0_i32, %c0_i32_0 : i32, i32, i32
  }
  func.func @transform_2(%arg0: i32, %arg1: i32) -> (i32, i32, i32) {
    %c0_i32 = arith.constant 0 : i32
    %c0_i32_0 = arith.constant 0 : i32
    return %arg0, %arg1, %c0_i32 : i32, i32, i32
  }
  func.func @transform_3(%arg0: i32, %arg1: i32) -> (i32, i32, i32) {
    %c0_i32 = arith.constant 0 : i32
    %c0_i32_0 = arith.constant 0 : i32
    %c0_i32_1 = arith.constant 0 : i32
    return %arg0, %c0_i32, %c0_i32_0 : i32, i32, i32
  }
  func.func @transform_4(%arg0: i32, %arg1: i32) -> (i32, i32) {
    %c0_i32 = arith.constant 0 : i32
    %c0_i32_0 = arith.constant 0 : i32
    %c0_i32_1 = arith.constant 0 : i32
    return %c0_i32, %c0_i32_0 : i32, i32
  }
  func.func @transform_5(%arg0: i32, %arg1: i32) -> (i32, i32) {
    %c0_i32 = arith.constant 0 : i32
    %c0_i32_0 = arith.constant 0 : i32
    %c0_i32_1 = arith.constant 0 : i32
    return %c0_i32, %c0_i32_0 : i32, i32
  }
  func.func @transform_6(%arg0: i32, %arg1: i32) -> (i32, i32) {
    %c0_i32 = arith.constant 0 : i32
    %c0_i32_0 = arith.constant 0 : i32
    %c0_i32_1 = arith.constant 0 : i32
    return %c0_i32, %c0_i32_0 : i32, i32
  }
  func.func @transform_7(%arg0: i32, %arg1: i32) -> (i32, i32) {
    %c0_i32 = arith.constant 0 : i32
    %c0_i32_0 = arith.constant 0 : i32
    %c0_i32_1 = arith.constant 0 : i32
    return %c0_i32, %c0_i32_0 : i32, i32
  }
  func.func @transform_8(%arg0: i32, %arg1: i32) -> (i32, i32) {
    %c0_i32 = arith.constant 0 : i32
    %c0_i32_0 = arith.constant 0 : i32
    %c0_i32_1 = arith.constant 0 : i32
    return %c0_i32, %c0_i32_0 : i32, i32
  }
  func.func @transform_9(%arg0: i32, %arg1: i32) -> (i32, i32) {
    %c0_i32 = arith.constant 0 : i32
    %c0_i32_0 = arith.constant 0 : i32
    %c0_i32_1 = arith.constant 0 : i32
    return %c0_i32, %c0_i32_0 : i32, i32
  }
  func.func @transform_10(%arg0: i32, %arg1: i32) -> (i32, i32) {
    %c0_i32 = arith.constant 0 : i32
    %c0_i32_0 = arith.constant 0 : i32
    %c0_i32_1 = arith.constant 0 : i32
    return %c0_i32, %c0_i32_0 : i32, i32
  }
  func.func @transform_11(%arg0: i32, %arg1: i32) -> (i32, i32) {
    %c0_i32 = arith.constant 0 : i32
    %c0_i32_0 = arith.constant 0 : i32
    %c0_i32_1 = arith.constant 0 : i32
    return %c0_i32, %c0_i32_0 : i32, i32
  }
  func.func @transform_12(%arg0: i32, %arg1: i32) -> (i32, i32) {
    %c0_i32 = arith.constant 0 : i32
    %c0_i32_0 = arith.constant 0 : i32
    %c0_i32_1 = arith.constant 0 : i32
    return %c0_i32, %c0_i32_0 : i32, i32
  }
  func.func @transform_13(%arg0: i32, %arg1: i32) -> (i32, i32) {
    %c0_i32 = arith.constant 0 : i32
    %c0_i32_0 = arith.constant 0 : i32
    %c0_i32_1 = arith.constant 0 : i32
    return %c0_i32, %c0_i32_0 : i32, i32
  }
  func.func @transform_14(%arg0: i32, %arg1: i32) -> (i32, i32) {
    %c0_i32 = arith.constant 0 : i32
    %c0_i32_0 = arith.constant 0 : i32
    %c0_i32_1 = arith.constant 0 : i32
    return %c0_i32, %c0_i32_0 : i32, i32
  }
  func.func @transform_15(%arg0: i32, %arg1: i32) -> (i32, i32) {
    %c0_i32 = arith.constant 0 : i32
    %c0_i32_0 = arith.constant 0 : i32
    %c0_i32_1 = arith.constant 0 : i32
    return %c0_i32, %c0_i32_0 : i32, i32
  }
  func.func @transform_16(%arg0: i32, %arg1: i32) -> (i32, i32) {
    %c0_i32 = arith.constant 0 : i32
    %c0_i32_0 = arith.constant 0 : i32
    %c0_i32_1 = arith.constant 0 : i32
    return %c0_i32, %c0_i32_0 : i32, i32
  }
  func.func @transform_17(%arg0: i32, %arg1: i32) -> (i32, i32) {
    %c0_i32 = arith.constant 0 : i32
    %c0_i32_0 = arith.constant 0 : i32
    %c0_i32_1 = arith.constant 0 : i32
    return %c0_i32, %c0_i32_0 : i32, i32
  }
  func.func @transform_18(%arg0: i32, %arg1: i32) -> (i32, i32, i32) {
    %c0_i32 = arith.constant 0 : i32
    %c0_i32_0 = arith.constant 0 : i32
    return %arg0, %arg1, %c0_i32 : i32, i32, i32
  }
}

</mosaic_0001>

<llo_original>
// kernel: transformer_forward.13
$region0: #{transformer_forward.13}
  #allocation0 [shape = 'u32[]', space=smem, size = 0x4, offset = 0x4, fixed_abs, tag = 'smem constant byte address 0x4 - core index']
  #allocation1 [shape = 'u32[144,128]{1,0:T(1,128)}', space=vmem, size = 0x12000, scoped, tag = 'internal scratch']
  %s0 = inlined_call_operand.vmem [shape: bf16[16,32], index: 0, kind: input, shape index: {}]
  %s1 = inlined_call_operand.vmem [shape: bf16[32,32], index: 1, kind: input, shape index: {}]
  %s2 = inlined_call_operand.vmem [shape: f32[1,32], index: 2, kind: input, shape index: {}]
  %s3 = inlined_call_operand.hbm [shape: f32[16,32], index: 3, kind: output, shape index: {}]
  %s4 = sld [smem:[#allocation0]]
  $region22: #{transformer_forward.13} parent=0
    _
  %s6 = ssub.s32 1, %s4
  %s7 = scalar_select 0, %s6, %s4
  $region1: #{transformer_forward.13} parent=0
    #allocation2 [shape = 'u8[8192]{0}', space=vmem, size = 0x2000, scoped, tag = 'output window, operand 0, single buffered']
    #allocation3 [shape = 's32[1]{0}', space=sflag, size = 0x4, scoped, tag = 'scoped memory for transformer_forward.13']
    %8 = vsyncpa [#allocation3], 0
    // Predicated region
    $region2: #{transformer_forward.13} parent=1 // pred_check
      _
    $region3: #{transformer_forward.13} parent=1 // pred_check_branch
      %10 = sbr.rel (0) target = $region5
    $region4: #{transformer_forward.13} parent=1 // pred_region
      _
    $region5: #{transformer_forward.13} parent=1 // pred_fallthru
      _
    // Predicated region
    $region6: #{transformer_forward.13} parent=1 // pred_check
      _
    $region7: #{transformer_forward.13} parent=1 // pred_check_branch
      %12 = sbr.rel (0) target = $region9
    $region8: #{transformer_forward.13} parent=1 // pred_region
      _
    $region9: #{transformer_forward.13} parent=1 // pred_fallthru
      _
    // Predicated region
    $region10: #{transformer_forward.13} parent=1 // pred_check
      _
    $region11: #{transformer_forward.13} parent=1 // pred_check_branch
      %14 = sbr.rel (0) target = $region13
    $region12: #{transformer_forward.13} parent=1 // pred_region
      _
    $region13: #{transformer_forward.13} parent=1 // pred_fallthru
      _
    %v16 = vld [vmem:[%s0] sm:$0xf]
    %v17 = vld [vmem:[%s0 + $0x4] sm:$0xf]
    %v18 = vld [vmem:[%s1] sm:$0xf]
    %v19 = vld [vmem:[%s1 + $0x4] sm:$0xf]
    %v20 = vld [vmem:[%s1 + $0x8] sm:$0xf]
    %v21 = vld [vmem:[%s1 + $0xc] sm:$0xf]
    %v22 = vld [vmem:[%s2] sm:$0x1]
    %v24 = vlaneseq
    %v25 = vshrl.u32 %v24, 7
    %v26 = vsub.s32 0, %v25
    %v27 = vrot.slane %v22, %v26
    %v31 = vunpack.c.l.b16 %v16
    %v32 = vunpack.c.l.b16 %v17
    %v33 = vpack.c.b16 %v32, %v31
    %v38 = vunpack.c.l.b16 %v18
    %v39 = vunpack.c.l.b16 %v19
    %v40 = vunpack.c.l.b16 %v20
    %v41 = vunpack.c.l.b16 %v21
    %v42 = vpack.c.b16 %v39, %v38
    %v43 = vpack.c.b16 %v41, %v40
    %vm46 = vcmask 261120
    %v48 = vsel %vm46, %v33, 0
    %50 = vmatprep.subr.bf16.mxu0 0
    %51 = vmatpush1.bf16.msra.mxu0 %v42
    %52 = vmatprep.subr.bf16.mxu0 0
    %53 = vmatpush1.bf16.msra.mxu0 %v43
    %54 = vmatprep.subr.bf16.mxu0 0
    %55 = vmatpush1.bf16.msra.mxu0 0
    %56 = vmatprep.subr.bf16.mxu0 0
    %57 = vmatpush1.bf16.msra.mxu0 0
    %58 = vmatprep.subr.bf16.mxu0 0
    %59 = vmatpush1.bf16.msra.mxu0 0
    %60 = vmatprep.subr.bf16.mxu0 0
    %61 = vmatpush1.bf16.msra.mxu0 0
    %62 = vmatprep.subr.bf16.mxu0 0
    %63 = vmatpush1.bf16.msra.mxu0 0
    %64 = vmatprep.subr.bf16.mxu0 0
    %65 = vmatpush1.bf16.msra.mxu0 0
    %66 = vmatprep.subr.bf16.mxu0 0
    %67 = vmatpush1.bf16.msra.mxu0 0
    %68 = vmatprep.subr.bf16.mxu0 0
    %69 = vmatpush1.bf16.msra.mxu0 0
    %70 = vmatprep.subr.bf16.mxu0 0
    %71 = vmatpush1.bf16.msra.mxu0 0
    %72 = vmatprep.subr.bf16.mxu0 0
    %73 = vmatpush1.bf16.msra.mxu0 0
    %74 = vmatprep.subr.bf16.mxu0 0
    %75 = vmatpush1.bf16.msra.mxu0 0
    %76 = vmatprep.subr.bf16.mxu0 0
    %77 = vmatpush1.bf16.msra.mxu0 0
    %78 = vmatprep.subr.bf16.mxu0 0
    %79 = vmatpush1.bf16.msra.mxu0 0
    %80 = vmatprep.subr.bf16.mxu0 0
    %81 = vmatpush1.bf16.msra.mxu0 0
    %82 = vmatprep.mubr.bf16.mxu0 0
    %83 = vmatmul.mubr.bf16.gmra.mrb[0].mxu0 %v48
    %v84 = vpop.f32.mrb[0].mxu0
    %v85 = vadd.f32 %v27, %v84
    %v86 = vpop.f32.mrb[0].mxu0
    %v87 = vpop.f32.mrb[0].mxu0
    %v88 = vadd.f32 %v27, %v87
    %v89 = vpop.f32.mrb[0].mxu0
    %90 = vdwg.mxu0
    %v91 = vsel %vm46, %v85, -inf
    %92 = vmax.xlane.f32.xlu0 %v91
    %v93 = vpop.xlane.xlu0 %92
    %v94 = vsel %vm46, %v88, -inf
    %95 = vmax.xlane.f32.xlu0 %v94
    %v96 = vpop.xlane.xlu0 %95
    %v97 = vsub.f32 %v85, %v93
    %v98 = vsub.f32 %v88, %v96
    %v99 = vmul.f32 %v97, 1.442695
    %v100 = vpow.pop %v99
    %v101 = vmul.f32 %v98, 1.442695
    %v102 = vpow.pop %v101
    %v103 = vsel %vm46, %v100, 0.0
    %104 = vadd.xlane.f32.xlu0 %v103
    %v105 = vpop.xlane.xlu0 %104
    %v106 = vsel %vm46, %v102, 0.0
    %107 = vadd.xlane.f32.xlu0 %v106
    %v108 = vpop.xlane.xlu0 %107
    %v109 = vlog2.pop %v105
    %v110 = vmul.f32 %v109, 0.6931472
    %v111 = vlog2.pop %v108
    %v112 = vmul.f32 %v111, 0.6931472
    %v113 = vsub.f32 %v97, %v110
    %v114 = vsub.f32 %v98, %v112
    %115 = vst.msk [vmem:[#allocation2] sm:$0xff] %vm46, %v113
    %116 = vst.msk [vmem:[#allocation2 + $0x8] sm:$0xff] %vm46, %v114
    // Predicated region
    $region14: #{transformer_forward.13} parent=1 // pred_check
      _
    $region15: #{transformer_forward.13} parent=1 // pred_check_branch
      %118 = sbr.rel (0) target = $region17
    $region16: #{transformer_forward.13} parent=1 // pred_region
      %s120 = ssub.s32 256, 256
      %121 = vsyncadd [#allocation3], %s120
      %s122 = sshll.u32 [#allocation2], 4
      %s123 = int_to_ptr.vmem [resolvable:$true] %s122
      %128 = dma.vmem_to_hbm [thread:$0]  %s123, 256, %s3, [#allocation3], 128, 128, 8
    $region17: #{transformer_forward.13} parent=1 // pred_fallthru
      _
    // Predicated region
    $region18: #{transformer_forward.13} parent=1 // pred_check
      _
    $region19: #{transformer_forward.13} parent=1 // pred_check_branch
      %130 = sbr.rel (0) target = $region21
    $region20: #{transformer_forward.13} parent=1 // pred_region
      %131 = dma.done [#allocation3], 256
    $region21: #{transformer_forward.13} parent=1 // pred_fallthru
      _
    %132 = vsyncpa [#allocation3], 1

// kernel: transformer_forward.9
$region0: #{transformer_forward.9}
  #allocation0 [shape = 'u32[]', space=smem, size = 0x4, offset = 0x4, fixed_abs, tag = 'smem constant byte address 0x4 - core index']
  #allocation1 [shape = 'u32[144,128]{1,0:T(1,128)}', space=vmem, size = 0x12000, scoped, tag = 'internal scratch']
  #allocation2 [shape = 'bf16[8,64]{1,0:T(8,128)(2,1)}', space=vmem, size = 0x800, scoped, tag = 'scratch operand']
  #allocation3 [shape = 'f32[8,32]{1,0:T(8,128)}', space=vmem, size = 0x1000, scoped, tag = 'scratch operand']
  %s0 = inlined_call_operand.vmem [shape: bf16[2,8,32], index: 0, kind: input, shape index: {}, may-alias: {0,1}]
  %s1 = inlined_call_operand.vmem [shape: bf16[2,8,32], index: 1, kind: input, shape index: {}, may-alias: {0,1}]
  %s2 = inlined_call_operand.vmem [shape: s32[2,8,1], index: 2, kind: input, shape index: {}]
  %s3 = inlined_call_operand.vmem [shape: s32[2,1,8], index: 3, kind: input, shape index: {}]
  %s4 = inlined_call_operand.vmem [shape: bf16[32,32], index: 4, kind: input, shape index: {}]
  %s5 = inlined_call_operand.vmem [shape: f32[1,32], index: 5, kind: input, shape index: {}]
  %s6 = inlined_call_operand.vmem [shape: bf16[32,64], index: 6, kind: input, shape index: {}]
  %s7 = inlined_call_operand.vmem [shape: f32[1,64], index: 7, kind: input, shape index: {}]
  %s8 = inlined_call_operand.vmem [shape: bf16[32,32], index: 8, kind: input, shape index: {}]
  %s9 = inlined_call_operand.vmem [shape: f32[1,32], index: 9, kind: input, shape index: {}]
  %s10 = inlined_call_operand.vmem [shape: f32[1,32], index: 10, kind: input, shape index: {}]
  %s11 = inlined_call_operand.vmem [shape: f32[1,32], index: 11, kind: input, shape index: {}]
  %s12 = inlined_call_operand.vmem [shape: bf16[2,8,32], index: 12, kind: output, shape index: {}]
  %s13 = sld [smem:[#allocation0]]
  $region85: #{transformer_forward.9} parent=0
    _
  %s15 = ssub.s32 1, %s13
  %s16 = scalar_select 0, %s15, %s13
  loop: start=0, step=1, limit=4
  $region2: #{transformer_forward.9} parent=0 // loop_pre_header
    _
  $region3: #{transformer_forward.9} parent=0 // loop_header
    %s18 = sphi 0, %s22
    %p19 = scmp.ge.s32.totalorder %s18, 4
    %s25 = sphi 0, %s37
    %s26 = sphi 0, %s33
    %s27 = sphi 0, %s25
    %s28 = sphi 0, %s26
    %s29 = sphi 0, %s27
    %s30 = sphi 0, %s28
    %s42 = sphi 0, %s44
    %s45 = sphi 0, %s42
    %s46 = sphi 0, %s45
    %s62 = sphi 0, %s46
    %s68 = sphi 0, %s70
    %s71 = sphi 0, %s68
    %s72 = sphi 0, %s71
    %s88 = sphi 0, %s72
    %s96 = sphi 0, %s98
    %s99 = sphi 0, %s96
    %s100 = sphi 0, %s99
    %s116 = sphi 0, %s100
    %s122 = sphi 0, %s124
    %s125 = sphi 0, %s122
    %s126 = sphi 0, %s125
    %s142 = sphi 0, %s126
    %s146 = sphi 0, %s146
    %s148 = sphi 0, %s146
    %s149 = sphi 0, %s148
    %s163 = sphi 0, %s149
    %s167 = sphi 0, %s167
    %s169 = sphi 0, %s167
    %s170 = sphi 0, %s169
    %s184 = sphi 0, %s170
    %s188 = sphi 0, %s188
    %s190 = sphi 0, %s188
    %s191 = sphi 0, %s190
    %s205 = sphi 0, %s191
    %s209 = sphi 0, %s209
    %s211 = sphi 0, %s209
    %s212 = sphi 0, %s211
    %s226 = sphi 0, %s212
    %s230 = sphi 0, %s230
    %s232 = sphi 0, %s230
    %s233 = sphi 0, %s232
    %s247 = sphi 0, %s233
    %s251 = sphi 0, %s251
    %s253 = sphi 0, %s251
    %s254 = sphi 0, %s253
    %s268 = sphi 0, %s254
    %s272 = sphi 0, %s272
    %s274 = sphi 0, %s272
    %s275 = sphi 0, %s274
    %s289 = sphi 0, %s275
    %s293 = sphi 0, %s293
    %s295 = sphi 0, %s293
    %s296 = sphi 0, %s295
    %s310 = sphi 0, %s296
    %s318 = sphi 0, %s320
    %s321 = sphi 0, %s318
    %s322 = sphi 0, %s321
    %s338 = sphi 0, %s322
  $region4: #{transformer_forward.9} parent=0 // loop_header_branch
    %21 = sbr.rel (%p19) target = $region8
  $region5: #{transformer_forward.9} parent=0 // loop_body
    %s23 = ssub.s32 %s18, 1
    %s24 = ssub.s32 %s18, 2
    %s31 = sadd.s32 1, %s26
    %p32 = scmp.ge.s32.totalorder %s31, 1
    %s33 = scalar_select %p32, 0, %s31
    %s34 = sadd.s32 1, %s25
    %s35 = scalar_select %p32, %s34, %s25
    %p36 = scmp.ge.s32.totalorder %s35, 2
    %s37 = scalar_select %p36, 0, %s35
    %s38 = ssub.s32 %s25, %s37
    %s39 = ssub.s32 %s26, %s33
    %s40 = sor.u32 %s38, %s39
    %p41 = scmp.eq.s32.totalorder %s40, 0
    %s43 = sadd.s32 %s42, 1
    %s44 = scalar_select %p41, %s42, %s43
    %p47 = pneg %p41
    %p48 = scmp.eq.s32.totalorder %s18, 1
    %p49 = por %p47, %p48
    %p50 = scmp.ne.s32.totalorder %s42, %s45
    %p51 = scmp.eq.s32.totalorder %s18, 0
    %p52 = por %p50, %p51
    %p53 = scmp.ne.s32.totalorder %s42, %s45
    %p54 = scmp.eq.s32.totalorder %s23, 1
    %p55 = por %p53, %p54
    %p56 = scmp.ne.s32.totalorder %s45, %s46
    %p57 = scmp.eq.s32.totalorder %s23, 0
    %p58 = por %p56, %p57
    %p59 = scmp.ne.s32.totalorder %s45, %s46
    %p60 = scmp.eq.s32.totalorder %s24, 1
    %p61 = por %p59, %p60
    %p63 = scmp.ne.s32.totalorder %s46, %s62
    %p64 = scmp.eq.s32.totalorder %s24, 0
    %p65 = por %p63, %p64
    %s66 = ssub.s32 %s25, %s37
    %p67 = scmp.eq.s32.totalorder %s66, 0
    %s69 = sadd.s32 %s68, 1
    %s70 = scalar_select %p67, %s68, %s69
    %p73 = pneg %p67
    %p74 = scmp.eq.s32.totalorder %s18, 1
    %p75 = por %p73, %p74
    %p76 = scmp.ne.s32.totalorder %s68, %s71
    %p77 = scmp.eq.s32.totalorder %s18, 0
    %p78 = por %p76, %p77
    %p79 = scmp.ne.s32.totalorder %s68, %s71
    %p80 = scmp.eq.s32.totalorder %s23, 1
    %p81 = por %p79, %p80
    %p82 = scmp.ne.s32.totalorder %s71, %s72
    %p83 = scmp.eq.s32.totalorder %s23, 0
    %p84 = por %p82, %p83
    %p85 = scmp.ne.s32.totalorder %s71, %s72
    %p86 = scmp.eq.s32.totalorder %s24, 1
    %p87 = por %p85, %p86
    %p89 = scmp.ne.s32.totalorder %s72, %s88
    %p90 = scmp.eq.s32.totalorder %s24, 0
    %p91 = por %p89, %p90
    %s92 = ssub.s32 %s25, %s37
    %s93 = ssub.s32 %s26, %s33
    %s94 = sor.u32 %s92, %s93
    %p95 = scmp.eq.s32.totalorder %s94, 0
    %s97 = sadd.s32 %s96, 1
    %s98 = scalar_select %p95, %s96, %s97
    %p101 = pneg %p95
    %p102 = scmp.eq.s32.totalorder %s18, 1
    %p103 = por %p101, %p102
    %p104 = scmp.ne.s32.totalorder %s96, %s99
    %p105 = scmp.eq.s32.totalorder %s18, 0
    %p106 = por %p104, %p105
    %p107 = scmp.ne.s32.totalorder %s96, %s99
    %p108 = scmp.eq.s32.totalorder %s23, 1
    %p109 = por %p107, %p108
    %p110 = scmp.ne.s32.totalorder %s99, %s100
    %p111 = scmp.eq.s32.totalorder %s23, 0
    %p112 = por %p110, %p111
    %p113 = scmp.ne.s32.totalorder %s99, %s100
    %p114 = scmp.eq.s32.totalorder %s24, 1
    %p115 = por %p113, %p114
    %p117 = scmp.ne.s32.totalorder %s100, %s116
    %p118 = scmp.eq.s32.totalorder %s24, 0
    %p119 = por %p117, %p118
    %s120 = ssub.s32 %s25, %s37
    %p121 = scmp.eq.s32.totalorder %s120, 0
    %s123 = sadd.s32 %s122, 1
    %s124 = scalar_select %p121, %s122, %s123
    %p127 = pneg %p121
    %p128 = scmp.eq.s32.totalorder %s18, 1
    %p129 = por %p127, %p128
    %p130 = scmp.ne.s32.totalorder %s122, %s125
    %p131 = scmp.eq.s32.totalorder %s18, 0
    %p132 = por %p130, %p131
    %p133 = scmp.ne.s32.totalorder %s122, %s125
    %p134 = scmp.eq.s32.totalorder %s23, 1
    %p135 = por %p133, %p134
    %p136 = scmp.ne.s32.totalorder %s125, %s126
    %p137 = scmp.eq.s32.totalorder %s23, 0
    %p138 = por %p136, %p137
    %p139 = scmp.ne.s32.totalorder %s125, %s126
    %p140 = scmp.eq.s32.totalorder %s24, 1
    %p141 = por %p139, %p140
    %p143 = scmp.ne.s32.totalorder %s126, %s142
    %p144 = scmp.eq.s32.totalorder %s24, 0
    %p145 = por %p143, %p144
    %s147 = sadd.s32 %s146, 1
    %p150 = scmp.eq.s32.totalorder %s18, 1
    %p151 = scmp.ne.s32.totalorder %s146, %s148
    %p152 = scmp.eq.s32.totalorder %s18, 0
    %p153 = por %p151, %p152
    %p154 = scmp.ne.s32.totalorder %s146, %s148
    %p155 = scmp.eq.s32.totalorder %s23, 1
    %p156 = por %p154, %p155
    %p157 = scmp.ne.s32.totalorder %s148, %s149
    %p158 = scmp.eq.s32.totalorder %s23, 0
    %p159 = por %p157, %p158
    %p160 = scmp.ne.s32.totalorder %s148, %s149
    %p161 = scmp.eq.s32.totalorder %s24, 1
    %p162 = por %p160, %p161
    %p164 = scmp.ne.s32.totalorder %s149, %s163
    %p165 = scmp.eq.s32.totalorder %s24, 0
    %p166 = por %p164, %p165
    %s168 = sadd.s32 %s167, 1
    %p171 = scmp.eq.s32.totalorder %s18, 1
    %p172 = scmp.ne.s32.totalorder %s167, %s169
    %p173 = scmp.eq.s32.totalorder %s18, 0
    %p174 = por %p172, %p173
    %p175 = scmp.ne.s32.totalorder %s167, %s169
    %p176 = scmp.eq.s32.totalorder %s23, 1
    %p177 = por %p175, %p176
    %p178 = scmp.ne.s32.totalorder %s169, %s170
    %p179 = scmp.eq.s32.totalorder %s23, 0
    %p180 = por %p178, %p179
    %p181 = scmp.ne.s32.totalorder %s169, %s170
    %p182 = scmp.eq.s32.totalorder %s24, 1
    %p183 = por %p181, %p182
    %p185 = scmp.ne.s32.totalorder %s170, %s184
    %p186 = scmp.eq.s32.totalorder %s24, 0
    %p187 = por %p185, %p186
    %s189 = sadd.s32 %s188, 1
    %p192 = scmp.eq.s32.totalorder %s18, 1
    %p193 = scmp.ne.s32.totalorder %s188, %s190
    %p194 = scmp.eq.s32.totalorder %s18, 0
    %p195 = por %p193, %p194
    %p196 = scmp.ne.s32.totalorder %s188, %s190
    %p197 = scmp.eq.s32.totalorder %s23, 1
    %p198 = por %p196, %p197
    %p199 = scmp.ne.s32.totalorder %s190, %s191
    %p200 = scmp.eq.s32.totalorder %s23, 0
    %p201 = por %p199, %p200
    %p202 = scmp.ne.s32.totalorder %s190, %s191
    %p203 = scmp.eq.s32.totalorder %s24, 1
    %p204 = por %p202, %p203
    %p206 = scmp.ne.s32.totalorder %s191, %s205
    %p207 = scmp.eq.s32.totalorder %s24, 0
    %p208 = por %p206, %p207
    %s210 = sadd.s32 %s209, 1
    %p213 = scmp.eq.s32.totalorder %s18, 1
    %p214 = scmp.ne.s32.totalorder %s209, %s211
    %p215 = scmp.eq.s32.totalorder %s18, 0
    %p216 = por %p214, %p215
    %p217 = scmp.ne.s32.totalorder %s209, %s211
    %p218 = scmp.eq.s32.totalorder %s23, 1
    %p219 = por %p217, %p218
    %p220 = scmp.ne.s32.totalorder %s211, %s212
    %p221 = scmp.eq.s32.totalorder %s23, 0
    %p222 = por %p220, %p221
    %p223 = scmp.ne.s32.totalorder %s211, %s212
    %p224 = scmp.eq.s32.totalorder %s24, 1
    %p225 = por %p223, %p224
    %p227 = scmp.ne.s32.totalorder %s212, %s226
    %p228 = scmp.eq.s32.totalorder %s24, 0
    %p229 = por %p227, %p228
    %s231 = sadd.s32 %s230, 1
    %p234 = scmp.eq.s32.totalorder %s18, 1
    %p235 = scmp.ne.s32.totalorder %s230, %s232
    %p236 = scmp.eq.s32.totalorder %s18, 0
    %p237 = por %p235, %p236
    %p238 = scmp.ne.s32.totalorder %s230, %s232
    %p239 = scmp.eq.s32.totalorder %s23, 1
    %p240 = por %p238, %p239
    %p241 = scmp.ne.s32.totalorder %s232, %s233
    %p242 = scmp.eq.s32.totalorder %s23, 0
    %p243 = por %p241, %p242
    %p244 = scmp.ne.s32.totalorder %s232, %s233
    %p245 = scmp.eq.s32.totalorder %s24, 1
    %p246 = por %p244, %p245
    %p248 = scmp.ne.s32.totalorder %s233, %s247
    %p249 = scmp.eq.s32.totalorder %s24, 0
    %p250 = por %p248, %p249
    %s252 = sadd.s32 %s251, 1
    %p255 = scmp.eq.s32.totalorder %s18, 1
    %p256 = scmp.ne.s32.totalorder %s251, %s253
    %p257 = scmp.eq.s32.totalorder %s18, 0
    %p258 = por %p256, %p257
    %p259 = scmp.ne.s32.totalorder %s251, %s253
    %p260 = scmp.eq.s32.totalorder %s23, 1
    %p261 = por %p259, %p260
    %p262 = scmp.ne.s32.totalorder %s253, %s254
    %p263 = scmp.eq.s32.totalorder %s23, 0
    %p264 = por %p262, %p263
    %p265 = scmp.ne.s32.totalorder %s253, %s254
    %p266 = scmp.eq.s32.totalorder %s24, 1
    %p267 = por %p265, %p266
    %p269 = scmp.ne.s32.totalorder %s254, %s268
    %p270 = scmp.eq.s32.totalorder %s24, 0
    %p271 = por %p269, %p270
    %s273 = sadd.s32 %s272, 1
    %p276 = scmp.eq.s32.totalorder %s18, 1
    %p277 = scmp.ne.s32.totalorder %s272, %s274
    %p278 = scmp.eq.s32.totalorder %s18, 0
    %p279 = por %p277, %p278
    %p280 = scmp.ne.s32.totalorder %s272, %s274
    %p281 = scmp.eq.s32.totalorder %s23, 1
    %p282 = por %p280, %p281
    %p283 = scmp.ne.s32.totalorder %s274, %s275
    %p284 = scmp.eq.s32.totalorder %s23, 0
    %p285 = por %p283, %p284
    %p286 = scmp.ne.s32.totalorder %s274, %s275
    %p287 = scmp.eq.s32.totalorder %s24, 1
    %p288 = por %p286, %p287
    %p290 = scmp.ne.s32.totalorder %s275, %s289
    %p291 = scmp.eq.s32.totalorder %s24, 0
    %p292 = por %p290, %p291
    %s294 = sadd.s32 %s293, 1
    %p297 = scmp.eq.s32.totalorder %s18, 1
    %p298 = scmp.ne.s32.totalorder %s293, %s295
    %p299 = scmp.eq.s32.totalorder %s18, 0
    %p300 = por %p298, %p299
    %p301 = scmp.ne.s32.totalorder %s293, %s295
    %p302 = scmp.eq.s32.totalorder %s23, 1
    %p303 = por %p301, %p302
    %p304 = scmp.ne.s32.totalorder %s295, %s296
    %p305 = scmp.eq.s32.totalorder %s23, 0
    %p306 = por %p304, %p305
    %p307 = scmp.ne.s32.totalorder %s295, %s296
    %p308 = scmp.eq.s32.totalorder %s24, 1
    %p309 = por %p307, %p308
    %p311 = scmp.ne.s32.totalorder %s296, %s310
    %p312 = scmp.eq.s32.totalorder %s24, 0
    %p313 = por %p311, %p312
    %s314 = ssub.s32 %s25, %s37
    %s315 = ssub.s32 %s26, %s33
    %s316 = sor.u32 %s314, %s315
    %p317 = scmp.eq.s32.totalorder %s316, 0
    %s319 = sadd.s32 %s318, 1
    %s320 = scalar_select %p317, %s318, %s319
    %p323 = pneg %p317
    %p324 = scmp.eq.s32.totalorder %s18, 1
    %p325 = por %p323, %p324
    %p326 = scmp.ne.s32.totalorder %s318, %s321
    %p327 = scmp.eq.s32.totalorder %s18, 0
    %p328 = por %p326, %p327
    %p329 = scmp.ne.s32.totalorder %s318, %s321
    %p330 = scmp.eq.s32.totalorder %s23, 1
    %p331 = por %p329, %p330
    %p332 = scmp.ne.s32.totalorder %s321, %s322
    %p333 = scmp.eq.s32.totalorder %s23, 0
    %p334 = por %p332, %p333
    %p335 = scmp.ne.s32.totalorder %s321, %s322
    %p336 = scmp.eq.s32.totalorder %s24, 1
    %p337 = por %p335, %p336
    %p339 = scmp.ne.s32.totalorder %s322, %s338
    %p340 = scmp.eq.s32.totalorder %s24, 0
    %p341 = por %p339, %p340
    %p342 = scmp.le.s32.totalorder 1, %s18
    %p343 = scmp.lt.s32.totalorder %s18, 3
    %p344 = pnand %p342, %p343
    %p345 = pneg %p344
    // Predicated region
    $region9: #{transformer_forward.9} parent=5 // pred_check
      _
    $region10: #{transformer_forward.9} parent=5 // pred_check_branch
      %347 = sbr.rel (%p344) target = $region12
    $region11: #{transformer_forward.9} parent=5 // pred_region
      %s348 = ssub.s32 %s18, 1
      // Predicated region
      $region13: #{transformer_forward.9} parent=11 // pred_check
        %p349 = pneg %p159
      $region14: #{transformer_forward.9} parent=11 // pred_check_branch
        %351 = sbr.rel (%p349) target = $region16
      $region15: #{transformer_forward.9} parent=11 // pred_region
        _
      $region16: #{transformer_forward.9} parent=11 // pred_fallthru
        _
      // Predicated region
      $region17: #{transformer_forward.9} parent=11 // pred_check
        %p352 = pneg %p180
      $region18: #{transformer_forward.9} parent=11 // pred_check_branch
        %354 = sbr.rel (%p352) target = $region20
      $region19: #{transformer_forward.9} parent=11 // pred_region
        _
      $region20: #{transformer_forward.9} parent=11 // pred_fallthru
        _
      // Predicated region
      $region21: #{transformer_forward.9} parent=11 // pred_check
        %p355 = pneg %p201
      $region22: #{transformer_forward.9} parent=11 // pred_check_branch
        %357 = sbr.rel (%p355) target = $region24
      $region23: #{transformer_forward.9} parent=11 // pred_region
        _
      $region24: #{transformer_forward.9} parent=11 // pred_fallthru
        _
      // Predicated region
      $region25: #{transformer_forward.9} parent=11 // pred_check
        %p358 = pneg %p222
      $region26: #{transformer_forward.9} parent=11 // pred_check_branch
        %360 = sbr.rel (%p358) target = $region28
      $region27: #{transformer_forward.9} parent=11 // pred_region
        _
      $region28: #{transformer_forward.9} parent=11 // pred_fallthru
        _
      // Predicated region
      $region29: #{transformer_forward.9} parent=11 // pred_check
        %p361 = pneg %p243
      $region30: #{transformer_forward.9} parent=11 // pred_check_branch
        %363 = sbr.rel (%p361) target = $region32
      $region31: #{transformer_forward.9} parent=11 // pred_region
        _
      $region32: #{transformer_forward.9} parent=11 // pred_fallthru
        _
      // Predicated region
      $region33: #{transformer_forward.9} parent=11 // pred_check
        %p364 = pneg %p264
      $region34: #{transformer_forward.9} parent=11 // pred_check_branch
        %366 = sbr.rel (%p364) target = $region36
      $region35: #{transformer_forward.9} parent=11 // pred_region
        _
      $region36: #{transformer_forward.9} parent=11 // pred_fallthru
        _
      // Predicated region
      $region37: #{transformer_forward.9} parent=11 // pred_check
        %p367 = pneg %p285
      $region38: #{transformer_forward.9} parent=11 // pred_check_branch
        %369 = sbr.rel (%p367) target = $region40
      $region39: #{transformer_forward.9} parent=11 // pred_region
        _
      $region40: #{transformer_forward.9} parent=11 // pred_fallthru
        _
      // Predicated region
      $region41: #{transformer_forward.9} parent=11 // pred_check
        %p370 = pneg %p306
      $region42: #{transformer_forward.9} parent=11 // pred_check_branch
        %372 = sbr.rel (%p370) target = $region44
      $region43: #{transformer_forward.9} parent=11 // pred_region
        _
      $region44: #{transformer_forward.9} parent=11 // pred_fallthru
        _
    $region12: #{transformer_forward.9} parent=5 // pred_fallthru
      _
    %p373 = scmp.lt.s32.totalorder %s18, 2
    // Predicated region
    $region45: #{transformer_forward.9} parent=5 // pred_check
      %p374 = pneg %p373
    $region46: #{transformer_forward.9} parent=5 // pred_check_branch
      %376 = sbr.rel (%p374) target = $region48
    $region47: #{transformer_forward.9} parent=5 // pred_region
      // Predicated region
      $region49: #{transformer_forward.9} parent=47 // pred_check
        %p377 = pneg %p52
      $region50: #{transformer_forward.9} parent=47 // pred_check_branch
        %379 = sbr.rel (%p377) target = $region52
      $region51: #{transformer_forward.9} parent=47 // pred_region
        %p380 = scmp.lt.s32.totalorder %s25, 1
        %s381 = scalar_select %p380, %s25, 1
        %p382 = scmp.lt.s32.totalorder %s26, 0
        %s383 = scalar_select %p382, %s26, 0
        %s384 = sadd.s32 %s383, %s381
        %s385 = smul.addr %s384, 4
        %s386 = scalar_lea.vmem %s0, %s385
      $region52: #{transformer_forward.9} parent=47 // pred_fallthru
        _
      // Predicated region
      $region53: #{transformer_forward.9} parent=47 // pred_check
        %p387 = pneg %p78
      $region54: #{transformer_forward.9} parent=47 // pred_check_branch
        %389 = sbr.rel (%p387) target = $region56
      $region55: #{transformer_forward.9} parent=47 // pred_region
        %p390 = scmp.lt.s32.totalorder %s25, 1
        %s391 = scalar_select %p390, %s25, 1
        %s392 = smul.addr %s391, 4
        %s393 = scalar_lea.vmem %s1, %s392
      $region56: #{transformer_forward.9} parent=47 // pred_fallthru
        _
      // Predicated region
      $region57: #{transformer_forward.9} parent=47 // pred_check
        %p394 = pneg %p106
      $region58: #{transformer_forward.9} parent=47 // pred_check_branch
        %396 = sbr.rel (%p394) target = $region60
      $region59: #{transformer_forward.9} parent=47 // pred_region
        %p397 = scmp.lt.s32.totalorder %s25, 1
        %s398 = scalar_select %p397, %s25, 1
        %p399 = scmp.lt.s32.totalorder %s26, 0
        %s400 = scalar_select %p399, %s26, 0
        %s401 = sadd.s32 %s400, %s398
        %s402 = smul.addr %s401, 8
        %s403 = scalar_lea.vmem %s2, %s402
      $region60: #{transformer_forward.9} parent=47 // pred_fallthru
        _
      // Predicated region
      $region61: #{transformer_forward.9} parent=47 // pred_check
        %p404 = pneg %p132
      $region62: #{transformer_forward.9} parent=47 // pred_check_branch
        %406 = sbr.rel (%p404) target = $region64
      $region63: #{transformer_forward.9} parent=47 // pred_region
        %p407 = scmp.lt.s32.totalorder %s25, 1
        %s408 = scalar_select %p407, %s25, 1
        %s409 = scalar_lea.vmem %s3, %s408
      $region64: #{transformer_forward.9} parent=47 // pred_fallthru
        _
    $region48: #{transformer_forward.9} parent=5 // pred_fallthru
      _
    %p410 = scmp.le.s32.totalorder 1, %s18
    %p411 = scmp.lt.s32.totalorder %s18, 3
    %p412 = pnand %p410, %p411
    %p413 = pneg %p412
    // Predicated region
    $region65: #{transformer_forward.9} parent=5 // pred_check
      _
    $region66: #{transformer_forward.9} parent=5 // pred_check_branch
      %415 = sbr.rel (%p412) target = $region68
    $region67: #{transformer_forward.9} parent=5 // pred_region
      %s416 = ssub.s32 %s18, 1
      %p417 = scmp.lt.s32.totalorder %s27, 1
      %s418 = scalar_select %p417, %s27, 1
      %p419 = scmp.lt.s32.totalorder %s28, 0
      %s420 = scalar_select %p419, %s28, 0
      %s421 = sadd.s32 %s420, %s418
      %s422 = smul.addr %s421, 4
      %s423 = scalar_lea.vmem %s0, %s422
      %p424 = pneg %p58
      %p425 = pneg %p55
      %p426 = scmp.lt.s32.totalorder %s27, 1
      %s427 = scalar_select %p426, %s27, 1
      %s428 = smul.addr %s427, 4
      %s429 = scalar_lea.vmem %s1, %s428
      %p430 = pneg %p84
      %p431 = pneg %p81
      %p432 = scmp.lt.s32.totalorder %s27, 1
      %s433 = scalar_select %p432, %s27, 1
      %p434 = scmp.lt.s32.totalorder %s28, 0
      %s435 = scalar_select %p434, %s28, 0
      %s436 = sadd.s32 %s435, %s433
      %s437 = smul.addr %s436, 8
      %s438 = scalar_lea.vmem %s2, %s437
      %p439 = pneg %p112
      %p440 = pneg %p109
      %p441 = scmp.lt.s32.totalorder %s27, 1
      %s442 = scalar_select %p441, %s27, 1
      %s443 = scalar_lea.vmem %s3, %s442
      %p444 = pneg %p138
      %p445 = pneg %p135
      %p446 = pneg %p159
      %p447 = pneg %p156
      %p448 = pneg %p180
      %p449 = pneg %p177
      %p450 = pneg %p201
      %p451 = pneg %p198
      %p452 = pneg %p222
      %p453 = pneg %p219
      %p454 = pneg %p243
      %p455 = pneg %p240
      %p456 = pneg %p264
      %p457 = pneg %p261
      %p458 = pneg %p285
      %p459 = pneg %p282
      %p460 = pneg %p306
      %p461 = pneg %p303
      %p462 = pneg %p334
      %p463 = pneg %p331
      %p464 = scmp.lt.s32.totalorder %s27, 1
      %s465 = scalar_select %p464, %s27, 1
      %p466 = scmp.lt.s32.totalorder %s28, 0
      %s467 = scalar_select %p466, %s28, 0
      %s468 = sadd.s32 %s467, %s465
      %s469 = smul.addr %s468, 4
      %s470 = scalar_lea.vmem %s12, %s469
      %p471 = scmp.lt.s32.totalorder %s27, 1
      %s472 = scalar_select %p471, %s27, 1
      %p473 = scmp.lt.s32.totalorder %s28, 0
      %s474 = scalar_select %p473, %s28, 0
      %s475 = sadd.s32 %s474, %s472
      %s476 = smul.addr %s475, 4
      %s477 = scalar_lea.vmem %s0, %s476
      %p478 = scmp.lt.s32.totalorder %s27, 1
      %s479 = scalar_select %p478, %s27, 1
      %s480 = smul.addr %s479, 4
      %s481 = scalar_lea.vmem %s1, %s480
      %p482 = scmp.lt.s32.totalorder %s27, 1
      %s483 = scalar_select %p482, %s27, 1
      %p484 = scmp.lt.s32.totalorder %s28, 0
      %s485 = scalar_select %p484, %s28, 0
      %s486 = sadd.s32 %s485, %s483
      %s487 = smul.addr %s486, 8
      %s488 = scalar_lea.vmem %s2, %s487
      %p489 = scmp.lt.s32.totalorder %s27, 1
      %s490 = scalar_select %p489, %s27, 1
      %s491 = scalar_lea.vmem %s3, %s490
      %p492 = scmp.lt.s32.totalorder %s27, 1
      %s493 = scalar_select %p492, %s27, 1
      %p494 = scmp.lt.s32.totalorder %s28, 0
      %s495 = scalar_select %p494, %s28, 0
      %s496 = sadd.s32 %s495, %s493
      %s497 = smul.addr %s496, 4
      %s498 = scalar_lea.vmem %s12, %s497
      %p500 = scmp.eq.s32.totalorder %s28, 0
      // Predicated region
      $region69: #{transformer_forward.9} parent=67 // pred_check
        %p501 = pneg %p500
      $region70: #{transformer_forward.9} parent=67 // pred_check_branch
        %503 = sbr.rel (%p501) target = $region72
      $region71: #{transformer_forward.9} parent=67 // pred_region
        %v504 = vld [vmem:[%s481] sm:$0xf]
        %v505 = vld [vmem:[%s6] sm:$0xf]
        %v506 = vld [vmem:[%s6 + $0x4] sm:$0xf]
        %v507 = vld [vmem:[%s6 + $0x8] sm:$0xf]
        %v508 = vld [vmem:[%s6 + $0xc] sm:$0xf]
        %v509 = vld [vmem:[%s7] sm:$0x1]
        %v511 = vlaneseq
        %v512 = vshrl.u32 %v511, 7
        %v513 = vsub.s32 0, %v512
        %v514 = vrot.slane %v509, %v513
        %v520 = vunpack.c.l.b16 %v505
        %v521 = vunpack.c.l.b16 %v506
        %v522 = vunpack.c.l.b16 %v507
        %v523 = vunpack.c.l.b16 %v508
        %v524 = vpack.c.b16 %v521, %v520
        %v525 = vpack.c.b16 %v523, %v522
        %vm528 = vcmask 261120
        %v530 = vsel %vm528, %v504, 0
        %532 = vmatprep.subr.bf16.mxu0 0
        %533 = vmatpush1.bf16.msra.mxu0 %v524
        %534 = vmatprep.subr.bf16.mxu0 0
        %535 = vmatpush1.bf16.msra.mxu0 %v525
        %536 = vmatprep.subr.bf16.mxu0 0
        %537 = vmatpush1.bf16.msra.mxu0 0
        %538 = vmatprep.subr.bf16.mxu0 0
        %539 = vmatpush1.bf16.msra.mxu0 0
        %540 = vmatprep.subr.bf16.mxu0 0
        %541 = vmatpush1.bf16.msra.mxu0 0
        %542 = vmatprep.subr.bf16.mxu0 0
        %543 = vmatpush1.bf16.msra.mxu0 0
        %544 = vmatprep.subr.bf16.mxu0 0
        %545 = vmatpush1.bf16.msra.mxu0 0
        %546 = vmatprep.subr.bf16.mxu0 0
        %547 = vmatpush1.bf16.msra.mxu0 0
        %548 = vmatprep.subr.bf16.mxu0 0
        %549 = vmatpush1.bf16.msra.mxu0 0
        %550 = vmatprep.subr.bf16.mxu0 0
        %551 = vmatpush1.bf16.msra.mxu0 0
        %552 = vmatprep.subr.bf16.mxu0 0
        %553 = vmatpush1.bf16.msra.mxu0 0
        %554 = vmatprep.subr.bf16.mxu0 0
        %555 = vmatpush1.bf16.msra.mxu0 0
        %556 = vmatprep.subr.bf16.mxu0 0
        %557 = vmatpush1.bf16.msra.mxu0 0
        %558 = vmatprep.subr.bf16.mxu0 0
        %559 = vmatpush1.bf16.msra.mxu0 0
        %560 = vmatprep.subr.bf16.mxu0 0
        %561 = vmatpush1.bf16.msra.mxu0 0
        %562 = vmatprep.subr.bf16.mxu0 0
        %563 = vmatpush1.bf16.msra.mxu0 0
        %564 = vmatprep.mubr.bf16.mxu0 0
        %565 = vmatmul.mubr.bf16.gmra.mrb[0].mxu0 %v530
        %v566 = vpop.f32.mrb[0].mxu0
        %v567 = vadd.f32 %v514, %v566
        %v568 = vpop.f32.mrb[0].mxu0
        %v569 = vpop.f32.mrb[0].mxu0
        %v570 = vpop.f32.mrb[0].mxu0
        %571 = vdwg.mxu0
        %v572 = vpack.c.bf16 %v567, %v567
        %vm573 = vcmask 519168
        %574 = vst.msk [vmem:[#allocation2] sm:$0xf] %vm573, %v572
      $region72: #{transformer_forward.9} parent=67 // pred_fallthru
        _
      %v575 = vld [vmem:[%s477] sm:$0xf]
      %v576 = vld [vmem:[%s4] sm:$0xf]
      %v577 = vld [vmem:[%s4 + $0x4] sm:$0xf]
      %v578 = vld [vmem:[%s4 + $0x8] sm:$0xf]
      %v579 = vld [vmem:[%s4 + $0xc] sm:$0xf]
      %v580 = vld [vmem:[%s5] sm:$0x1]
      %v582 = vlaneseq
      %v583 = vshrl.u32 %v582, 7
      %v584 = vsub.s32 0, %v583
      %v585 = vrot.slane %v580, %v584
      %v591 = vunpack.c.l.b16 %v576
      %v592 = vunpack.c.l.b16 %v577
      %v593 = vunpack.c.l.b16 %v578
      %v594 = vunpack.c.l.b16 %v579
      %v595 = vpack.c.b16 %v592, %v591
      %v596 = vpack.c.b16 %v594, %v593
      %vm599 = vcmask 261120
      %v601 = vsel %vm599, %v575, 0
      %603 = vmatprep.subr.bf16.mxu0 0
      %604 = vmatpush1.bf16.msra.mxu0 %v595
      %605 = vmatprep.subr.bf16.mxu0 0
      %606 = vmatpush1.bf16.msra.mxu0 %v596
      %607 = vmatprep.subr.bf16.mxu0 0
      %608 = vmatpush1.bf16.msra.mxu0 0
      %609 = vmatprep.subr.bf16.mxu0 0
      %610 = vmatpush1.bf16.msra.mxu0 0
      %611 = vmatprep.subr.bf16.mxu0 0
      %612 = vmatpush1.bf16.msra.mxu0 0
      %613 = vmatprep.subr.bf16.mxu0 0
      %614 = vmatpush1.bf16.msra.mxu0 0
      %615 = vmatprep.subr.bf16.mxu0 0
      %616 = vmatpush1.bf16.msra.mxu0 0
      %617 = vmatprep.subr.bf16.mxu0 0
      %618 = vmatpush1.bf16.msra.mxu0 0
      %619 = vmatprep.subr.bf16.mxu0 0
      %620 = vmatpush1.bf16.msra.mxu0 0
      %621 = vmatprep.subr.bf16.mxu0 0
      %622 = vmatpush1.bf16.msra.mxu0 0
      %623 = vmatprep.subr.bf16.mxu0 0
      %624 = vmatpush1.bf16.msra.mxu0 0
      %625 = vmatprep.subr.bf16.mxu0 0
      %626 = vmatpush1.bf16.msra.mxu0 0
      %627 = vmatprep.subr.bf16.mxu0 0
      %628 = vmatpush1.bf16.msra.mxu0 0
      %629 = vmatprep.subr.bf16.mxu0 0
      %630 = vmatpush1.bf16.msra.mxu0 0
      %631 = vmatprep.subr.bf16.mxu0 0
      %632 = vmatpush1.bf16.msra.mxu0 0
      %633 = vmatprep.subr.bf16.mxu0 0
      %634 = vmatpush1.bf16.msra.mxu0 0
      %635 = vmatprep.mubr.bf16.mxu0 0
      %636 = vmatmul.mubr.bf16.gmra.mrb[0].mxu0 %v601
      %v637 = vpop.f32.mrb[0].mxu0
      %v638 = vadd.f32 %v585, %v637
      %v639 = vpop.f32.mrb[0].mxu0
      %v640 = vpop.f32.mrb[0].mxu0
      %v641 = vpop.f32.mrb[0].mxu0
      %642 = vdwg.mxu0
      %v643 = vld [vmem:[%s488] sm:$0xff]
      %v644 = vld [vmem:[%s491] sm:$0x1]
      %645 = vset.pattern.permute.xlu0 0
      %646 = vperm.xlu0 %645, %v643
      %v647 = vpop.permute.xlu0 %646
      %v648 = vlaneseq
      %v649 = vshrl.u32 %v648, 7
      %v650 = vsub.s32 0, %v649
      %v651 = vrot.slane %v644, %v650
      %v652 = vmul.u32 %v647, %v651
      %s653 = smul.u32 %s28, 8
      %v654 = vlaneseq
      %v655 = vshrl.u32 %v654, 7
      %v656 = vstv %s653
      %v657 = vadd.s32 %v656, %v655
      %v658 = vlaneseq
      %v659 = vand.u32 %v658, 127
      %vm660 = vcmp.le.s32.totalorder %v659, %v657
      %v661 = vsel %vm660, 1, 0
      %v662 = vmul.u32 %v652, %v661
      %vm663 = vcmp.ne.s32.totalorder %v662, 0
      %v664 = vsel %vm663, 0.0, -1e+09
      %v665 = vld [vmem:[#allocation2] sm:$0xf]
      %v666 = vpack.c.bf16 %v638, %v638
      %vm667 = vcmask 64512
      %v669 = vsel %vm667, %v666, 0
      %v672 = vsel %vm667, %v665, 0
      %674 = vmatprep.subr.bf16.mxu0 0
      %675 = vmatpush1.bf16.xpose.msra.mxu0 %v672
      %676 = vmatprep.subr.bf16.mxu0 0
      %677 = vmatpush1.bf16.xpose.msra.mxu0 0
      %678 = vmatprep.subr.bf16.mxu0 0
      %679 = vmatpush1.bf16.xpose.msra.mxu0 0
      %680 = vmatprep.subr.bf16.mxu0 0
      %681 = vmatpush1.bf16.xpose.msra.mxu0 0
      %682 = vmatprep.subr.bf16.mxu0 0
      %683 = vmatpush1.bf16.xpose.msra.mxu0 0
      %684 = vmatprep.subr.bf16.mxu0 0
      %685 = vmatpush1.bf16.xpose.msra.mxu0 0
      %686 = vmatprep.subr.bf16.mxu0 0
      %687 = vmatpush1.bf16.xpose.msra.mxu0 0
      %688 = vmatprep.subr.bf16.mxu0 0
      %689 = vmatpush1.bf16.xpose.msra.mxu0 0
      %690 = vmatprep.subr.bf16.mxu0 0
      %691 = vmatpush1.bf16.xpose.msra.mxu0 0
      %692 = vmatprep.subr.bf16.mxu0 0
      %693 = vmatpush1.bf16.xpose.msra.mxu0 0
      %694 = vmatprep.subr.bf16.mxu0 0
      %695 = vmatpush1.bf16.xpose.msra.mxu0 0
      %696 = vmatprep.subr.bf16.mxu0 0
      %697 = vmatpush1.bf16.xpose.msra.mxu0 0
      %698 = vmatprep.subr.bf16.mxu0 0
      %699 = vmatpush1.bf16.xpose.msra.mxu0 0
      %700 = vmatprep.subr.bf16.mxu0 0
      %701 = vmatpush1.bf16.xpose.msra.mxu0 0
      %702 = vmatprep.subr.bf16.mxu0 0
      %703 = vmatpush1.bf16.xpose.msra.mxu0 0
      %704 = vmatprep.subr.bf16.mxu0 0
      %705 = vmatpush1.bf16.xpose.msra.mxu0 0
      %706 = vmatprep.mubr.bf16.mxu0 0
      %707 = vmatmul.mubr.bf16.gmra.mrb[0].mxu0 %v669
      %v708 = vpop.f32.mrb[0].mxu0
      %v709 = vadd.f32 0.0, %v708
      %v710 = vpop.f32.mrb[0].mxu0
      %v711 = vpop.f32.mrb[0].mxu0
      %v712 = vpop.f32.mrb[0].mxu0
      %713 = vdwg.mxu0
      %v714 = vmul.f32 %v709, 0.35355338
      %v715 = vadd.f32 %v714, %v664
      %v716 = vsel %vm667, %v715, -inf
      %717 = vmax.xlane.f32.xlu0 %v716
      %v718 = vpop.xlane.xlu0 %717
      %v719 = vsub.f32 %v715, %v718
      %v720 = vmul.f32 %v719, 1.442695
      %v721 = vpow.pop %v720
      %v722 = vsel %vm667, %v721, 0.0
      %723 = vadd.xlane.f32.xlu0 %v722
      %v724 = vpop.xlane.xlu0 %723
      %v725 = vrcp.pop %v724
      %v726 = vmul.f32 %v721, %v725
      %v727 = vpack.c.bf16 %v726, %v726
      %v729 = vunpack.c.l.b16 %v665
      %v730 = vpack.c.b16 %v729, %v729
      %731 = vrot.lane.b32.xlu0 %v730, 96
      %v732 = vpop.permute.xlu0 %731
      %v734 = vsel %vm667, %v727, 0
      %vm736 = vcmask 1043456
      %v738 = vsel %vm736, %v732, 0
      %740 = vmatprep.subr.bf16.mxu0 0
      %741 = vmatpush1.bf16.msra.mxu0 %v738
      %742 = vmatprep.subr.bf16.mxu0 0
      %743 = vmatpush1.bf16.msra.mxu0 0
      %744 = vmatprep.subr.bf16.mxu0 0
      %745 = vmatpush1.bf16.msra.mxu0 0
      %746 = vmatprep.subr.bf16.mxu0 0
      %747 = vmatpush1.bf16.msra.mxu0 0
      %748 = vmatprep.subr.bf16.mxu0 0
      %749 = vmatpush1.bf16.msra.mxu0 0
      %750 = vmatprep.subr.bf16.mxu0 0
      %751 = vmatpush1.bf16.msra.mxu0 0
      %752 = vmatprep.subr.bf16.mxu0 0
      %753 = vmatpush1.bf16.msra.mxu0 0
      %754 = vmatprep.subr.bf16.mxu0 0
      %755 = vmatpush1.bf16.msra.mxu0 0
      %756 = vmatprep.subr.bf16.mxu0 0
      %757 = vmatpush1.bf16.msra.mxu0 0
      %758 = vmatprep.subr.bf16.mxu0 0
      %759 = vmatpush1.bf16.msra.mxu0 0
      %760 = vmatprep.subr.bf16.mxu0 0
      %761 = vmatpush1.bf16.msra.mxu0 0
      %762 = vmatprep.subr.bf16.mxu0 0
      %763 = vmatpush1.bf16.msra.mxu0 0
      %764 = vmatprep.subr.bf16.mxu0 0
      %765 = vmatpush1.bf16.msra.mxu0 0
      %766 = vmatprep.subr.bf16.mxu0 0
      %767 = vmatpush1.bf16.msra.mxu0 0
      %768 = vmatprep.subr.bf16.mxu0 0
      %769 = vmatpush1.bf16.msra.mxu0 0
      %770 = vmatprep.subr.bf16.mxu0 0
      %771 = vmatpush1.bf16.msra.mxu0 0
      %772 = vmatprep.mubr.bf16.mxu0 0
      %773 = vmatmul.mubr.bf16.gmra.mrb[0].mxu0 %v734
      %v774 = vpop.f32.mrb[0].mxu0
      %v775 = vadd.f32 0.0, %v774
      %v776 = vpop.f32.mrb[0].mxu0
      %v777 = vpop.f32.mrb[0].mxu0
      %v778 = vpop.f32.mrb[0].mxu0
      %779 = vdwg.mxu0
      %780 = vst.msk [vmem:[#allocation3] sm:$0xff] %vm667, %v775
      %782 = vrot.lane.b32.xlu0 %v666, 120
      %v783 = vpop.permute.xlu0 %782
      %784 = vrot.lane.b32.xlu0 %v730, 120
      %v785 = vpop.permute.xlu0 %784
      %v787 = vsel %vm667, %v783, 0
      %v790 = vsel %vm667, %v785, 0
      %792 = vmatprep.subr.bf16.mxu0 0
      %793 = vmatpush1.bf16.xpose.msra.mxu0 %v790
      %794 = vmatprep.subr.bf16.mxu0 0
      %795 = vmatpush1.bf16.xpose.msra.mxu0 0
      %796 = vmatprep.subr.bf16.mxu0 0
      %797 = vmatpush1.bf16.xpose.msra.mxu0 0
      %798 = vmatprep.subr.bf16.mxu0 0
      %799 = vmatpush1.bf16.xpose.msra.mxu0 0
      %800 = vmatprep.subr.bf16.mxu0 0
      %801 = vmatpush1.bf16.xpose.msra.mxu0 0
      %802 = vmatprep.subr.bf16.mxu0 0
      %803 = vmatpush1.bf16.xpose.msra.mxu0 0
      %804 = vmatprep.subr.bf16.mxu0 0
      %805 = vmatpush1.bf16.xpose.msra.mxu0 0
      %806 = vmatprep.subr.bf16.mxu0 0
      %807 = vmatpush1.bf16.xpose.msra.mxu0 0
      %808 = vmatprep.subr.bf16.mxu0 0
      %809 = vmatpush1.bf16.xpose.msra.mxu0 0
      %810 = vmatprep.subr.bf16.mxu0 0
      %811 = vmatpush1.bf16.xpose.msra.mxu0 0
      %812 = vmatprep.subr.bf16.mxu0 0
      %813 = vmatpush1.bf16.xpose.msra.mxu0 0
      %814 = vmatprep.subr.bf16.mxu0 0
      %815 = vmatpush1.bf16.xpose.msra.mxu0 0
      %816 = vmatprep.subr.bf16.mxu0 0
      %817 = vmatpush1.bf16.xpose.msra.mxu0 0
      %818 = vmatprep.subr.bf16.mxu0 0
      %819 = vmatpush1.bf16.xpose.msra.mxu0 0
      %820 = vmatprep.subr.bf16.mxu0 0
      %821 = vmatpush1.bf16.xpose.msra.mxu0 0
      %822 = vmatprep.subr.bf16.mxu0 0
      %823 = vmatpush1.bf16.xpose.msra.mxu0 0
      %824 = vmatprep.mubr.bf16.mxu0 0
      %825 = vmatmul.mubr.bf16.gmra.mrb[0].mxu0 %v787
      %v826 = vpop.f32.mrb[0].mxu0
      %v827 = vadd.f32 0.0, %v826
      %v828 = vpop.f32.mrb[0].mxu0
      %v829 = vpop.f32.mrb[0].mxu0
      %v830 = vpop.f32.mrb[0].mxu0
      %831 = vdwg.mxu0
      %v832 = vmul.f32 %v827, 0.35355338
      %v833 = vadd.f32 %v832, %v664
      %v834 = vsel %vm667, %v833, -inf
      %835 = vmax.xlane.f32.xlu0 %v834
      %v836 = vpop.xlane.xlu0 %835
      %v837 = vsub.f32 %v833, %v836
      %v838 = vmul.f32 %v837, 1.442695
      %v839 = vpow.pop %v838
      %v840 = vsel %vm667, %v839, 0.0
      %841 = vadd.xlane.f32.xlu0 %v840
      %v842 = vpop.xlane.xlu0 %841
      %v843 = vrcp.pop %v842
      %v844 = vmul.f32 %v839, %v843
      %v845 = vpack.c.bf16 %v844, %v844
      %846 = vrot.lane.b32.xlu0 %v730, 88
      %v847 = vpop.permute.xlu0 %846
      %v849 = vsel %vm667, %v845, 0
      %v852 = vsel %vm736, %v847, 0
      %854 = vmatprep.subr.bf16.mxu0 0
      %855 = vmatpush1.bf16.msra.mxu0 %v852
      %856 = vmatprep.subr.bf16.mxu0 0
      %857 = vmatpush1.bf16.msra.mxu0 0
      %858 = vmatprep.subr.bf16.mxu0 0
      %859 = vmatpush1.bf16.msra.mxu0 0
      %860 = vmatprep.subr.bf16.mxu0 0
      %861 = vmatpush1.bf16.msra.mxu0 0
      %862 = vmatprep.subr.bf16.mxu0 0
      %863 = vmatpush1.bf16.msra.mxu0 0
      %864 = vmatprep.subr.bf16.mxu0 0
      %865 = vmatpush1.bf16.msra.mxu0 0
      %866 = vmatprep.subr.bf16.mxu0 0
      %867 = vmatpush1.bf16.msra.mxu0 0
      %868 = vmatprep.subr.bf16.mxu0 0
      %869 = vmatpush1.bf16.msra.mxu0 0
      %870 = vmatprep.subr.bf16.mxu0 0
      %871 = vmatpush1.bf16.msra.mxu0 0
      %872 = vmatprep.subr.bf16.mxu0 0
      %873 = vmatpush1.bf16.msra.mxu0 0
      %874 = vmatprep.subr.bf16.mxu0 0
      %875 = vmatpush1.bf16.msra.mxu0 0
      %876 = vmatprep.subr.bf16.mxu0 0
      %877 = vmatpush1.bf16.msra.mxu0 0
      %878 = vmatprep.subr.bf16.mxu0 0
      %879 = vmatpush1.bf16.msra.mxu0 0
      %880 = vmatprep.subr.bf16.mxu0 0
      %881 = vmatpush1.bf16.msra.mxu0 0
      %882 = vmatprep.subr.bf16.mxu0 0
      %883 = vmatpush1.bf16.msra.mxu0 0
      %884 = vmatprep.subr.bf16.mxu0 0
      %885 = vmatpush1.bf16.msra.mxu0 0
      %886 = vmatprep.mubr.bf16.mxu0 0
      %887 = vmatmul.mubr.bf16.gmra.mrb[0].mxu0 %v849
      %v888 = vpop.f32.mrb[0].mxu0
      %v889 = vadd.f32 0.0, %v888
      %v890 = vpop.f32.mrb[0].mxu0
      %v891 = vpop.f32.mrb[0].mxu0
      %v892 = vpop.f32.mrb[0].mxu0
      %893 = vdwg.mxu0
      %895 = vrot.lane.b32.xlu0 %v889, 8
      %v896 = vpop.permute.xlu0 %895
      %vm898 = vcmask 130112
      %899 = vst.msk [vmem:[#allocation3] sm:$0xff] %vm898, %v896
      %900 = vrot.lane.b32.xlu0 %v666, 112
      %v901 = vpop.permute.xlu0 %900
      %902 = vrot.lane.b32.xlu0 %v730, 112
      %v903 = vpop.permute.xlu0 %902
      %v905 = vsel %vm667, %v901, 0
      %v908 = vsel %vm667, %v903, 0
      %910 = vmatprep.subr.bf16.mxu0 0
      %911 = vmatpush1.bf16.xpose.msra.mxu0 %v908
      %912 = vmatprep.subr.bf16.mxu0 0
      %913 = vmatpush1.bf16.xpose.msra.mxu0 0
      %914 = vmatprep.subr.bf16.mxu0 0
      %915 = vmatpush1.bf16.xpose.msra.mxu0 0
      %916 = vmatprep.subr.bf16.mxu0 0
      %917 = vmatpush1.bf16.xpose.msra.mxu0 0
      %918 = vmatprep.subr.bf16.mxu0 0
      %919 = vmatpush1.bf16.xpose.msra.mxu0 0
      %920 = vmatprep.subr.bf16.mxu0 0
      %921 = vmatpush1.bf16.xpose.msra.mxu0 0
      %922 = vmatprep.subr.bf16.mxu0 0
      %923 = vmatpush1.bf16.xpose.msra.mxu0 0
      %924 = vmatprep.subr.bf16.mxu0 0
      %925 = vmatpush1.bf16.xpose.msra.mxu0 0
      %926 = vmatprep.subr.bf16.mxu0 0
      %927 = vmatpush1.bf16.xpose.msra.mxu0 0
      %928 = vmatprep.subr.bf16.mxu0 0
      %929 = vmatpush1.bf16.xpose.msra.mxu0 0
      %930 = vmatprep.subr.bf16.mxu0 0
      %931 = vmatpush1.bf16.xpose.msra.mxu0 0
      %932 = vmatprep.subr.bf16.mxu0 0
      %933 = vmatpush1.bf16.xpose.msra.mxu0 0
      %934 = vmatprep.subr.bf16.mxu0 0
      %935 = vmatpush1.bf16.xpose.msra.mxu0 0
      %936 = vmatprep.subr.bf16.mxu0 0
      %937 = vmatpush1.bf16.xpose.msra.mxu0 0
      %938 = vmatprep.subr.bf16.mxu0 0
      %939 = vmatpush1.bf16.xpose.msra.mxu0 0
      %940 = vmatprep.subr.bf16.mxu0 0
      %941 = vmatpush1.bf16.xpose.msra.mxu0 0
      %942 = vmatprep.mubr.bf16.mxu0 0
      %943 = vmatmul.mubr.bf16.gmra.mrb[0].mxu0 %v905
      %v944 = vpop.f32.mrb[0].mxu0
      %v945 = vadd.f32 0.0, %v944
      %v946 = vpop.f32.mrb[0].mxu0
      %v947 = vpop.f32.mrb[0].mxu0
      %v948 = vpop.f32.mrb[0].mxu0
      %949 = vdwg.mxu0
      %v950 = vmul.f32 %v945, 0.35355338
      %v951 = vadd.f32 %v950, %v664
      %v952 = vsel %vm667, %v951, -inf
      %953 = vmax.xlane.f32.xlu0 %v952
      %v954 = vpop.xlane.xlu0 %953
      %v955 = vsub.f32 %v951, %v954
      %v956 = vmul.f32 %v955, 1.442695
      %v957 = vpow.pop %v956
      %v958 = vsel %vm667, %v957, 0.0
      %959 = vadd.xlane.f32.xlu0 %v958
      %v960 = vpop.xlane.xlu0 %959
      %v961 = vrcp.pop %v960
      %v962 = vmul.f32 %v957, %v961
      %v963 = vpack.c.bf16 %v962, %v962
      %964 = vrot.lane.b32.xlu0 %v730, 80
      %v965 = vpop.permute.xlu0 %964
      %v967 = vsel %vm667, %v963, 0
      %v970 = vsel %vm736, %v965, 0
      %972 = vmatprep.subr.bf16.mxu0 0
      %973 = vmatpush1.bf16.msra.mxu0 %v970
      %974 = vmatprep.subr.bf16.mxu0 0
      %975 = vmatpush1.bf16.msra.mxu0 0
      %976 = vmatprep.subr.bf16.mxu0 0
      %977 = vmatpush1.bf16.msra.mxu0 0
      %978 = vmatprep.subr.bf16.mxu0 0
      %979 = vmatpush1.bf16.msra.mxu0 0
      %980 = vmatprep.subr.bf16.mxu0 0
      %981 = vmatpush1.bf16.msra.mxu0 0
      %982 = vmatprep.subr.bf16.mxu0 0
      %983 = vmatpush1.bf16.msra.mxu0 0
      %984 = vmatprep.subr.bf16.mxu0 0
      %985 = vmatpush1.bf16.msra.mxu0 0
      %986 = vmatprep.subr.bf16.mxu0 0
      %987 = vmatpush1.bf16.msra.mxu0 0
      %988 = vmatprep.subr.bf16.mxu0 0
      %989 = vmatpush1.bf16.msra.mxu0 0
      %990 = vmatprep.subr.bf16.mxu0 0
      %991 = vmatpush1.bf16.msra.mxu0 0
      %992 = vmatprep.subr.bf16.mxu0 0
      %993 = vmatpush1.bf16.msra.mxu0 0
      %994 = vmatprep.subr.bf16.mxu0 0
      %995 = vmatpush1.bf16.msra.mxu0 0
      %996 = vmatprep.subr.bf16.mxu0 0
      %997 = vmatpush1.bf16.msra.mxu0 0
      %998 = vmatprep.subr.bf16.mxu0 0
      %999 = vmatpush1.bf16.msra.mxu0 0
      %1000 = vmatprep.subr.bf16.mxu0 0
      %1001 = vmatpush1.bf16.msra.mxu0 0
      %1002 = vmatprep.subr.bf16.mxu0 0
      %1003 = vmatpush1.bf16.msra.mxu0 0
      %1004 = vmatprep.mubr.bf16.mxu0 0
      %1005 = vmatmul.mubr.bf16.gmra.mrb[0].mxu0 %v967
      %v1006 = vpop.f32.mrb[0].mxu0
      %v1007 = vadd.f32 0.0, %v1006
      %v1008 = vpop.f32.mrb[0].mxu0
      %v1009 = vpop.f32.mrb[0].mxu0
      %v1010 = vpop.f32.mrb[0].mxu0
      %1011 = vdwg.mxu0
      %1013 = vrot.lane.b32.xlu0 %v1007, 16
      %v1014 = vpop.permute.xlu0 %1013
      %vm1016 = vcmask 195712
      %1017 = vst.msk [vmem:[#allocation3] sm:$0xff] %vm1016, %v1014
      %1018 = vrot.lane.b32.xlu0 %v666, 104
      %v1019 = vpop.permute.xlu0 %1018
      %1020 = vrot.lane.b32.xlu0 %v730, 104
      %v1021 = vpop.permute.xlu0 %1020
      %v1023 = vsel %vm667, %v1019, 0
      %v1026 = vsel %vm667, %v1021, 0
      %1028 = vmatprep.subr.bf16.mxu0 0
      %1029 = vmatpush1.bf16.xpose.msra.mxu0 %v1026
      %1030 = vmatprep.subr.bf16.mxu0 0
      %1031 = vmatpush1.bf16.xpose.msra.mxu0 0
      %1032 = vmatprep.subr.bf16.mxu0 0
      %1033 = vmatpush1.bf16.xpose.msra.mxu0 0
      %1034 = vmatprep.subr.bf16.mxu0 0
      %1035 = vmatpush1.bf16.xpose.msra.mxu0 0
      %1036 = vmatprep.subr.bf16.mxu0 0
      %1037 = vmatpush1.bf16.xpose.msra.mxu0 0
      %1038 = vmatprep.subr.bf16.mxu0 0
      %1039 = vmatpush1.bf16.xpose.msra.mxu0 0
      %1040 = vmatprep.subr.bf16.mxu0 0
      %1041 = vmatpush1.bf16.xpose.msra.mxu0 0
      %1042 = vmatprep.subr.bf16.mxu0 0
      %1043 = vmatpush1.bf16.xpose.msra.mxu0 0
      %1044 = vmatprep.subr.bf16.mxu0 0
      %1045 = vmatpush1.bf16.xpose.msra.mxu0 0
      %1046 = vmatprep.subr.bf16.mxu0 0
      %1047 = vmatpush1.bf16.xpose.msra.mxu0 0
      %1048 = vmatprep.subr.bf16.mxu0 0
      %1049 = vmatpush1.bf16.xpose.msra.mxu0 0
      %1050 = vmatprep.subr.bf16.mxu0 0
      %1051 = vmatpush1.bf16.xpose.msra.mxu0 0
      %1052 = vmatprep.subr.bf16.mxu0 0
      %1053 = vmatpush1.bf16.xpose.msra.mxu0 0
      %1054 = vmatprep.subr.bf16.mxu0 0
      %1055 = vmatpush1.bf16.xpose.msra.mxu0 0
      %1056 = vmatprep.subr.bf16.mxu0 0
      %1057 = vmatpush1.bf16.xpose.msra.mxu0 0
      %1058 = vmatprep.subr.bf16.mxu0 0
      %1059 = vmatpush1.bf16.xpose.msra.mxu0 0
      %1060 = vmatprep.mubr.bf16.mxu0 0
      %1061 = vmatmul.mubr.bf16.gmra.mrb[0].mxu0 %v1023
      %v1062 = vpop.f32.mrb[0].mxu0
      %v1063 = vadd.f32 0.0, %v1062
      %v1064 = vpop.f32.mrb[0].mxu0
      %v1065 = vpop.f32.mrb[0].mxu0
      %v1066 = vpop.f32.mrb[0].mxu0
      %1067 = vdwg.mxu0
      %v1068 = vmul.f32 %v1063, 0.35355338
      %v1069 = vadd.f32 %v1068, %v664
      %v1070 = vsel %vm667, %v1069, -inf
      %1071 = vmax.xlane.f32.xlu0 %v1070
      %v1072 = vpop.xlane.xlu0 %1071
      %v1073 = vsub.f32 %v1069, %v1072
      %v1074 = vmul.f32 %v1073, 1.442695
      %v1075 = vpow.pop %v1074
      %v1076 = vsel %vm667, %v1075, 0.0
      %1077 = vadd.xlane.f32.xlu0 %v1076
      %v1078 = vpop.xlane.xlu0 %1077
      %v1079 = vrcp.pop %v1078
      %v1080 = vmul.f32 %v1075, %v1079
      %v1081 = vpack.c.bf16 %v1080, %v1080
      %1082 = vrot.lane.b32.xlu0 %v730, 72
      %v1083 = vpop.permute.xlu0 %1082
      %v1085 = vsel %vm667, %v1081, 0
      %v1088 = vsel %vm736, %v1083, 0
      %1090 = vmatprep.subr.bf16.mxu0 0
      %1091 = vmatpush1.bf16.msra.mxu0 %v1088
      %1092 = vmatprep.subr.bf16.mxu0 0
      %1093 = vmatpush1.bf16.msra.mxu0 0
      %1094 = vmatprep.subr.bf16.mxu0 0
      %1095 = vmatpush1.bf16.msra.mxu0 0
      %1096 = vmatprep.subr.bf16.mxu0 0
      %1097 = vmatpush1.bf16.msra.mxu0 0
      %1098 = vmatprep.subr.bf16.mxu0 0
      %1099 = vmatpush1.bf16.msra.mxu0 0
      %1100 = vmatprep.subr.bf16.mxu0 0
      %1101 = vmatpush1.bf16.msra.mxu0 0
      %1102 = vmatprep.subr.bf16.mxu0 0
      %1103 = vmatpush1.bf16.msra.mxu0 0
      %1104 = vmatprep.subr.bf16.mxu0 0
      %1105 = vmatpush1.bf16.msra.mxu0 0
      %1106 = vmatprep.subr.bf16.mxu0 0
      %1107 = vmatpush1.bf16.msra.mxu0 0
      %1108 = vmatprep.subr.bf16.mxu0 0
      %1109 = vmatpush1.bf16.msra.mxu0 0
      %1110 = vmatprep.subr.bf16.mxu0 0
      %1111 = vmatpush1.bf16.msra.mxu0 0
      %1112 = vmatprep.subr.bf16.mxu0 0
      %1113 = vmatpush1.bf16.msra.mxu0 0
      %1114 = vmatprep.subr.bf16.mxu0 0
      %1115 = vmatpush1.bf16.msra.mxu0 0
      %1116 = vmatprep.subr.bf16.mxu0 0
      %1117 = vmatpush1.bf16.msra.mxu0 0
      %1118 = vmatprep.subr.bf16.mxu0 0
      %1119 = vmatpush1.bf16.msra.mxu0 0
      %1120 = vmatprep.subr.bf16.mxu0 0
      %1121 = vmatpush1.bf16.msra.mxu0 0
      %1122 = vmatprep.mubr.bf16.mxu0 0
      %1123 = vmatmul.mubr.bf16.gmra.mrb[0].mxu0 %v1085
      %v1124 = vpop.f32.mrb[0].mxu0
      %v1125 = vadd.f32 0.0, %v1124
      %v1126 = vpop.f32.mrb[0].mxu0
      %v1127 = vpop.f32.mrb[0].mxu0
      %v1128 = vpop.f32.mrb[0].mxu0
      %1129 = vdwg.mxu0
      %1131 = vrot.lane.b32.xlu0 %v1125, 24
      %v1132 = vpop.permute.xlu0 %1131
      %vm1134 = vcmask 261312
      %1135 = vst.msk [vmem:[#allocation3] sm:$0xff] %vm1134, %v1132
      %v1136 = vld [vmem:[#allocation3] sm:$0xff]
      %v1137 = vpack.c.bf16 %v1136, %v1136
      %v1138 = vld [vmem:[%s8] sm:$0xf]
      %v1139 = vld [vmem:[%s8 + $0x4] sm:$0xf]
      %v1140 = vld [vmem:[%s8 + $0x8] sm:$0xf]
      %v1141 = vld [vmem:[%s8 + $0xc] sm:$0xf]
      %v1142 = vld [vmem:[%s9] sm:$0x1]
      %v1144 = vlaneseq
      %v1145 = vshrl.u32 %v1144, 7
      %v1146 = vsub.s32 0, %v1145
      %v1147 = vrot.slane %v1142, %v1146
      %v1153 = vunpack.c.l.b16 %v1138
      %v1154 = vunpack.c.l.b16 %v1139
      %v1155 = vunpack.c.l.b16 %v1140
      %v1156 = vunpack.c.l.b16 %v1141
      %v1157 = vpack.c.b16 %v1154, %v1153
      %v1158 = vpack.c.b16 %v1156, %v1155
      %v1162 = vsel %vm599, %v1137, 0
      %1164 = vmatprep.subr.bf16.mxu0 0
      %1165 = vmatpush1.bf16.msra.mxu0 %v1157
      %1166 = vmatprep.subr.bf16.mxu0 0
      %1167 = vmatpush1.bf16.msra.mxu0 %v1158
      %1168 = vmatprep.subr.bf16.mxu0 0
      %1169 = vmatpush1.bf16.msra.mxu0 0
      %1170 = vmatprep.subr.bf16.mxu0 0
      %1171 = vmatpush1.bf16.msra.mxu0 0
      %1172 = vmatprep.subr.bf16.mxu0 0
      %1173 = vmatpush1.bf16.msra.mxu0 0
      %1174 = vmatprep.subr.bf16.mxu0 0
      %1175 = vmatpush1.bf16.msra.mxu0 0
      %1176 = vmatprep.subr.bf16.mxu0 0
      %1177 = vmatpush1.bf16.msra.mxu0 0
      %1178 = vmatprep.subr.bf16.mxu0 0
      %1179 = vmatpush1.bf16.msra.mxu0 0
      %1180 = vmatprep.subr.bf16.mxu0 0
      %1181 = vmatpush1.bf16.msra.mxu0 0
      %1182 = vmatprep.subr.bf16.mxu0 0
      %1183 = vmatpush1.bf16.msra.mxu0 0
      %1184 = vmatprep.subr.bf16.mxu0 0
      %1185 = vmatpush1.bf16.msra.mxu0 0
      %1186 = vmatprep.subr.bf16.mxu0 0
      %1187 = vmatpush1.bf16.msra.mxu0 0
      %1188 = vmatprep.subr.bf16.mxu0 0
      %1189 = vmatpush1.bf16.msra.mxu0 0
      %1190 = vmatprep.subr.bf16.mxu0 0
      %1191 = vmatpush1.bf16.msra.mxu0 0
      %1192 = vmatprep.subr.bf16.mxu0 0
      %1193 = vmatpush1.bf16.msra.mxu0 0
      %1194 = vmatprep.subr.bf16.mxu0 0
      %1195 = vmatpush1.bf16.msra.mxu0 0
      %1196 = vmatprep.mubr.bf16.mxu0 0
      %1197 = vmatmul.mubr.bf16.gmra.mrb[0].mxu0 %v1162
      %v1198 = vpop.f32.mrb[0].mxu0
      %v1199 = vadd.f32 %v1147, %v1198
      %v1200 = vpop.f32.mrb[0].mxu0
      %v1201 = vpop.f32.mrb[0].mxu0
      %v1202 = vpop.f32.mrb[0].mxu0
      %1203 = vdwg.mxu0
      %v1204 = vunpack.c.l.bf16 %v575
      %v1205 = vadd.f32 %v1204, %v1199
      %v1206 = vld [vmem:[%s10] sm:$0x1]
      %v1207 = vld [vmem:[%s11] sm:$0x1]
      %v1208 = vsel %vm599, %v1205, 0.0
      %1209 = vadd.xlane.f32.xlu0 %v1208
      %v1210 = vpop.xlane.xlu0 %1209
      %v1211 = vrcp.pop 32.0
      %v1212 = vmul.f32 %v1210, %v1211
      %v1213 = vsub.f32 %v1205, %v1212
      %v1214 = vmul.f32 %v1213, %v1213
      %v1215 = vsel %vm599, %v1214, 0.0
      %1216 = vadd.xlane.f32.xlu0 %v1215
      %v1217 = vpop.xlane.xlu0 %1216
      %v1218 = vmul.f32 %v1217, %v1211
      %v1219 = vadd.f32 %v1218, 1e-05
      %v1220 = vrsqrt.pop %v1219
      %v1221 = vmul.f32 %v1213, %v1220
      %v1223 = vlaneseq
      %v1224 = vshrl.u32 %v1223, 7
      %v1225 = vsub.s32 0, %v1224
      %v1226 = vrot.slane %v1206, %v1225
      %v1228 = vmul.f32 %v1221, %v1226
      %v1230 = vlaneseq
      %v1231 = vshrl.u32 %v1230, 7
      %v1232 = vsub.s32 0, %v1231
      %v1233 = vrot.slane %v1207, %v1232
      %v1235 = vadd.f32 %v1228, %v1233
      %v1236 = vpack.c.bf16 %v1235, %v1235
      %vm1237 = vcmask 257024
      %1238 = vst.msk [vmem:[%s498] sm:$0xf] %vm1237, %v1236
      %p1239 = scmp.lt.s32.totalorder %s27, 1
      %s1240 = scalar_select %p1239, %s27, 1
      %p1241 = scmp.lt.s32.totalorder %s28, 0
      %s1242 = scalar_select %p1241, %s28, 0
      %s1243 = sadd.s32 %s1242, %s1240
      %s1244 = smul.addr %s1243, 4
      %s1245 = scalar_lea.vmem %s12, %s1244
      // Predicated region
      $region73: #{transformer_forward.9} parent=67 // pred_check
        %p1246 = pneg %p331
      $region74: #{transformer_forward.9} parent=67 // pred_check_branch
        %1248 = sbr.rel (%p1246) target = $region76
      $region75: #{transformer_forward.9} parent=67 // pred_region
        _
      $region76: #{transformer_forward.9} parent=67 // pred_fallthru
        _
    $region68: #{transformer_forward.9} parent=5 // pred_fallthru
      _
    %p1249 = scmp.le.s32.totalorder 2, %s18
    // Predicated region
    $region77: #{transformer_forward.9} parent=5 // pred_check
      %p1250 = pneg %p1249
    $region78: #{transformer_forward.9} parent=5 // pred_check_branch
      %1252 = sbr.rel (%p1250) target = $region80
    $region79: #{transformer_forward.9} parent=5 // pred_region
      %s1253 = ssub.s32 %s18, 2
      // Predicated region
      $region81: #{transformer_forward.9} parent=79 // pred_check
        %p1254 = pneg %p337
      $region82: #{transformer_forward.9} parent=79 // pred_check_branch
        %1256 = sbr.rel (%p1254) target = $region84
      $region83: #{transformer_forward.9} parent=79 // pred_region
        %p1257 = scmp.lt.s32.totalorder %s29, 1
        %s1258 = scalar_select %p1257, %s29, 1
        %p1259 = scmp.lt.s32.totalorder %s30, 0
        %s1260 = scalar_select %p1259, %s30, 0
        %s1261 = sadd.s32 %s1260, %s1258
        %s1262 = smul.addr %s1261, 4
        %s1263 = scalar_lea.vmem %s12, %s1262
      $region84: #{transformer_forward.9} parent=79 // pred_fallthru
        _
    $region80: #{transformer_forward.9} parent=5 // pred_fallthru
      _
  $region6: #{transformer_forward.9} parent=0 // loop_footer
    %s22 = sadd.s32 1, %s18
  $region7: #{transformer_forward.9} parent=0 // loop_footer_branch
    %17 = sbr.rel target = $region3
  $region8: #{transformer_forward.9} parent=0 // loop_exit
    _

// kernel: transformer_forward.7
$region0: #{transformer_forward.7}
  #allocation0 [shape = 'u32[]', space=smem, size = 0x4, offset = 0x4, fixed_abs, tag = 'smem constant byte address 0x4 - core index']
  #allocation1 [shape = 'u32[144,128]{1,0:T(1,128)}', space=vmem, size = 0x12000, scoped, tag = 'internal scratch']
  #allocation2 [shape = 'bf16[8,64]{1,0:T(8,128)(2,1)}', space=vmem, size = 0x800, scoped, tag = 'scratch operand']
  #allocation3 [shape = 'f32[8,32]{1,0:T(8,128)}', space=vmem, size = 0x1000, scoped, tag = 'scratch operand']
  %s0 = inlined_call_operand.vmem [shape: bf16[2,8,32], index: 0, kind: input, shape index: {}, may-alias: {0,1}]
  %s1 = inlined_call_operand.vmem [shape: bf16[2,8,32], index: 1, kind: input, shape index: {}, may-alias: {0,1}]
  %s2 = inlined_call_operand.vmem [shape: s32[2,8,1], index: 2, kind: input, shape index: {}]
  %s3 = inlined_call_operand.vmem [shape: s32[2,1,8], index: 3, kind: input, shape index: {}]
  %s4 = inlined_call_operand.vmem [shape: bf16[32,32], index: 4, kind: input, shape index: {}]
  %s5 = inlined_call_operand.vmem [shape: f32[1,32], index: 5, kind: input, shape index: {}]
  %s6 = inlined_call_operand.vmem [shape: bf16[32,64], index: 6, kind: input, shape index: {}]
  %s7 = inlined_call_operand.vmem [shape: f32[1,64], index: 7, kind: input, shape index: {}]
  %s8 = inlined_call_operand.vmem [shape: bf16[32,32], index: 8, kind: input, shape index: {}]
  %s9 = inlined_call_operand.vmem [shape: f32[1,32], index: 9, kind: input, shape index: {}]
  %s10 = inlined_call_operand.vmem [shape: f32[1,32], index: 10, kind: input, shape index: {}]
  %s11 = inlined_call_operand.vmem [shape: f32[1,32], index: 11, kind: input, shape index: {}]
  %s12 = inlined_call_operand.vmem [shape: bf16[32,64], index: 12, kind: input, shape index: {}]
  %s13 = inlined_call_operand.vmem [shape: f32[1,64], index: 13, kind: input, shape index: {}]
  %s14 = inlined_call_operand.vmem [shape: bf16[64,32], index: 14, kind: input, shape index: {}]
  %s15 = inlined_call_operand.vmem [shape: f32[1,32], index: 15, kind: input, shape index: {}]
  %s16 = inlined_call_operand.vmem [shape: f32[1,32], index: 16, kind: input, shape index: {}]
  %s17 = inlined_call_operand.vmem [shape: f32[1,32], index: 17, kind: input, shape index: {}]
  %s18 = inlined_call_operand.vmem [shape: bf16[2,8,32], index: 18, kind: output, shape index: {}]
  %s19 = sld [smem:[#allocation0]]
  $region109: #{transformer_forward.7} parent=0
    _
  %s21 = ssub.s32 1, %s19
  %s22 = scalar_select 0, %s21, %s19
  loop: start=0, step=1, limit=4
  $region2: #{transformer_forward.7} parent=0 // loop_pre_header
    _
  $region3: #{transformer_forward.7} parent=0 // loop_header
    %s24 = sphi 0, %s28
    %p25 = scmp.ge.s32.totalorder %s24, 4
    %s31 = sphi 0, %s43
    %s32 = sphi 0, %s39
    %s33 = sphi 0, %s31
    %s34 = sphi 0, %s32
    %s35 = sphi 0, %s33
    %s36 = sphi 0, %s34
    %s48 = sphi 0, %s50
    %s51 = sphi 0, %s48
    %s52 = sphi 0, %s51
    %s68 = sphi 0, %s52
    %s74 = sphi 0, %s76
    %s77 = sphi 0, %s74
    %s78 = sphi 0, %s77
    %s94 = sphi 0, %s78
    %s102 = sphi 0, %s104
    %s105 = sphi 0, %s102
    %s106 = sphi 0, %s105
    %s122 = sphi 0, %s106
    %s128 = sphi 0, %s130
    %s131 = sphi 0, %s128
    %s132 = sphi 0, %s131
    %s148 = sphi 0, %s132
    %s152 = sphi 0, %s152
    %s154 = sphi 0, %s152
    %s155 = sphi 0, %s154
    %s169 = sphi 0, %s155
    %s173 = sphi 0, %s173
    %s175 = sphi 0, %s173
    %s176 = sphi 0, %s175
    %s190 = sphi 0, %s176
    %s194 = sphi 0, %s194
    %s196 = sphi 0, %s194
    %s197 = sphi 0, %s196
    %s211 = sphi 0, %s197
    %s215 = sphi 0, %s215
    %s217 = sphi 0, %s215
    %s218 = sphi 0, %s217
    %s232 = sphi 0, %s218
    %s236 = sphi 0, %s236
    %s238 = sphi 0, %s236
    %s239 = sphi 0, %s238
    %s253 = sphi 0, %s239
    %s257 = sphi 0, %s257
    %s259 = sphi 0, %s257
    %s260 = sphi 0, %s259
    %s274 = sphi 0, %s260
    %s278 = sphi 0, %s278
    %s280 = sphi 0, %s278
    %s281 = sphi 0, %s280
    %s295 = sphi 0, %s281
    %s299 = sphi 0, %s299
    %s301 = sphi 0, %s299
    %s302 = sphi 0, %s301
    %s316 = sphi 0, %s302
    %s320 = sphi 0, %s320
    %s322 = sphi 0, %s320
    %s323 = sphi 0, %s322
    %s337 = sphi 0, %s323
    %s341 = sphi 0, %s341
    %s343 = sphi 0, %s341
    %s344 = sphi 0, %s343
    %s358 = sphi 0, %s344
    %s362 = sphi 0, %s362
    %s364 = sphi 0, %s362
    %s365 = sphi 0, %s364
    %s379 = sphi 0, %s365
    %s383 = sphi 0, %s383
    %s385 = sphi 0, %s383
    %s386 = sphi 0, %s385
    %s400 = sphi 0, %s386
    %s404 = sphi 0, %s404
    %s406 = sphi 0, %s404
    %s407 = sphi 0, %s406
    %s421 = sphi 0, %s407
    %s425 = sphi 0, %s425
    %s427 = sphi 0, %s425
    %s428 = sphi 0, %s427
    %s442 = sphi 0, %s428
    %s450 = sphi 0, %s452
    %s453 = sphi 0, %s450
    %s454 = sphi 0, %s453
    %s470 = sphi 0, %s454
  $region4: #{transformer_forward.7} parent=0 // loop_header_branch
    %27 = sbr.rel (%p25) target = $region8
  $region5: #{transformer_forward.7} parent=0 // loop_body
    %s29 = ssub.s32 %s24, 1
    %s30 = ssub.s32 %s24, 2
    %s37 = sadd.s32 1, %s32
    %p38 = scmp.ge.s32.totalorder %s37, 1
    %s39 = scalar_select %p38, 0, %s37
    %s40 = sadd.s32 1, %s31
    %s41 = scalar_select %p38, %s40, %s31
    %p42 = scmp.ge.s32.totalorder %s41, 2
    %s43 = scalar_select %p42, 0, %s41
    %s44 = ssub.s32 %s31, %s43
    %s45 = ssub.s32 %s32, %s39
    %s46 = sor.u32 %s44, %s45
    %p47 = scmp.eq.s32.totalorder %s46, 0
    %s49 = sadd.s32 %s48, 1
    %s50 = scalar_select %p47, %s48, %s49
    %p53 = pneg %p47
    %p54 = scmp.eq.s32.totalorder %s24, 1
    %p55 = por %p53, %p54
    %p56 = scmp.ne.s32.totalorder %s48, %s51
    %p57 = scmp.eq.s32.totalorder %s24, 0
    %p58 = por %p56, %p57
    %p59 = scmp.ne.s32.totalorder %s48, %s51
    %p60 = scmp.eq.s32.totalorder %s29, 1
    %p61 = por %p59, %p60
    %p62 = scmp.ne.s32.totalorder %s51, %s52
    %p63 = scmp.eq.s32.totalorder %s29, 0
    %p64 = por %p62, %p63
    %p65 = scmp.ne.s32.totalorder %s51, %s52
    %p66 = scmp.eq.s32.totalorder %s30, 1
    %p67 = por %p65, %p66
    %p69 = scmp.ne.s32.totalorder %s52, %s68
    %p70 = scmp.eq.s32.totalorder %s30, 0
    %p71 = por %p69, %p70
    %s72 = ssub.s32 %s31, %s43
    %p73 = scmp.eq.s32.totalorder %s72, 0
    %s75 = sadd.s32 %s74, 1
    %s76 = scalar_select %p73, %s74, %s75
    %p79 = pneg %p73
    %p80 = scmp.eq.s32.totalorder %s24, 1
    %p81 = por %p79, %p80
    %p82 = scmp.ne.s32.totalorder %s74, %s77
    %p83 = scmp.eq.s32.totalorder %s24, 0
    %p84 = por %p82, %p83
    %p85 = scmp.ne.s32.totalorder %s74, %s77
    %p86 = scmp.eq.s32.totalorder %s29, 1
    %p87 = por %p85, %p86
    %p88 = scmp.ne.s32.totalorder %s77, %s78
    %p89 = scmp.eq.s32.totalorder %s29, 0
    %p90 = por %p88, %p89
    %p91 = scmp.ne.s32.totalorder %s77, %s78
    %p92 = scmp.eq.s32.totalorder %s30, 1
    %p93 = por %p91, %p92
    %p95 = scmp.ne.s32.totalorder %s78, %s94
    %p96 = scmp.eq.s32.totalorder %s30, 0
    %p97 = por %p95, %p96
    %s98 = ssub.s32 %s31, %s43
    %s99 = ssub.s32 %s32, %s39
    %s100 = sor.u32 %s98, %s99
    %p101 = scmp.eq.s32.totalorder %s100, 0
    %s103 = sadd.s32 %s102, 1
    %s104 = scalar_select %p101, %s102, %s103
    %p107 = pneg %p101
    %p108 = scmp.eq.s32.totalorder %s24, 1
    %p109 = por %p107, %p108
    %p110 = scmp.ne.s32.totalorder %s102, %s105
    %p111 = scmp.eq.s32.totalorder %s24, 0
    %p112 = por %p110, %p111
    %p113 = scmp.ne.s32.totalorder %s102, %s105
    %p114 = scmp.eq.s32.totalorder %s29, 1
    %p115 = por %p113, %p114
    %p116 = scmp.ne.s32.totalorder %s105, %s106
    %p117 = scmp.eq.s32.totalorder %s29, 0
    %p118 = por %p116, %p117
    %p119 = scmp.ne.s32.totalorder %s105, %s106
    %p120 = scmp.eq.s32.totalorder %s30, 1
    %p121 = por %p119, %p120
    %p123 = scmp.ne.s32.totalorder %s106, %s122
    %p124 = scmp.eq.s32.totalorder %s30, 0
    %p125 = por %p123, %p124
    %s126 = ssub.s32 %s31, %s43
    %p127 = scmp.eq.s32.totalorder %s126, 0
    %s129 = sadd.s32 %s128, 1
    %s130 = scalar_select %p127, %s128, %s129
    %p133 = pneg %p127
    %p134 = scmp.eq.s32.totalorder %s24, 1
    %p135 = por %p133, %p134
    %p136 = scmp.ne.s32.totalorder %s128, %s131
    %p137 = scmp.eq.s32.totalorder %s24, 0
    %p138 = por %p136, %p137
    %p139 = scmp.ne.s32.totalorder %s128, %s131
    %p140 = scmp.eq.s32.totalorder %s29, 1
    %p141 = por %p139, %p140
    %p142 = scmp.ne.s32.totalorder %s131, %s132
    %p143 = scmp.eq.s32.totalorder %s29, 0
    %p144 = por %p142, %p143
    %p145 = scmp.ne.s32.totalorder %s131, %s132
    %p146 = scmp.eq.s32.totalorder %s30, 1
    %p147 = por %p145, %p146
    %p149 = scmp.ne.s32.totalorder %s132, %s148
    %p150 = scmp.eq.s32.totalorder %s30, 0
    %p151 = por %p149, %p150
    %s153 = sadd.s32 %s152, 1
    %p156 = scmp.eq.s32.totalorder %s24, 1
    %p157 = scmp.ne.s32.totalorder %s152, %s154
    %p158 = scmp.eq.s32.totalorder %s24, 0
    %p159 = por %p157, %p158
    %p160 = scmp.ne.s32.totalorder %s152, %s154
    %p161 = scmp.eq.s32.totalorder %s29, 1
    %p162 = por %p160, %p161
    %p163 = scmp.ne.s32.totalorder %s154, %s155
    %p164 = scmp.eq.s32.totalorder %s29, 0
    %p165 = por %p163, %p164
    %p166 = scmp.ne.s32.totalorder %s154, %s155
    %p167 = scmp.eq.s32.totalorder %s30, 1
    %p168 = por %p166, %p167
    %p170 = scmp.ne.s32.totalorder %s155, %s169
    %p171 = scmp.eq.s32.totalorder %s30, 0
    %p172 = por %p170, %p171
    %s174 = sadd.s32 %s173, 1
    %p177 = scmp.eq.s32.totalorder %s24, 1
    %p178 = scmp.ne.s32.totalorder %s173, %s175
    %p179 = scmp.eq.s32.totalorder %s24, 0
    %p180 = por %p178, %p179
    %p181 = scmp.ne.s32.totalorder %s173, %s175
    %p182 = scmp.eq.s32.totalorder %s29, 1
    %p183 = por %p181, %p182
    %p184 = scmp.ne.s32.totalorder %s175, %s176
    %p185 = scmp.eq.s32.totalorder %s29, 0
    %p186 = por %p184, %p185
    %p187 = scmp.ne.s32.totalorder %s175, %s176
    %p188 = scmp.eq.s32.totalorder %s30, 1
    %p189 = por %p187, %p188
    %p191 = scmp.ne.s32.totalorder %s176, %s190
    %p192 = scmp.eq.s32.totalorder %s30, 0
    %p193 = por %p191, %p192
    %s195 = sadd.s32 %s194, 1
    %p198 = scmp.eq.s32.totalorder %s24, 1
    %p199 = scmp.ne.s32.totalorder %s194, %s196
    %p200 = scmp.eq.s32.totalorder %s24, 0
    %p201 = por %p199, %p200
    %p202 = scmp.ne.s32.totalorder %s194, %s196
    %p203 = scmp.eq.s32.totalorder %s29, 1
    %p204 = por %p202, %p203
    %p205 = scmp.ne.s32.totalorder %s196, %s197
    %p206 = scmp.eq.s32.totalorder %s29, 0
    %p207 = por %p205, %p206
    %p208 = scmp.ne.s32.totalorder %s196, %s197
    %p209 = scmp.eq.s32.totalorder %s30, 1
    %p210 = por %p208, %p209
    %p212 = scmp.ne.s32.totalorder %s197, %s211
    %p213 = scmp.eq.s32.totalorder %s30, 0
    %p214 = por %p212, %p213
    %s216 = sadd.s32 %s215, 1
    %p219 = scmp.eq.s32.totalorder %s24, 1
    %p220 = scmp.ne.s32.totalorder %s215, %s217
    %p221 = scmp.eq.s32.totalorder %s24, 0
    %p222 = por %p220, %p221
    %p223 = scmp.ne.s32.totalorder %s215, %s217
    %p224 = scmp.eq.s32.totalorder %s29, 1
    %p225 = por %p223, %p224
    %p226 = scmp.ne.s32.totalorder %s217, %s218
    %p227 = scmp.eq.s32.totalorder %s29, 0
    %p228 = por %p226, %p227
    %p229 = scmp.ne.s32.totalorder %s217, %s218
    %p230 = scmp.eq.s32.totalorder %s30, 1
    %p231 = por %p229, %p230
    %p233 = scmp.ne.s32.totalorder %s218, %s232
    %p234 = scmp.eq.s32.totalorder %s30, 0
    %p235 = por %p233, %p234
    %s237 = sadd.s32 %s236, 1
    %p240 = scmp.eq.s32.totalorder %s24, 1
    %p241 = scmp.ne.s32.totalorder %s236, %s238
    %p242 = scmp.eq.s32.totalorder %s24, 0
    %p243 = por %p241, %p242
    %p244 = scmp.ne.s32.totalorder %s236, %s238
    %p245 = scmp.eq.s32.totalorder %s29, 1
    %p246 = por %p244, %p245
    %p247 = scmp.ne.s32.totalorder %s238, %s239
    %p248 = scmp.eq.s32.totalorder %s29, 0
    %p249 = por %p247, %p248
    %p250 = scmp.ne.s32.totalorder %s238, %s239
    %p251 = scmp.eq.s32.totalorder %s30, 1
    %p252 = por %p250, %p251
    %p254 = scmp.ne.s32.totalorder %s239, %s253
    %p255 = scmp.eq.s32.totalorder %s30, 0
    %p256 = por %p254, %p255
    %s258 = sadd.s32 %s257, 1
    %p261 = scmp.eq.s32.totalorder %s24, 1
    %p262 = scmp.ne.s32.totalorder %s257, %s259
    %p263 = scmp.eq.s32.totalorder %s24, 0
    %p264 = por %p262, %p263
    %p265 = scmp.ne.s32.totalorder %s257, %s259
    %p266 = scmp.eq.s32.totalorder %s29, 1
    %p267 = por %p265, %p266
    %p268 = scmp.ne.s32.totalorder %s259, %s260
    %p269 = scmp.eq.s32.totalorder %s29, 0
    %p270 = por %p268, %p269
    %p271 = scmp.ne.s32.totalorder %s259, %s260
    %p272 = scmp.eq.s32.totalorder %s30, 1
    %p273 = por %p271, %p272
    %p275 = scmp.ne.s32.totalorder %s260, %s274
    %p276 = scmp.eq.s32.totalorder %s30, 0
    %p277 = por %p275, %p276
    %s279 = sadd.s32 %s278, 1
    %p282 = scmp.eq.s32.totalorder %s24, 1
    %p283 = scmp.ne.s32.totalorder %s278, %s280
    %p284 = scmp.eq.s32.totalorder %s24, 0
    %p285 = por %p283, %p284
    %p286 = scmp.ne.s32.totalorder %s278, %s280
    %p287 = scmp.eq.s32.totalorder %s29, 1
    %p288 = por %p286, %p287
    %p289 = scmp.ne.s32.totalorder %s280, %s281
    %p290 = scmp.eq.s32.totalorder %s29, 0
    %p291 = por %p289, %p290
    %p292 = scmp.ne.s32.totalorder %s280, %s281
    %p293 = scmp.eq.s32.totalorder %s30, 1
    %p294 = por %p292, %p293
    %p296 = scmp.ne.s32.totalorder %s281, %s295
    %p297 = scmp.eq.s32.totalorder %s30, 0
    %p298 = por %p296, %p297
    %s300 = sadd.s32 %s299, 1
    %p303 = scmp.eq.s32.totalorder %s24, 1
    %p304 = scmp.ne.s32.totalorder %s299, %s301
    %p305 = scmp.eq.s32.totalorder %s24, 0
    %p306 = por %p304, %p305
    %p307 = scmp.ne.s32.totalorder %s299, %s301
    %p308 = scmp.eq.s32.totalorder %s29, 1
    %p309 = por %p307, %p308
    %p310 = scmp.ne.s32.totalorder %s301, %s302
    %p311 = scmp.eq.s32.totalorder %s29, 0
    %p312 = por %p310, %p311
    %p313 = scmp.ne.s32.totalorder %s301, %s302
    %p314 = scmp.eq.s32.totalorder %s30, 1
    %p315 = por %p313, %p314
    %p317 = scmp.ne.s32.totalorder %s302, %s316
    %p318 = scmp.eq.s32.totalorder %s30, 0
    %p319 = por %p317, %p318
    %s321 = sadd.s32 %s320, 1
    %p324 = scmp.eq.s32.totalorder %s24, 1
    %p325 = scmp.ne.s32.totalorder %s320, %s322
    %p326 = scmp.eq.s32.totalorder %s24, 0
    %p327 = por %p325, %p326
    %p328 = scmp.ne.s32.totalorder %s320, %s322
    %p329 = scmp.eq.s32.totalorder %s29, 1
    %p330 = por %p328, %p329
    %p331 = scmp.ne.s32.totalorder %s322, %s323
    %p332 = scmp.eq.s32.totalorder %s29, 0
    %p333 = por %p331, %p332
    %p334 = scmp.ne.s32.totalorder %s322, %s323
    %p335 = scmp.eq.s32.totalorder %s30, 1
    %p336 = por %p334, %p335
    %p338 = scmp.ne.s32.totalorder %s323, %s337
    %p339 = scmp.eq.s32.totalorder %s30, 0
    %p340 = por %p338, %p339
    %s342 = sadd.s32 %s341, 1
    %p345 = scmp.eq.s32.totalorder %s24, 1
    %p346 = scmp.ne.s32.totalorder %s341, %s343
    %p347 = scmp.eq.s32.totalorder %s24, 0
    %p348 = por %p346, %p347
    %p349 = scmp.ne.s32.totalorder %s341, %s343
    %p350 = scmp.eq.s32.totalorder %s29, 1
    %p351 = por %p349, %p350
    %p352 = scmp.ne.s32.totalorder %s343, %s344
    %p353 = scmp.eq.s32.totalorder %s29, 0
    %p354 = por %p352, %p353
    %p355 = scmp.ne.s32.totalorder %s343, %s344
    %p356 = scmp.eq.s32.totalorder %s30, 1
    %p357 = por %p355, %p356
    %p359 = scmp.ne.s32.totalorder %s344, %s358
    %p360 = scmp.eq.s32.totalorder %s30, 0
    %p361 = por %p359, %p360
    %s363 = sadd.s32 %s362, 1
    %p366 = scmp.eq.s32.totalorder %s24, 1
    %p367 = scmp.ne.s32.totalorder %s362, %s364
    %p368 = scmp.eq.s32.totalorder %s24, 0
    %p369 = por %p367, %p368
    %p370 = scmp.ne.s32.totalorder %s362, %s364
    %p371 = scmp.eq.s32.totalorder %s29, 1
    %p372 = por %p370, %p371
    %p373 = scmp.ne.s32.totalorder %s364, %s365
    %p374 = scmp.eq.s32.totalorder %s29, 0
    %p375 = por %p373, %p374
    %p376 = scmp.ne.s32.totalorder %s364, %s365
    %p377 = scmp.eq.s32.totalorder %s30, 1
    %p378 = por %p376, %p377
    %p380 = scmp.ne.s32.totalorder %s365, %s379
    %p381 = scmp.eq.s32.totalorder %s30, 0
    %p382 = por %p380, %p381
    %s384 = sadd.s32 %s383, 1
    %p387 = scmp.eq.s32.totalorder %s24, 1
    %p388 = scmp.ne.s32.totalorder %s383, %s385
    %p389 = scmp.eq.s32.totalorder %s24, 0
    %p390 = por %p388, %p389
    %p391 = scmp.ne.s32.totalorder %s383, %s385
    %p392 = scmp.eq.s32.totalorder %s29, 1
    %p393 = por %p391, %p392
    %p394 = scmp.ne.s32.totalorder %s385, %s386
    %p395 = scmp.eq.s32.totalorder %s29, 0
    %p396 = por %p394, %p395
    %p397 = scmp.ne.s32.totalorder %s385, %s386
    %p398 = scmp.eq.s32.totalorder %s30, 1
    %p399 = por %p397, %p398
    %p401 = scmp.ne.s32.totalorder %s386, %s400
    %p402 = scmp.eq.s32.totalorder %s30, 0
    %p403 = por %p401, %p402
    %s405 = sadd.s32 %s404, 1
    %p408 = scmp.eq.s32.totalorder %s24, 1
    %p409 = scmp.ne.s32.totalorder %s404, %s406
    %p410 = scmp.eq.s32.totalorder %s24, 0
    %p411 = por %p409, %p410
    %p412 = scmp.ne.s32.totalorder %s404, %s406
    %p413 = scmp.eq.s32.totalorder %s29, 1
    %p414 = por %p412, %p413
    %p415 = scmp.ne.s32.totalorder %s406, %s407
    %p416 = scmp.eq.s32.totalorder %s29, 0
    %p417 = por %p415, %p416
    %p418 = scmp.ne.s32.totalorder %s406, %s407
    %p419 = scmp.eq.s32.totalorder %s30, 1
    %p420 = por %p418, %p419
    %p422 = scmp.ne.s32.totalorder %s407, %s421
    %p423 = scmp.eq.s32.totalorder %s30, 0
    %p424 = por %p422, %p423
    %s426 = sadd.s32 %s425, 1
    %p429 = scmp.eq.s32.totalorder %s24, 1
    %p430 = scmp.ne.s32.totalorder %s425, %s427
    %p431 = scmp.eq.s32.totalorder %s24, 0
    %p432 = por %p430, %p431
    %p433 = scmp.ne.s32.totalorder %s425, %s427
    %p434 = scmp.eq.s32.totalorder %s29, 1
    %p435 = por %p433, %p434
    %p436 = scmp.ne.s32.totalorder %s427, %s428
    %p437 = scmp.eq.s32.totalorder %s29, 0
    %p438 = por %p436, %p437
    %p439 = scmp.ne.s32.totalorder %s427, %s428
    %p440 = scmp.eq.s32.totalorder %s30, 1
    %p441 = por %p439, %p440
    %p443 = scmp.ne.s32.totalorder %s428, %s442
    %p444 = scmp.eq.s32.totalorder %s30, 0
    %p445 = por %p443, %p444
    %s446 = ssub.s32 %s31, %s43
    %s447 = ssub.s32 %s32, %s39
    %s448 = sor.u32 %s446, %s447
    %p449 = scmp.eq.s32.totalorder %s448, 0
    %s451 = sadd.s32 %s450, 1
    %s452 = scalar_select %p449, %s450, %s451
    %p455 = pneg %p449
    %p456 = scmp.eq.s32.totalorder %s24, 1
    %p457 = por %p455, %p456
    %p458 = scmp.ne.s32.totalorder %s450, %s453
    %p459 = scmp.eq.s32.totalorder %s24, 0
    %p460 = por %p458, %p459
    %p461 = scmp.ne.s32.totalorder %s450, %s453
    %p462 = scmp.eq.s32.totalorder %s29, 1
    %p463 = por %p461, %p462
    %p464 = scmp.ne.s32.totalorder %s453, %s454
    %p465 = scmp.eq.s32.totalorder %s29, 0
    %p466 = por %p464, %p465
    %p467 = scmp.ne.s32.totalorder %s453, %s454
    %p468 = scmp.eq.s32.totalorder %s30, 1
    %p469 = por %p467, %p468
    %p471 = scmp.ne.s32.totalorder %s454, %s470
    %p472 = scmp.eq.s32.totalorder %s30, 0
    %p473 = por %p471, %p472
    %p474 = scmp.le.s32.totalorder 1, %s24
    %p475 = scmp.lt.s32.totalorder %s24, 3
    %p476 = pnand %p474, %p475
    %p477 = pneg %p476
    // Predicated region
    $region9: #{transformer_forward.7} parent=5 // pred_check
      _
    $region10: #{transformer_forward.7} parent=5 // pred_check_branch
      %479 = sbr.rel (%p476) target = $region12
    $region11: #{transformer_forward.7} parent=5 // pred_region
      %s480 = ssub.s32 %s24, 1
      // Predicated region
      $region13: #{transformer_forward.7} parent=11 // pred_check
        %p481 = pneg %p165
      $region14: #{transformer_forward.7} parent=11 // pred_check_branch
        %483 = sbr.rel (%p481) target = $region16
      $region15: #{transformer_forward.7} parent=11 // pred_region
        _
      $region16: #{transformer_forward.7} parent=11 // pred_fallthru
        _
      // Predicated region
      $region17: #{transformer_forward.7} parent=11 // pred_check
        %p484 = pneg %p186
      $region18: #{transformer_forward.7} parent=11 // pred_check_branch
        %486 = sbr.rel (%p484) target = $region20
      $region19: #{transformer_forward.7} parent=11 // pred_region
        _
      $region20: #{transformer_forward.7} parent=11 // pred_fallthru
        _
      // Predicated region
      $region21: #{transformer_forward.7} parent=11 // pred_check
        %p487 = pneg %p207
      $region22: #{transformer_forward.7} parent=11 // pred_check_branch
        %489 = sbr.rel (%p487) target = $region24
      $region23: #{transformer_forward.7} parent=11 // pred_region
        _
      $region24: #{transformer_forward.7} parent=11 // pred_fallthru
        _
      // Predicated region
      $region25: #{transformer_forward.7} parent=11 // pred_check
        %p490 = pneg %p228
      $region26: #{transformer_forward.7} parent=11 // pred_check_branch
        %492 = sbr.rel (%p490) target = $region28
      $region27: #{transformer_forward.7} parent=11 // pred_region
        _
      $region28: #{transformer_forward.7} parent=11 // pred_fallthru
        _
      // Predicated region
      $region29: #{transformer_forward.7} parent=11 // pred_check
        %p493 = pneg %p249
      $region30: #{transformer_forward.7} parent=11 // pred_check_branch
        %495 = sbr.rel (%p493) target = $region32
      $region31: #{transformer_forward.7} parent=11 // pred_region
        _
      $region32: #{transformer_forward.7} parent=11 // pred_fallthru
        _
      // Predicated region
      $region33: #{transformer_forward.7} parent=11 // pred_check
        %p496 = pneg %p270
      $region34: #{transformer_forward.7} parent=11 // pred_check_branch
        %498 = sbr.rel (%p496) target = $region36
      $region35: #{transformer_forward.7} parent=11 // pred_region
        _
      $region36: #{transformer_forward.7} parent=11 // pred_fallthru
        _
      // Predicated region
      $region37: #{transformer_forward.7} parent=11 // pred_check
        %p499 = pneg %p291
      $region38: #{transformer_forward.7} parent=11 // pred_check_branch
        %501 = sbr.rel (%p499) target = $region40
      $region39: #{transformer_forward.7} parent=11 // pred_region
        _
      $region40: #{transformer_forward.7} parent=11 // pred_fallthru
        _
      // Predicated region
      $region41: #{transformer_forward.7} parent=11 // pred_check
        %p502 = pneg %p312
      $region42: #{transformer_forward.7} parent=11 // pred_check_branch
        %504 = sbr.rel (%p502) target = $region44
      $region43: #{transformer_forward.7} parent=11 // pred_region
        _
      $region44: #{transformer_forward.7} parent=11 // pred_fallthru
        _
      // Predicated region
      $region45: #{transformer_forward.7} parent=11 // pred_check
        %p505 = pneg %p333
      $region46: #{transformer_forward.7} parent=11 // pred_check_branch
        %507 = sbr.rel (%p505) target = $region48
      $region47: #{transformer_forward.7} parent=11 // pred_region
        _
      $region48: #{transformer_forward.7} parent=11 // pred_fallthru
        _
      // Predicated region
      $region49: #{transformer_forward.7} parent=11 // pred_check
        %p508 = pneg %p354
      $region50: #{transformer_forward.7} parent=11 // pred_check_branch
        %510 = sbr.rel (%p508) target = $region52
      $region51: #{transformer_forward.7} parent=11 // pred_region
        _
      $region52: #{transformer_forward.7} parent=11 // pred_fallthru
        _
      // Predicated region
      $region53: #{transformer_forward.7} parent=11 // pred_check
        %p511 = pneg %p375
      $region54: #{transformer_forward.7} parent=11 // pred_check_branch
        %513 = sbr.rel (%p511) target = $region56
      $region55: #{transformer_forward.7} parent=11 // pred_region
        _
      $region56: #{transformer_forward.7} parent=11 // pred_fallthru
        _
      // Predicated region
      $region57: #{transformer_forward.7} parent=11 // pred_check
        %p514 = pneg %p396
      $region58: #{transformer_forward.7} parent=11 // pred_check_branch
        %516 = sbr.rel (%p514) target = $region60
      $region59: #{transformer_forward.7} parent=11 // pred_region
        _
      $region60: #{transformer_forward.7} parent=11 // pred_fallthru
        _
      // Predicated region
      $region61: #{transformer_forward.7} parent=11 // pred_check
        %p517 = pneg %p417
      $region62: #{transformer_forward.7} parent=11 // pred_check_branch
        %519 = sbr.rel (%p517) target = $region64
      $region63: #{transformer_forward.7} parent=11 // pred_region
        _
      $region64: #{transformer_forward.7} parent=11 // pred_fallthru
        _
      // Predicated region
      $region65: #{transformer_forward.7} parent=11 // pred_check
        %p520 = pneg %p438
      $region66: #{transformer_forward.7} parent=11 // pred_check_branch
        %522 = sbr.rel (%p520) target = $region68
      $region67: #{transformer_forward.7} parent=11 // pred_region
        _
      $region68: #{transformer_forward.7} parent=11 // pred_fallthru
        _
    $region12: #{transformer_forward.7} parent=5 // pred_fallthru
      _
    %p523 = scmp.lt.s32.totalorder %s24, 2
    // Predicated region
    $region69: #{transformer_forward.7} parent=5 // pred_check
      %p524 = pneg %p523
    $region70: #{transformer_forward.7} parent=5 // pred_check_branch
      %526 = sbr.rel (%p524) target = $region72
    $region71: #{transformer_forward.7} parent=5 // pred_region
      // Predicated region
      $region73: #{transformer_forward.7} parent=71 // pred_check
        %p527 = pneg %p58
      $region74: #{transformer_forward.7} parent=71 // pred_check_branch
        %529 = sbr.rel (%p527) target = $region76
      $region75: #{transformer_forward.7} parent=71 // pred_region
        %p530 = scmp.lt.s32.totalorder %s31, 1
        %s531 = scalar_select %p530, %s31, 1
        %p532 = scmp.lt.s32.totalorder %s32, 0
        %s533 = scalar_select %p532, %s32, 0
        %s534 = sadd.s32 %s533, %s531
        %s535 = smul.addr %s534, 4
        %s536 = scalar_lea.vmem %s0, %s535
      $region76: #{transformer_forward.7} parent=71 // pred_fallthru
        _
      // Predicated region
      $region77: #{transformer_forward.7} parent=71 // pred_check
        %p537 = pneg %p84
      $region78: #{transformer_forward.7} parent=71 // pred_check_branch
        %539 = sbr.rel (%p537) target = $region80
      $region79: #{transformer_forward.7} parent=71 // pred_region
        %p540 = scmp.lt.s32.totalorder %s31, 1
        %s541 = scalar_select %p540, %s31, 1
        %s542 = smul.addr %s541, 4
        %s543 = scalar_lea.vmem %s1, %s542
      $region80: #{transformer_forward.7} parent=71 // pred_fallthru
        _
      // Predicated region
      $region81: #{transformer_forward.7} parent=71 // pred_check
        %p544 = pneg %p112
      $region82: #{transformer_forward.7} parent=71 // pred_check_branch
        %546 = sbr.rel (%p544) target = $region84
      $region83: #{transformer_forward.7} parent=71 // pred_region
        %p547 = scmp.lt.s32.totalorder %s31, 1
        %s548 = scalar_select %p547, %s31, 1
        %p549 = scmp.lt.s32.totalorder %s32, 0
        %s550 = scalar_select %p549, %s32, 0
        %s551 = sadd.s32 %s550, %s548
        %s552 = smul.addr %s551, 8
        %s553 = scalar_lea.vmem %s2, %s552
      $region84: #{transformer_forward.7} parent=71 // pred_fallthru
        _
      // Predicated region
      $region85: #{transformer_forward.7} parent=71 // pred_check
        %p554 = pneg %p138
      $region86: #{transformer_forward.7} parent=71 // pred_check_branch
        %556 = sbr.rel (%p554) target = $region88
      $region87: #{transformer_forward.7} parent=71 // pred_region
        %p557 = scmp.lt.s32.totalorder %s31, 1
        %s558 = scalar_select %p557, %s31, 1
        %s559 = scalar_lea.vmem %s3, %s558
      $region88: #{transformer_forward.7} parent=71 // pred_fallthru
        _
    $region72: #{transformer_forward.7} parent=5 // pred_fallthru
      _
    %p560 = scmp.le.s32.totalorder 1, %s24
    %p561 = scmp.lt.s32.totalorder %s24, 3
    %p562 = pnand %p560, %p561
    %p563 = pneg %p562
    // Predicated region
    $region89: #{transformer_forward.7} parent=5 // pred_check
      _
    $region90: #{transformer_forward.7} parent=5 // pred_check_branch
      %565 = sbr.rel (%p562) target = $region92
    $region91: #{transformer_forward.7} parent=5 // pred_region
      %s566 = ssub.s32 %s24, 1
      %p567 = scmp.lt.s32.totalorder %s33, 1
      %s568 = scalar_select %p567, %s33, 1
      %p569 = scmp.lt.s32.totalorder %s34, 0
      %s570 = scalar_select %p569, %s34, 0
      %s571 = sadd.s32 %s570, %s568
      %s572 = smul.addr %s571, 4
      %s573 = scalar_lea.vmem %s0, %s572
      %p574 = pneg %p64
      %p575 = pneg %p61
      %p576 = scmp.lt.s32.totalorder %s33, 1
      %s577 = scalar_select %p576, %s33, 1
      %s578 = smul.addr %s577, 4
      %s579 = scalar_lea.vmem %s1, %s578
      %p580 = pneg %p90
      %p581 = pneg %p87
      %p582 = scmp.lt.s32.totalorder %s33, 1
      %s583 = scalar_select %p582, %s33, 1
      %p584 = scmp.lt.s32.totalorder %s34, 0
      %s585 = scalar_select %p584, %s34, 0
      %s586 = sadd.s32 %s585, %s583
      %s587 = smul.addr %s586, 8
      %s588 = scalar_lea.vmem %s2, %s587
      %p589 = pneg %p118
      %p590 = pneg %p115
      %p591 = scmp.lt.s32.totalorder %s33, 1
      %s592 = scalar_select %p591, %s33, 1
      %s593 = scalar_lea.vmem %s3, %s592
      %p594 = pneg %p144
      %p595 = pneg %p141
      %p596 = pneg %p165
      %p597 = pneg %p162
      %p598 = pneg %p186
      %p599 = pneg %p183
      %p600 = pneg %p207
      %p601 = pneg %p204
      %p602 = pneg %p228
      %p603 = pneg %p225
      %p604 = pneg %p249
      %p605 = pneg %p246
      %p606 = pneg %p270
      %p607 = pneg %p267
      %p608 = pneg %p291
      %p609 = pneg %p288
      %p610 = pneg %p312
      %p611 = pneg %p309
      %p612 = pneg %p333
      %p613 = pneg %p330
      %p614 = pneg %p354
      %p615 = pneg %p351
      %p616 = pneg %p375
      %p617 = pneg %p372
      %p618 = pneg %p396
      %p619 = pneg %p393
      %p620 = pneg %p417
      %p621 = pneg %p414
      %p622 = pneg %p438
      %p623 = pneg %p435
      %p624 = pneg %p466
      %p625 = pneg %p463
      %p626 = scmp.lt.s32.totalorder %s33, 1
      %s627 = scalar_select %p626, %s33, 1
      %p628 = scmp.lt.s32.totalorder %s34, 0
      %s629 = scalar_select %p628, %s34, 0
      %s630 = sadd.s32 %s629, %s627
      %s631 = smul.addr %s630, 4
      %s632 = scalar_lea.vmem %s18, %s631
      %p633 = scmp.lt.s32.totalorder %s33, 1
      %s634 = scalar_select %p633, %s33, 1
      %p635 = scmp.lt.s32.totalorder %s34, 0
      %s636 = scalar_select %p635, %s34, 0
      %s637 = sadd.s32 %s636, %s634
      %s638 = smul.addr %s637, 4
      %s639 = scalar_lea.vmem %s0, %s638
      %p640 = scmp.lt.s32.totalorder %s33, 1
      %s641 = scalar_select %p640, %s33, 1
      %s642 = smul.addr %s641, 4
      %s643 = scalar_lea.vmem %s1, %s642
      %p644 = scmp.lt.s32.totalorder %s33, 1
      %s645 = scalar_select %p644, %s33, 1
      %p646 = scmp.lt.s32.totalorder %s34, 0
      %s647 = scalar_select %p646, %s34, 0
      %s648 = sadd.s32 %s647, %s645
      %s649 = smul.addr %s648, 8
      %s650 = scalar_lea.vmem %s2, %s649
      %p651 = scmp.lt.s32.totalorder %s33, 1
      %s652 = scalar_select %p651, %s33, 1
      %s653 = scalar_lea.vmem %s3, %s652
      %p654 = scmp.lt.s32.totalorder %s33, 1
      %s655 = scalar_select %p654, %s33, 1
      %p656 = scmp.lt.s32.totalorder %s34, 0
      %s657 = scalar_select %p656, %s34, 0
      %s658 = sadd.s32 %s657, %s655
      %s659 = smul.addr %s658, 4
      %s660 = scalar_lea.vmem %s18, %s659
      %p662 = scmp.eq.s32.totalorder %s34, 0
      // Predicated region
      $region93: #{transformer_forward.7} parent=91 // pred_check
        %p663 = pneg %p662
      $region94: #{transformer_forward.7} parent=91 // pred_check_branch
        %665 = sbr.rel (%p663) target = $region96
      $region95: #{transformer_forward.7} parent=91 // pred_region
        %v666 = vld [vmem:[%s643] sm:$0xf]
        %v667 = vld [vmem:[%s6] sm:$0xf]
        %v668 = vld [vmem:[%s6 + $0x4] sm:$0xf]
        %v669 = vld [vmem:[%s6 + $0x8] sm:$0xf]
        %v670 = vld [vmem:[%s6 + $0xc] sm:$0xf]
        %v671 = vld [vmem:[%s7] sm:$0x1]
        %v673 = vlaneseq
        %v674 = vshrl.u32 %v673, 7
        %v675 = vsub.s32 0, %v674
        %v676 = vrot.slane %v671, %v675
        %v682 = vunpack.c.l.b16 %v667
        %v683 = vunpack.c.l.b16 %v668
        %v684 = vunpack.c.l.b16 %v669
        %v685 = vunpack.c.l.b16 %v670
        %v686 = vpack.c.b16 %v683, %v682
        %v687 = vpack.c.b16 %v685, %v684
        %vm690 = vcmask 261120
        %v692 = vsel %vm690, %v666, 0
        %694 = vmatprep.subr.bf16.mxu0 0
        %695 = vmatpush1.bf16.msra.mxu0 %v686
        %696 = vmatprep.subr.bf16.mxu0 0
        %697 = vmatpush1.bf16.msra.mxu0 %v687
        %698 = vmatprep.subr.bf16.mxu0 0
        %699 = vmatpush1.bf16.msra.mxu0 0
        %700 = vmatprep.subr.bf16.mxu0 0
        %701 = vmatpush1.bf16.msra.mxu0 0
        %702 = vmatprep.subr.bf16.mxu0 0
        %703 = vmatpush1.bf16.msra.mxu0 0
        %704 = vmatprep.subr.bf16.mxu0 0
        %705 = vmatpush1.bf16.msra.mxu0 0
        %706 = vmatprep.subr.bf16.mxu0 0
        %707 = vmatpush1.bf16.msra.mxu0 0
        %708 = vmatprep.subr.bf16.mxu0 0
        %709 = vmatpush1.bf16.msra.mxu0 0
        %710 = vmatprep.subr.bf16.mxu0 0
        %711 = vmatpush1.bf16.msra.mxu0 0
        %712 = vmatprep.subr.bf16.mxu0 0
        %713 = vmatpush1.bf16.msra.mxu0 0
        %714 = vmatprep.subr.bf16.mxu0 0
        %715 = vmatpush1.bf16.msra.mxu0 0
        %716 = vmatprep.subr.bf16.mxu0 0
        %717 = vmatpush1.bf16.msra.mxu0 0
        %718 = vmatprep.subr.bf16.mxu0 0
        %719 = vmatpush1.bf16.msra.mxu0 0
        %720 = vmatprep.subr.bf16.mxu0 0
        %721 = vmatpush1.bf16.msra.mxu0 0
        %722 = vmatprep.subr.bf16.mxu0 0
        %723 = vmatpush1.bf16.msra.mxu0 0
        %724 = vmatprep.subr.bf16.mxu0 0
        %725 = vmatpush1.bf16.msra.mxu0 0
        %726 = vmatprep.mubr.bf16.mxu0 0
        %727 = vmatmul.mubr.bf16.gmra.mrb[0].mxu0 %v692
        %v728 = vpop.f32.mrb[0].mxu0
        %v729 = vadd.f32 %v676, %v728
        %v730 = vpop.f32.mrb[0].mxu0
        %v731 = vpop.f32.mrb[0].mxu0
        %v732 = vpop.f32.mrb[0].mxu0
        %733 = vdwg.mxu0
        %v734 = vpack.c.bf16 %v729, %v729
        %vm735 = vcmask 519168
        %736 = vst.msk [vmem:[#allocation2] sm:$0xf] %vm735, %v734
      $region96: #{transformer_forward.7} parent=91 // pred_fallthru
        _
      %v737 = vld [vmem:[%s639] sm:$0xf]
      %v738 = vld [vmem:[%s4] sm:$0xf]
      %v739 = vld [vmem:[%s4 + $0x4] sm:$0xf]
      %v740 = vld [vmem:[%s4 + $0x8] sm:$0xf]
      %v741 = vld [vmem:[%s4 + $0xc] sm:$0xf]
      %v742 = vld [vmem:[%s5] sm:$0x1]
      %v744 = vlaneseq
      %v745 = vshrl.u32 %v744, 7
      %v746 = vsub.s32 0, %v745
      %v747 = vrot.slane %v742, %v746
      %v753 = vunpack.c.l.b16 %v738
      %v754 = vunpack.c.l.b16 %v739
      %v755 = vunpack.c.l.b16 %v740
      %v756 = vunpack.c.l.b16 %v741
      %v757 = vpack.c.b16 %v754, %v753
      %v758 = vpack.c.b16 %v756, %v755
      %vm761 = vcmask 261120
      %v763 = vsel %vm761, %v737, 0
      %765 = vmatprep.subr.bf16.mxu0 0
      %766 = vmatpush1.bf16.msra.mxu0 %v757
      %767 = vmatprep.subr.bf16.mxu0 0
      %768 = vmatpush1.bf16.msra.mxu0 %v758
      %769 = vmatprep.subr.bf16.mxu0 0
      %770 = vmatpush1.bf16.msra.mxu0 0
      %771 = vmatprep.subr.bf16.mxu0 0
      %772 = vmatpush1.bf16.msra.mxu0 0
      %773 = vmatprep.subr.bf16.mxu0 0
      %774 = vmatpush1.bf16.msra.mxu0 0
      %775 = vmatprep.subr.bf16.mxu0 0
      %776 = vmatpush1.bf16.msra.mxu0 0
      %777 = vmatprep.subr.bf16.mxu0 0
      %778 = vmatpush1.bf16.msra.mxu0 0
      %779 = vmatprep.subr.bf16.mxu0 0
      %780 = vmatpush1.bf16.msra.mxu0 0
      %781 = vmatprep.subr.bf16.mxu0 0
      %782 = vmatpush1.bf16.msra.mxu0 0
      %783 = vmatprep.subr.bf16.mxu0 0
      %784 = vmatpush1.bf16.msra.mxu0 0
      %785 = vmatprep.subr.bf16.mxu0 0
      %786 = vmatpush1.bf16.msra.mxu0 0
      %787 = vmatprep.subr.bf16.mxu0 0
      %788 = vmatpush1.bf16.msra.mxu0 0
      %789 = vmatprep.subr.bf16.mxu0 0
      %790 = vmatpush1.bf16.msra.mxu0 0
      %791 = vmatprep.subr.bf16.mxu0 0
      %792 = vmatpush1.bf16.msra.mxu0 0
      %793 = vmatprep.subr.bf16.mxu0 0
      %794 = vmatpush1.bf16.msra.mxu0 0
      %795 = vmatprep.subr.bf16.mxu0 0
      %796 = vmatpush1.bf16.msra.mxu0 0
      %797 = vmatprep.mubr.bf16.mxu0 0
      %798 = vmatmul.mubr.bf16.gmra.mrb[0].mxu0 %v763
      %v799 = vpop.f32.mrb[0].mxu0
      %v800 = vadd.f32 %v747, %v799
      %v801 = vpop.f32.mrb[0].mxu0
      %v802 = vpop.f32.mrb[0].mxu0
      %v803 = vpop.f32.mrb[0].mxu0
      %804 = vdwg.mxu0
      %v805 = vld [vmem:[%s650] sm:$0xff]
      %v806 = vld [vmem:[%s653] sm:$0x1]
      %807 = vset.pattern.permute.xlu0 0
      %808 = vperm.xlu0 %807, %v805
      %v809 = vpop.permute.xlu0 %808
      %v810 = vlaneseq
      %v811 = vshrl.u32 %v810, 7
      %v812 = vsub.s32 0, %v811
      %v813 = vrot.slane %v806, %v812
      %v814 = vmul.u32 %v809, %v813
      %vm815 = vcmp.ne.s32.totalorder %v814, 0
      %v816 = vsel %vm815, 0.0, -1e+09
      %v817 = vld [vmem:[#allocation2] sm:$0xf]
      %v818 = vpack.c.bf16 %v800, %v800
      %vm819 = vcmask 64512
      %v821 = vsel %vm819, %v818, 0
      %v824 = vsel %vm819, %v817, 0
      %826 = vmatprep.subr.bf16.mxu0 0
      %827 = vmatpush1.bf16.xpose.msra.mxu0 %v824
      %828 = vmatprep.subr.bf16.mxu0 0
      %829 = vmatpush1.bf16.xpose.msra.mxu0 0
      %830 = vmatprep.subr.bf16.mxu0 0
      %831 = vmatpush1.bf16.xpose.msra.mxu0 0
      %832 = vmatprep.subr.bf16.mxu0 0
      %833 = vmatpush1.bf16.xpose.msra.mxu0 0
      %834 = vmatprep.subr.bf16.mxu0 0
      %835 = vmatpush1.bf16.xpose.msra.mxu0 0
      %836 = vmatprep.subr.bf16.mxu0 0
      %837 = vmatpush1.bf16.xpose.msra.mxu0 0
      %838 = vmatprep.subr.bf16.mxu0 0
      %839 = vmatpush1.bf16.xpose.msra.mxu0 0
      %840 = vmatprep.subr.bf16.mxu0 0
      %841 = vmatpush1.bf16.xpose.msra.mxu0 0
      %842 = vmatprep.subr.bf16.mxu0 0
      %843 = vmatpush1.bf16.xpose.msra.mxu0 0
      %844 = vmatprep.subr.bf16.mxu0 0
      %845 = vmatpush1.bf16.xpose.msra.mxu0 0
      %846 = vmatprep.subr.bf16.mxu0 0
      %847 = vmatpush1.bf16.xpose.msra.mxu0 0
      %848 = vmatprep.subr.bf16.mxu0 0
      %849 = vmatpush1.bf16.xpose.msra.mxu0 0
      %850 = vmatprep.subr.bf16.mxu0 0
      %851 = vmatpush1.bf16.xpose.msra.mxu0 0
      %852 = vmatprep.subr.bf16.mxu0 0
      %853 = vmatpush1.bf16.xpose.msra.mxu0 0
      %854 = vmatprep.subr.bf16.mxu0 0
      %855 = vmatpush1.bf16.xpose.msra.mxu0 0
      %856 = vmatprep.subr.bf16.mxu0 0
      %857 = vmatpush1.bf16.xpose.msra.mxu0 0
      %858 = vmatprep.mubr.bf16.mxu0 0
      %859 = vmatmul.mubr.bf16.gmra.mrb[0].mxu0 %v821
      %v860 = vpop.f32.mrb[0].mxu0
      %v861 = vadd.f32 0.0, %v860
      %v862 = vpop.f32.mrb[0].mxu0
      %v863 = vpop.f32.mrb[0].mxu0
      %v864 = vpop.f32.mrb[0].mxu0
      %865 = vdwg.mxu0
      %v866 = vmul.f32 %v861, 0.35355338
      %v867 = vadd.f32 %v866, %v816
      %v868 = vsel %vm819, %v867, -inf
      %869 = vmax.xlane.f32.xlu0 %v868
      %v870 = vpop.xlane.xlu0 %869
      %v871 = vsub.f32 %v867, %v870
      %v872 = vmul.f32 %v871, 1.442695
      %v873 = vpow.pop %v872
      %v874 = vsel %vm819, %v873, 0.0
      %875 = vadd.xlane.f32.xlu0 %v874
      %v876 = vpop.xlane.xlu0 %875
      %v877 = vrcp.pop %v876
      %v878 = vmul.f32 %v873, %v877
      %v879 = vpack.c.bf16 %v878, %v878
      %v881 = vunpack.c.l.b16 %v817
      %v882 = vpack.c.b16 %v881, %v881
      %883 = vrot.lane.b32.xlu0 %v882, 96
      %v884 = vpop.permute.xlu0 %883
      %v886 = vsel %vm819, %v879, 0
      %vm888 = vcmask 1043456
      %v890 = vsel %vm888, %v884, 0
      %892 = vmatprep.subr.bf16.mxu0 0
      %893 = vmatpush1.bf16.msra.mxu0 %v890
      %894 = vmatprep.subr.bf16.mxu0 0
      %895 = vmatpush1.bf16.msra.mxu0 0
      %896 = vmatprep.subr.bf16.mxu0 0
      %897 = vmatpush1.bf16.msra.mxu0 0
      %898 = vmatprep.subr.bf16.mxu0 0
      %899 = vmatpush1.bf16.msra.mxu0 0
      %900 = vmatprep.subr.bf16.mxu0 0
      %901 = vmatpush1.bf16.msra.mxu0 0
      %902 = vmatprep.subr.bf16.mxu0 0
      %903 = vmatpush1.bf16.msra.mxu0 0
      %904 = vmatprep.subr.bf16.mxu0 0
      %905 = vmatpush1.bf16.msra.mxu0 0
      %906 = vmatprep.subr.bf16.mxu0 0
      %907 = vmatpush1.bf16.msra.mxu0 0
      %908 = vmatprep.subr.bf16.mxu0 0
      %909 = vmatpush1.bf16.msra.mxu0 0
      %910 = vmatprep.subr.bf16.mxu0 0
      %911 = vmatpush1.bf16.msra.mxu0 0
      %912 = vmatprep.subr.bf16.mxu0 0
      %913 = vmatpush1.bf16.msra.mxu0 0
      %914 = vmatprep.subr.bf16.mxu0 0
      %915 = vmatpush1.bf16.msra.mxu0 0
      %916 = vmatprep.subr.bf16.mxu0 0
      %917 = vmatpush1.bf16.msra.mxu0 0
      %918 = vmatprep.subr.bf16.mxu0 0
      %919 = vmatpush1.bf16.msra.mxu0 0
      %920 = vmatprep.subr.bf16.mxu0 0
      %921 = vmatpush1.bf16.msra.mxu0 0
      %922 = vmatprep.subr.bf16.mxu0 0
      %923 = vmatpush1.bf16.msra.mxu0 0
      %924 = vmatprep.mubr.bf16.mxu0 0
      %925 = vmatmul.mubr.bf16.gmra.mrb[0].mxu0 %v886
      %v926 = vpop.f32.mrb[0].mxu0
      %v927 = vadd.f32 0.0, %v926
      %v928 = vpop.f32.mrb[0].mxu0
      %v929 = vpop.f32.mrb[0].mxu0
      %v930 = vpop.f32.mrb[0].mxu0
      %931 = vdwg.mxu0
      %932 = vst.msk [vmem:[#allocation3] sm:$0xff] %vm819, %v927
      %934 = vrot.lane.b32.xlu0 %v818, 120
      %v935 = vpop.permute.xlu0 %934
      %936 = vrot.lane.b32.xlu0 %v882, 120
      %v937 = vpop.permute.xlu0 %936
      %v939 = vsel %vm819, %v935, 0
      %v942 = vsel %vm819, %v937, 0
      %944 = vmatprep.subr.bf16.mxu0 0
      %945 = vmatpush1.bf16.xpose.msra.mxu0 %v942
      %946 = vmatprep.subr.bf16.mxu0 0
      %947 = vmatpush1.bf16.xpose.msra.mxu0 0
      %948 = vmatprep.subr.bf16.mxu0 0
      %949 = vmatpush1.bf16.xpose.msra.mxu0 0
      %950 = vmatprep.subr.bf16.mxu0 0
      %951 = vmatpush1.bf16.xpose.msra.mxu0 0
      %952 = vmatprep.subr.bf16.mxu0 0
      %953 = vmatpush1.bf16.xpose.msra.mxu0 0
      %954 = vmatprep.subr.bf16.mxu0 0
      %955 = vmatpush1.bf16.xpose.msra.mxu0 0
      %956 = vmatprep.subr.bf16.mxu0 0
      %957 = vmatpush1.bf16.xpose.msra.mxu0 0
      %958 = vmatprep.subr.bf16.mxu0 0
      %959 = vmatpush1.bf16.xpose.msra.mxu0 0
      %960 = vmatprep.subr.bf16.mxu0 0
      %961 = vmatpush1.bf16.xpose.msra.mxu0 0
      %962 = vmatprep.subr.bf16.mxu0 0
      %963 = vmatpush1.bf16.xpose.msra.mxu0 0
      %964 = vmatprep.subr.bf16.mxu0 0
      %965 = vmatpush1.bf16.xpose.msra.mxu0 0
      %966 = vmatprep.subr.bf16.mxu0 0
      %967 = vmatpush1.bf16.xpose.msra.mxu0 0
      %968 = vmatprep.subr.bf16.mxu0 0
      %969 = vmatpush1.bf16.xpose.msra.mxu0 0
      %970 = vmatprep.subr.bf16.mxu0 0
      %971 = vmatpush1.bf16.xpose.msra.mxu0 0
      %972 = vmatprep.subr.bf16.mxu0 0
      %973 = vmatpush1.bf16.xpose.msra.mxu0 0
      %974 = vmatprep.subr.bf16.mxu0 0
      %975 = vmatpush1.bf16.xpose.msra.mxu0 0
      %976 = vmatprep.mubr.bf16.mxu0 0
      %977 = vmatmul.mubr.bf16.gmra.mrb[0].mxu0 %v939
      %v978 = vpop.f32.mrb[0].mxu0
      %v979 = vadd.f32 0.0, %v978
      %v980 = vpop.f32.mrb[0].mxu0
      %v981 = vpop.f32.mrb[0].mxu0
      %v982 = vpop.f32.mrb[0].mxu0
      %983 = vdwg.mxu0
      %v984 = vmul.f32 %v979, 0.35355338
      %v985 = vadd.f32 %v984, %v816
      %v986 = vsel %vm819, %v985, -inf
      %987 = vmax.xlane.f32.xlu0 %v986
      %v988 = vpop.xlane.xlu0 %987
      %v989 = vsub.f32 %v985, %v988
      %v990 = vmul.f32 %v989, 1.442695
      %v991 = vpow.pop %v990
      %v992 = vsel %vm819, %v991, 0.0
      %993 = vadd.xlane.f32.xlu0 %v992
      %v994 = vpop.xlane.xlu0 %993
      %v995 = vrcp.pop %v994
      %v996 = vmul.f32 %v991, %v995
      %v997 = vpack.c.bf16 %v996, %v996
      %998 = vrot.lane.b32.xlu0 %v882, 88
      %v999 = vpop.permute.xlu0 %998
      %v1001 = vsel %vm819, %v997, 0
      %v1004 = vsel %vm888, %v999, 0
      %1006 = vmatprep.subr.bf16.mxu0 0
      %1007 = vmatpush1.bf16.msra.mxu0 %v1004
      %1008 = vmatprep.subr.bf16.mxu0 0
      %1009 = vmatpush1.bf16.msra.mxu0 0
      %1010 = vmatprep.subr.bf16.mxu0 0
      %1011 = vmatpush1.bf16.msra.mxu0 0
      %1012 = vmatprep.subr.bf16.mxu0 0
      %1013 = vmatpush1.bf16.msra.mxu0 0
      %1014 = vmatprep.subr.bf16.mxu0 0
      %1015 = vmatpush1.bf16.msra.mxu0 0
      %1016 = vmatprep.subr.bf16.mxu0 0
      %1017 = vmatpush1.bf16.msra.mxu0 0
      %1018 = vmatprep.subr.bf16.mxu0 0
      %1019 = vmatpush1.bf16.msra.mxu0 0
      %1020 = vmatprep.subr.bf16.mxu0 0
      %1021 = vmatpush1.bf16.msra.mxu0 0
      %1022 = vmatprep.subr.bf16.mxu0 0
      %1023 = vmatpush1.bf16.msra.mxu0 0
      %1024 = vmatprep.subr.bf16.mxu0 0
      %1025 = vmatpush1.bf16.msra.mxu0 0
      %1026 = vmatprep.subr.bf16.mxu0 0
      %1027 = vmatpush1.bf16.msra.mxu0 0
      %1028 = vmatprep.subr.bf16.mxu0 0
      %1029 = vmatpush1.bf16.msra.mxu0 0
      %1030 = vmatprep.subr.bf16.mxu0 0
      %1031 = vmatpush1.bf16.msra.mxu0 0
      %1032 = vmatprep.subr.bf16.mxu0 0
      %1033 = vmatpush1.bf16.msra.mxu0 0
      %1034 = vmatprep.subr.bf16.mxu0 0
      %1035 = vmatpush1.bf16.msra.mxu0 0
      %1036 = vmatprep.subr.bf16.mxu0 0
      %1037 = vmatpush1.bf16.msra.mxu0 0
      %1038 = vmatprep.mubr.bf16.mxu0 0
      %1039 = vmatmul.mubr.bf16.gmra.mrb[0].mxu0 %v1001
      %v1040 = vpop.f32.mrb[0].mxu0
      %v1041 = vadd.f32 0.0, %v1040
      %v1042 = vpop.f32.mrb[0].mxu0
      %v1043 = vpop.f32.mrb[0].mxu0
      %v1044 = vpop.f32.mrb[0].mxu0
      %1045 = vdwg.mxu0
      %1047 = vrot.lane.b32.xlu0 %v1041, 8
      %v1048 = vpop.permute.xlu0 %1047
      %vm1050 = vcmask 130112
      %1051 = vst.msk [vmem:[#allocation3] sm:$0xff] %vm1050, %v1048
      %1052 = vrot.lane.b32.xlu0 %v818, 112
      %v1053 = vpop.permute.xlu0 %1052
      %1054 = vrot.lane.b32.xlu0 %v882, 112
      %v1055 = vpop.permute.xlu0 %1054
      %v1057 = vsel %vm819, %v1053, 0
      %v1060 = vsel %vm819, %v1055, 0
      %1062 = vmatprep.subr.bf16.mxu0 0
      %1063 = vmatpush1.bf16.xpose.msra.mxu0 %v1060
      %1064 = vmatprep.subr.bf16.mxu0 0
      %1065 = vmatpush1.bf16.xpose.msra.mxu0 0
      %1066 = vmatprep.subr.bf16.mxu0 0
      %1067 = vmatpush1.bf16.xpose.msra.mxu0 0
      %1068 = vmatprep.subr.bf16.mxu0 0
      %1069 = vmatpush1.bf16.xpose.msra.mxu0 0
      %1070 = vmatprep.subr.bf16.mxu0 0
      %1071 = vmatpush1.bf16.xpose.msra.mxu0 0
      %1072 = vmatprep.subr.bf16.mxu0 0
      %1073 = vmatpush1.bf16.xpose.msra.mxu0 0
      %1074 = vmatprep.subr.bf16.mxu0 0
      %1075 = vmatpush1.bf16.xpose.msra.mxu0 0
      %1076 = vmatprep.subr.bf16.mxu0 0
      %1077 = vmatpush1.bf16.xpose.msra.mxu0 0
      %1078 = vmatprep.subr.bf16.mxu0 0
      %1079 = vmatpush1.bf16.xpose.msra.mxu0 0
      %1080 = vmatprep.subr.bf16.mxu0 0
      %1081 = vmatpush1.bf16.xpose.msra.mxu0 0
      %1082 = vmatprep.subr.bf16.mxu0 0
      %1083 = vmatpush1.bf16.xpose.msra.mxu0 0
      %1084 = vmatprep.subr.bf16.mxu0 0
      %1085 = vmatpush1.bf16.xpose.msra.mxu0 0
      %1086 = vmatprep.subr.bf16.mxu0 0
      %1087 = vmatpush1.bf16.xpose.msra.mxu0 0
      %1088 = vmatprep.subr.bf16.mxu0 0
      %1089 = vmatpush1.bf16.xpose.msra.mxu0 0
      %1090 = vmatprep.subr.bf16.mxu0 0
      %1091 = vmatpush1.bf16.xpose.msra.mxu0 0
      %1092 = vmatprep.subr.bf16.mxu0 0
      %1093 = vmatpush1.bf16.xpose.msra.mxu0 0
      %1094 = vmatprep.mubr.bf16.mxu0 0
      %1095 = vmatmul.mubr.bf16.gmra.mrb[0].mxu0 %v1057
      %v1096 = vpop.f32.mrb[0].mxu0
      %v1097 = vadd.f32 0.0, %v1096
      %v1098 = vpop.f32.mrb[0].mxu0
      %v1099 = vpop.f32.mrb[0].mxu0
      %v1100 = vpop.f32.mrb[0].mxu0
      %1101 = vdwg.mxu0
      %v1102 = vmul.f32 %v1097, 0.35355338
      %v1103 = vadd.f32 %v1102, %v816
      %v1104 = vsel %vm819, %v1103, -inf
      %1105 = vmax.xlane.f32.xlu0 %v1104
      %v1106 = vpop.xlane.xlu0 %1105
      %v1107 = vsub.f32 %v1103, %v1106
      %v1108 = vmul.f32 %v1107, 1.442695
      %v1109 = vpow.pop %v1108
      %v1110 = vsel %vm819, %v1109, 0.0
      %1111 = vadd.xlane.f32.xlu0 %v1110
      %v1112 = vpop.xlane.xlu0 %1111
      %v1113 = vrcp.pop %v1112
      %v1114 = vmul.f32 %v1109, %v1113
      %v1115 = vpack.c.bf16 %v1114, %v1114
      %1116 = vrot.lane.b32.xlu0 %v882, 80
      %v1117 = vpop.permute.xlu0 %1116
      %v1119 = vsel %vm819, %v1115, 0
      %v1122 = vsel %vm888, %v1117, 0
      %1124 = vmatprep.subr.bf16.mxu0 0
      %1125 = vmatpush1.bf16.msra.mxu0 %v1122
      %1126 = vmatprep.subr.bf16.mxu0 0
      %1127 = vmatpush1.bf16.msra.mxu0 0
      %1128 = vmatprep.subr.bf16.mxu0 0
      %1129 = vmatpush1.bf16.msra.mxu0 0
      %1130 = vmatprep.subr.bf16.mxu0 0
      %1131 = vmatpush1.bf16.msra.mxu0 0
      %1132 = vmatprep.subr.bf16.mxu0 0
      %1133 = vmatpush1.bf16.msra.mxu0 0
      %1134 = vmatprep.subr.bf16.mxu0 0
      %1135 = vmatpush1.bf16.msra.mxu0 0
      %1136 = vmatprep.subr.bf16.mxu0 0
      %1137 = vmatpush1.bf16.msra.mxu0 0
      %1138 = vmatprep.subr.bf16.mxu0 0
      %1139 = vmatpush1.bf16.msra.mxu0 0
      %1140 = vmatprep.subr.bf16.mxu0 0
      %1141 = vmatpush1.bf16.msra.mxu0 0
      %1142 = vmatprep.subr.bf16.mxu0 0
      %1143 = vmatpush1.bf16.msra.mxu0 0
      %1144 = vmatprep.subr.bf16.mxu0 0
      %1145 = vmatpush1.bf16.msra.mxu0 0
      %1146 = vmatprep.subr.bf16.mxu0 0
      %1147 = vmatpush1.bf16.msra.mxu0 0
      %1148 = vmatprep.subr.bf16.mxu0 0
      %1149 = vmatpush1.bf16.msra.mxu0 0
      %1150 = vmatprep.subr.bf16.mxu0 0
      %1151 = vmatpush1.bf16.msra.mxu0 0
      %1152 = vmatprep.subr.bf16.mxu0 0
      %1153 = vmatpush1.bf16.msra.mxu0 0
      %1154 = vmatprep.subr.bf16.mxu0 0
      %1155 = vmatpush1.bf16.msra.mxu0 0
      %1156 = vmatprep.mubr.bf16.mxu0 0
      %1157 = vmatmul.mubr.bf16.gmra.mrb[0].mxu0 %v1119
      %v1158 = vpop.f32.mrb[0].mxu0
      %v1159 = vadd.f32 0.0, %v1158
      %v1160 = vpop.f32.mrb[0].mxu0
      %v1161 = vpop.f32.mrb[0].mxu0
      %v1162 = vpop.f32.mrb[0].mxu0
      %1163 = vdwg.mxu0
      %1165 = vrot.lane.b32.xlu0 %v1159, 16
      %v1166 = vpop.permute.xlu0 %1165
      %vm1168 = vcmask 195712
      %1169 = vst.msk [vmem:[#allocation3] sm:$0xff] %vm1168, %v1166
      %1170 = vrot.lane.b32.xlu0 %v818, 104
      %v1171 = vpop.permute.xlu0 %1170
      %1172 = vrot.lane.b32.xlu0 %v882, 104
      %v1173 = vpop.permute.xlu0 %1172
      %v1175 = vsel %vm819, %v1171, 0
      %v1178 = vsel %vm819, %v1173, 0
      %1180 = vmatprep.subr.bf16.mxu0 0
      %1181 = vmatpush1.bf16.xpose.msra.mxu0 %v1178
      %1182 = vmatprep.subr.bf16.mxu0 0
      %1183 = vmatpush1.bf16.xpose.msra.mxu0 0
      %1184 = vmatprep.subr.bf16.mxu0 0
      %1185 = vmatpush1.bf16.xpose.msra.mxu0 0
      %1186 = vmatprep.subr.bf16.mxu0 0
      %1187 = vmatpush1.bf16.xpose.msra.mxu0 0
      %1188 = vmatprep.subr.bf16.mxu0 0
      %1189 = vmatpush1.bf16.xpose.msra.mxu0 0
      %1190 = vmatprep.subr.bf16.mxu0 0
      %1191 = vmatpush1.bf16.xpose.msra.mxu0 0
      %1192 = vmatprep.subr.bf16.mxu0 0
      %1193 = vmatpush1.bf16.xpose.msra.mxu0 0
      %1194 = vmatprep.subr.bf16.mxu0 0
      %1195 = vmatpush1.bf16.xpose.msra.mxu0 0
      %1196 = vmatprep.subr.bf16.mxu0 0
      %1197 = vmatpush1.bf16.xpose.msra.mxu0 0
      %1198 = vmatprep.subr.bf16.mxu0 0
      %1199 = vmatpush1.bf16.xpose.msra.mxu0 0
      %1200 = vmatprep.subr.bf16.mxu0 0
      %1201 = vmatpush1.bf16.xpose.msra.mxu0 0
      %1202 = vmatprep.subr.bf16.mxu0 0
      %1203 = vmatpush1.bf16.xpose.msra.mxu0 0
      %1204 = vmatprep.subr.bf16.mxu0 0
      %1205 = vmatpush1.bf16.xpose.msra.mxu0 0
      %1206 = vmatprep.subr.bf16.mxu0 0
      %1207 = vmatpush1.bf16.xpose.msra.mxu0 0
      %1208 = vmatprep.subr.bf16.mxu0 0
      %1209 = vmatpush1.bf16.xpose.msra.mxu0 0
      %1210 = vmatprep.subr.bf16.mxu0 0
      %1211 = vmatpush1.bf16.xpose.msra.mxu0 0
      %1212 = vmatprep.mubr.bf16.mxu0 0
      %1213 = vmatmul.mubr.bf16.gmra.mrb[0].mxu0 %v1175
      %v1214 = vpop.f32.mrb[0].mxu0
      %v1215 = vadd.f32 0.0, %v1214
      %v1216 = vpop.f32.mrb[0].mxu0
      %v1217 = vpop.f32.mrb[0].mxu0
      %v1218 = vpop.f32.mrb[0].mxu0
      %1219 = vdwg.mxu0
      %v1220 = vmul.f32 %v1215, 0.35355338
      %v1221 = vadd.f32 %v1220, %v816
      %v1222 = vsel %vm819, %v1221, -inf
      %1223 = vmax.xlane.f32.xlu0 %v1222
      %v1224 = vpop.xlane.xlu0 %1223
      %v1225 = vsub.f32 %v1221, %v1224
      %v1226 = vmul.f32 %v1225, 1.442695
      %v1227 = vpow.pop %v1226
      %v1228 = vsel %vm819, %v1227, 0.0
      %1229 = vadd.xlane.f32.xlu0 %v1228
      %v1230 = vpop.xlane.xlu0 %1229
      %v1231 = vrcp.pop %v1230
      %v1232 = vmul.f32 %v1227, %v1231
      %v1233 = vpack.c.bf16 %v1232, %v1232
      %1234 = vrot.lane.b32.xlu0 %v882, 72
      %v1235 = vpop.permute.xlu0 %1234
      %v1237 = vsel %vm819, %v1233, 0
      %v1240 = vsel %vm888, %v1235, 0
      %1242 = vmatprep.subr.bf16.mxu0 0
      %1243 = vmatpush1.bf16.msra.mxu0 %v1240
      %1244 = vmatprep.subr.bf16.mxu0 0
      %1245 = vmatpush1.bf16.msra.mxu0 0
      %1246 = vmatprep.subr.bf16.mxu0 0
      %1247 = vmatpush1.bf16.msra.mxu0 0
      %1248 = vmatprep.subr.bf16.mxu0 0
      %1249 = vmatpush1.bf16.msra.mxu0 0
      %1250 = vmatprep.subr.bf16.mxu0 0
      %1251 = vmatpush1.bf16.msra.mxu0 0
      %1252 = vmatprep.subr.bf16.mxu0 0
      %1253 = vmatpush1.bf16.msra.mxu0 0
      %1254 = vmatprep.subr.bf16.mxu0 0
      %1255 = vmatpush1.bf16.msra.mxu0 0
      %1256 = vmatprep.subr.bf16.mxu0 0
      %1257 = vmatpush1.bf16.msra.mxu0 0
      %1258 = vmatprep.subr.bf16.mxu0 0
      %1259 = vmatpush1.bf16.msra.mxu0 0
      %1260 = vmatprep.subr.bf16.mxu0 0
      %1261 = vmatpush1.bf16.msra.mxu0 0
      %1262 = vmatprep.subr.bf16.mxu0 0
      %1263 = vmatpush1.bf16.msra.mxu0 0
      %1264 = vmatprep.subr.bf16.mxu0 0
      %1265 = vmatpush1.bf16.msra.mxu0 0
      %1266 = vmatprep.subr.bf16.mxu0 0
      %1267 = vmatpush1.bf16.msra.mxu0 0
      %1268 = vmatprep.subr.bf16.mxu0 0
      %1269 = vmatpush1.bf16.msra.mxu0 0
      %1270 = vmatprep.subr.bf16.mxu0 0
      %1271 = vmatpush1.bf16.msra.mxu0 0
      %1272 = vmatprep.subr.bf16.mxu0 0
      %1273 = vmatpush1.bf16.msra.mxu0 0
      %1274 = vmatprep.mubr.bf16.mxu0 0
      %1275 = vmatmul.mubr.bf16.gmra.mrb[0].mxu0 %v1237
      %v1276 = vpop.f32.mrb[0].mxu0
      %v1277 = vadd.f32 0.0, %v1276
      %v1278 = vpop.f32.mrb[0].mxu0
      %v1279 = vpop.f32.mrb[0].mxu0
      %v1280 = vpop.f32.mrb[0].mxu0
      %1281 = vdwg.mxu0
      %1283 = vrot.lane.b32.xlu0 %v1277, 24
      %v1284 = vpop.permute.xlu0 %1283
      %vm1286 = vcmask 261312
      %1287 = vst.msk [vmem:[#allocation3] sm:$0xff] %vm1286, %v1284
      %v1288 = vld [vmem:[#allocation3] sm:$0xff]
      %v1289 = vpack.c.bf16 %v1288, %v1288
      %v1290 = vld [vmem:[%s8] sm:$0xf]
      %v1291 = vld [vmem:[%s8 + $0x4] sm:$0xf]
      %v1292 = vld [vmem:[%s8 + $0x8] sm:$0xf]
      %v1293 = vld [vmem:[%s8 + $0xc] sm:$0xf]
      %v1294 = vld [vmem:[%s9] sm:$0x1]
      %v1296 = vlaneseq
      %v1297 = vshrl.u32 %v1296, 7
      %v1298 = vsub.s32 0, %v1297
      %v1299 = vrot.slane %v1294, %v1298
      %v1305 = vunpack.c.l.b16 %v1290
      %v1306 = vunpack.c.l.b16 %v1291
      %v1307 = vunpack.c.l.b16 %v1292
      %v1308 = vunpack.c.l.b16 %v1293
      %v1309 = vpack.c.b16 %v1306, %v1305
      %v1310 = vpack.c.b16 %v1308, %v1307
      %v1314 = vsel %vm761, %v1289, 0
      %1316 = vmatprep.subr.bf16.mxu0 0
      %1317 = vmatpush1.bf16.msra.mxu0 %v1309
      %1318 = vmatprep.subr.bf16.mxu0 0
      %1319 = vmatpush1.bf16.msra.mxu0 %v1310
      %1320 = vmatprep.subr.bf16.mxu0 0
      %1321 = vmatpush1.bf16.msra.mxu0 0
      %1322 = vmatprep.subr.bf16.mxu0 0
      %1323 = vmatpush1.bf16.msra.mxu0 0
      %1324 = vmatprep.subr.bf16.mxu0 0
      %1325 = vmatpush1.bf16.msra.mxu0 0
      %1326 = vmatprep.subr.bf16.mxu0 0
      %1327 = vmatpush1.bf16.msra.mxu0 0
      %1328 = vmatprep.subr.bf16.mxu0 0
      %1329 = vmatpush1.bf16.msra.mxu0 0
      %1330 = vmatprep.subr.bf16.mxu0 0
      %1331 = vmatpush1.bf16.msra.mxu0 0
      %1332 = vmatprep.subr.bf16.mxu0 0
      %1333 = vmatpush1.bf16.msra.mxu0 0
      %1334 = vmatprep.subr.bf16.mxu0 0
      %1335 = vmatpush1.bf16.msra.mxu0 0
      %1336 = vmatprep.subr.bf16.mxu0 0
      %1337 = vmatpush1.bf16.msra.mxu0 0
      %1338 = vmatprep.subr.bf16.mxu0 0
      %1339 = vmatpush1.bf16.msra.mxu0 0
      %1340 = vmatprep.subr.bf16.mxu0 0
      %1341 = vmatpush1.bf16.msra.mxu0 0
      %1342 = vmatprep.subr.bf16.mxu0 0
      %1343 = vmatpush1.bf16.msra.mxu0 0
      %1344 = vmatprep.subr.bf16.mxu0 0
      %1345 = vmatpush1.bf16.msra.mxu0 0
      %1346 = vmatprep.subr.bf16.mxu0 0
      %1347 = vmatpush1.bf16.msra.mxu0 0
      %1348 = vmatprep.mubr.bf16.mxu0 0
      %1349 = vmatmul.mubr.bf16.gmra.mrb[0].mxu0 %v1314
      %v1350 = vpop.f32.mrb[0].mxu0
      %v1351 = vadd.f32 %v1299, %v1350
      %v1352 = vpop.f32.mrb[0].mxu0
      %v1353 = vpop.f32.mrb[0].mxu0
      %v1354 = vpop.f32.mrb[0].mxu0
      %1355 = vdwg.mxu0
      %v1356 = vunpack.c.l.bf16 %v737
      %v1357 = vadd.f32 %v1356, %v1351
      %v1358 = vld [vmem:[%s10] sm:$0x1]
      %v1359 = vld [vmem:[%s11] sm:$0x1]
      %v1360 = vsel %vm761, %v1357, 0.0
      %1361 = vadd.xlane.f32.xlu0 %v1360
      %v1362 = vpop.xlane.xlu0 %1361
      %v1363 = vrcp.pop 32.0
      %v1364 = vmul.f32 %v1362, %v1363
      %v1365 = vsub.f32 %v1357, %v1364
      %v1366 = vmul.f32 %v1365, %v1365
      %v1367 = vsel %vm761, %v1366, 0.0
      %1368 = vadd.xlane.f32.xlu0 %v1367
      %v1369 = vpop.xlane.xlu0 %1368
      %v1370 = vmul.f32 %v1369, %v1363
      %v1371 = vadd.f32 %v1370, 1e-05
      %v1372 = vrsqrt.pop %v1371
      %v1373 = vmul.f32 %v1365, %v1372
      %v1375 = vlaneseq
      %v1376 = vshrl.u32 %v1375, 7
      %v1377 = vsub.s32 0, %v1376
      %v1378 = vrot.slane %v1358, %v1377
      %v1380 = vmul.f32 %v1373, %v1378
      %v1382 = vlaneseq
      %v1383 = vshrl.u32 %v1382, 7
      %v1384 = vsub.s32 0, %v1383
      %v1385 = vrot.slane %v1359, %v1384
      %v1387 = vadd.f32 %v1380, %v1385
      %v1388 = vpack.c.bf16 %v1387, %v1387
      %v1389 = vld [vmem:[%s12] sm:$0xf]
      %v1390 = vld [vmem:[%s12 + $0x4] sm:$0xf]
      %v1391 = vld [vmem:[%s12 + $0x8] sm:$0xf]
      %v1392 = vld [vmem:[%s12 + $0xc] sm:$0xf]
      %v1393 = vld [vmem:[%s13] sm:$0x1]
      %v1395 = vlaneseq
      %v1396 = vshrl.u32 %v1395, 7
      %v1397 = vsub.s32 0, %v1396
      %v1398 = vrot.slane %v1393, %v1397
      %v1404 = vunpack.c.l.b16 %v1389
      %v1405 = vunpack.c.l.b16 %v1390
      %v1406 = vunpack.c.l.b16 %v1391
      %v1407 = vunpack.c.l.b16 %v1392
      %v1408 = vpack.c.b16 %v1405, %v1404
      %v1409 = vpack.c.b16 %v1407, %v1406
      %v1413 = vsel %vm761, %v1388, 0
      %1415 = vmatprep.subr.bf16.mxu0 0
      %1416 = vmatpush1.bf16.msra.mxu0 %v1408
      %1417 = vmatprep.subr.bf16.mxu0 0
      %1418 = vmatpush1.bf16.msra.mxu0 %v1409
      %1419 = vmatprep.subr.bf16.mxu0 0
      %1420 = vmatpush1.bf16.msra.mxu0 0
      %1421 = vmatprep.subr.bf16.mxu0 0
      %1422 = vmatpush1.bf16.msra.mxu0 0
      %1423 = vmatprep.subr.bf16.mxu0 0
      %1424 = vmatpush1.bf16.msra.mxu0 0
      %1425 = vmatprep.subr.bf16.mxu0 0
      %1426 = vmatpush1.bf16.msra.mxu0 0
      %1427 = vmatprep.subr.bf16.mxu0 0
      %1428 = vmatpush1.bf16.msra.mxu0 0
      %1429 = vmatprep.subr.bf16.mxu0 0
      %1430 = vmatpush1.bf16.msra.mxu0 0
      %1431 = vmatprep.subr.bf16.mxu0 0
      %1432 = vmatpush1.bf16.msra.mxu0 0
      %1433 = vmatprep.subr.bf16.mxu0 0
      %1434 = vmatpush1.bf16.msra.mxu0 0
      %1435 = vmatprep.subr.bf16.mxu0 0
      %1436 = vmatpush1.bf16.msra.mxu0 0
      %1437 = vmatprep.subr.bf16.mxu0 0
      %1438 = vmatpush1.bf16.msra.mxu0 0
      %1439 = vmatprep.subr.bf16.mxu0 0
      %1440 = vmatpush1.bf16.msra.mxu0 0
      %1441 = vmatprep.subr.bf16.mxu0 0
      %1442 = vmatpush1.bf16.msra.mxu0 0
      %1443 = vmatprep.subr.bf16.mxu0 0
      %1444 = vmatpush1.bf16.msra.mxu0 0
      %1445 = vmatprep.subr.bf16.mxu0 0
      %1446 = vmatpush1.bf16.msra.mxu0 0
      %1447 = vmatprep.mubr.bf16.mxu0 0
      %1448 = vmatmul.mubr.bf16.gmra.mrb[0].mxu0 %v1413
      %v1449 = vpop.f32.mrb[0].mxu0
      %v1450 = vadd.f32 %v1398, %v1449
      %v1451 = vpop.f32.mrb[0].mxu0
      %v1452 = vpop.f32.mrb[0].mxu0
      %v1453 = vpop.f32.mrb[0].mxu0
      %1454 = vdwg.mxu0
      %v1455 = vmax.f32 %v1450, 0.0
      %v1456 = vpack.c.bf16 %v1455, %v1455
      %v1457 = vld [vmem:[%s14] sm:$0xf]
      %v1458 = vld [vmem:[%s14 + $0x4] sm:$0xf]
      %v1459 = vld [vmem:[%s14 + $0x8] sm:$0xf]
      %v1460 = vld [vmem:[%s14 + $0xc] sm:$0xf]
      %v1461 = vld [vmem:[%s14 + $0x10] sm:$0xf]
      %v1462 = vld [vmem:[%s14 + $0x14] sm:$0xf]
      %v1463 = vld [vmem:[%s14 + $0x18] sm:$0xf]
      %v1464 = vld [vmem:[%s14 + $0x1c] sm:$0xf]
      %v1473 = vunpack.c.l.b16 %v1457
      %v1474 = vunpack.c.l.b16 %v1458
      %v1475 = vunpack.c.l.b16 %v1459
      %v1476 = vunpack.c.l.b16 %v1460
      %v1477 = vunpack.c.l.b16 %v1461
      %v1478 = vunpack.c.l.b16 %v1462
      %v1479 = vunpack.c.l.b16 %v1463
      %v1480 = vunpack.c.l.b16 %v1464
      %v1481 = vpack.c.b16 %v1474, %v1473
      %v1482 = vpack.c.b16 %v1476, %v1475
      %v1483 = vpack.c.b16 %v1478, %v1477
      %v1484 = vpack.c.b16 %v1480, %v1479
      %vm1489 = vcmask 523264
      %v1491 = vsel %vm1489, %v1456, 0
      %1493 = vmatprep.subr.bf16.mxu0 0
      %1494 = vmatpush1.bf16.msra.mxu0 %v1481
      %1495 = vmatprep.subr.bf16.mxu0 0
      %1496 = vmatpush1.bf16.msra.mxu0 %v1482
      %1497 = vmatprep.subr.bf16.mxu0 0
      %1498 = vmatpush1.bf16.msra.mxu0 %v1483
      %1499 = vmatprep.subr.bf16.mxu0 0
      %1500 = vmatpush1.bf16.msra.mxu0 %v1484
      %1501 = vmatprep.subr.bf16.mxu0 0
      %1502 = vmatpush1.bf16.msra.mxu0 0
      %1503 = vmatprep.subr.bf16.mxu0 0
      %1504 = vmatpush1.bf16.msra.mxu0 0
      %1505 = vmatprep.subr.bf16.mxu0 0
      %1506 = vmatpush1.bf16.msra.mxu0 0
      %1507 = vmatprep.subr.bf16.mxu0 0
      %1508 = vmatpush1.bf16.msra.mxu0 0
      %1509 = vmatprep.subr.bf16.mxu0 0
      %1510 = vmatpush1.bf16.msra.mxu0 0
      %1511 = vmatprep.subr.bf16.mxu0 0
      %1512 = vmatpush1.bf16.msra.mxu0 0
      %1513 = vmatprep.subr.bf16.mxu0 0
      %1514 = vmatpush1.bf16.msra.mxu0 0
      %1515 = vmatprep.subr.bf16.mxu0 0
      %1516 = vmatpush1.bf16.msra.mxu0 0
      %1517 = vmatprep.subr.bf16.mxu0 0
      %1518 = vmatpush1.bf16.msra.mxu0 0
      %1519 = vmatprep.subr.bf16.mxu0 0
      %1520 = vmatpush1.bf16.msra.mxu0 0
      %1521 = vmatprep.subr.bf16.mxu0 0
      %1522 = vmatpush1.bf16.msra.mxu0 0
      %1523 = vmatprep.subr.bf16.mxu0 0
      %1524 = vmatpush1.bf16.msra.mxu0 0
      %1525 = vmatprep.mubr.bf16.mxu0 0
      %1526 = vmatmul.mubr.bf16.gmra.mrb[0].mxu0 %v1491
      %v1527 = vpop.f32.mrb[0].mxu0
      %v1528 = vadd.f32 0.0, %v1527
      %v1529 = vpop.f32.mrb[0].mxu0
      %v1530 = vpop.f32.mrb[0].mxu0
      %v1531 = vpop.f32.mrb[0].mxu0
      %1532 = vdwg.mxu0
      %v1533 = vadd.f32 %v1387, %v1528
      %v1534 = vld [vmem:[%s15] sm:$0x1]
      %v1536 = vlaneseq
      %v1537 = vshrl.u32 %v1536, 7
      %v1538 = vsub.s32 0, %v1537
      %v1539 = vrot.slane %v1534, %v1538
      %v1541 = vadd.f32 %v1533, %v1539
      %v1542 = vld [vmem:[%s16] sm:$0x1]
      %v1543 = vld [vmem:[%s17] sm:$0x1]
      %v1544 = vsel %vm761, %v1541, 0.0
      %1545 = vadd.xlane.f32.xlu0 %v1544
      %v1546 = vpop.xlane.xlu0 %1545
      %v1547 = vmul.f32 %v1546, %v1363
      %v1548 = vsub.f32 %v1541, %v1547
      %v1549 = vmul.f32 %v1548, %v1548
      %v1550 = vsel %vm761, %v1549, 0.0
      %1551 = vadd.xlane.f32.xlu0 %v1550
      %v1552 = vpop.xlane.xlu0 %1551
      %v1553 = vmul.f32 %v1552, %v1363
      %v1554 = vadd.f32 %v1553, 1e-05
      %v1555 = vrsqrt.pop %v1554
      %v1556 = vmul.f32 %v1548, %v1555
      %v1558 = vlaneseq
      %v1559 = vshrl.u32 %v1558, 7
      %v1560 = vsub.s32 0, %v1559
      %v1561 = vrot.slane %v1542, %v1560
      %v1563 = vmul.f32 %v1556, %v1561
      %v1565 = vlaneseq
      %v1566 = vshrl.u32 %v1565, 7
      %v1567 = vsub.s32 0, %v1566
      %v1568 = vrot.slane %v1543, %v1567
      %v1570 = vadd.f32 %v1563, %v1568
      %v1571 = vpack.c.bf16 %v1570, %v1570
      %vm1572 = vcmask 257024
      %1573 = vst.msk [vmem:[%s660] sm:$0xf] %vm1572, %v1571
      %p1574 = scmp.lt.s32.totalorder %s33, 1
      %s1575 = scalar_select %p1574, %s33, 1
      %p1576 = scmp.lt.s32.totalorder %s34, 0
      %s1577 = scalar_select %p1576, %s34, 0
      %s1578 = sadd.s32 %s1577, %s1575
      %s1579 = smul.addr %s1578, 4
      %s1580 = scalar_lea.vmem %s18, %s1579
      // Predicated region
      $region97: #{transformer_forward.7} parent=91 // pred_check
        %p1581 = pneg %p463
      $region98: #{transformer_forward.7} parent=91 // pred_check_branch
        %1583 = sbr.rel (%p1581) target = $region100
      $region99: #{transformer_forward.7} parent=91 // pred_region
        _
      $region100: #{transformer_forward.7} parent=91 // pred_fallthru
        _
    $region92: #{transformer_forward.7} parent=5 // pred_fallthru
      _
    %p1584 = scmp.le.s32.totalorder 2, %s24
    // Predicated region
    $region101: #{transformer_forward.7} parent=5 // pred_check
      %p1585 = pneg %p1584
    $region102: #{transformer_forward.7} parent=5 // pred_check_branch
      %1587 = sbr.rel (%p1585) target = $region104
    $region103: #{transformer_forward.7} parent=5 // pred_region
      %s1588 = ssub.s32 %s24, 2
      // Predicated region
      $region105: #{transformer_forward.7} parent=103 // pred_check
        %p1589 = pneg %p469
      $region106: #{transformer_forward.7} parent=103 // pred_check_branch
        %1591 = sbr.rel (%p1589) target = $region108
      $region107: #{transformer_forward.7} parent=103 // pred_region
        %p1592 = scmp.lt.s32.totalorder %s35, 1
        %s1593 = scalar_select %p1592, %s35, 1
        %p1594 = scmp.lt.s32.totalorder %s36, 0
        %s1595 = scalar_select %p1594, %s36, 0
        %s1596 = sadd.s32 %s1595, %s1593
        %s1597 = smul.addr %s1596, 4
        %s1598 = scalar_lea.vmem %s18, %s1597
      $region108: #{transformer_forward.7} parent=103 // pred_fallthru
        _
    $region104: #{transformer_forward.7} parent=5 // pred_fallthru
      _
  $region6: #{transformer_forward.7} parent=0 // loop_footer
    %s28 = sadd.s32 1, %s24
  $region7: #{transformer_forward.7} parent=0 // loop_footer_branch
    %23 = sbr.rel target = $region3
  $region8: #{transformer_forward.7} parent=0 // loop_exit
    _

</llo_original>
